<compile_context>
chip_gen: v6e
topology: v6e:2x2x1
jax: 0.10.0
libtpu: 0.0.40
codegen_flags: <defaults>
</compile_context>

<pallas_src>
import numpy as np
import jax
import jax.numpy as jnp
from jax.experimental import pallas as pl
from jax.experimental.pallas import tpu as pltpu  # noqa: F401  (TPU backend assumed)

# ---- model hyperparameters (structurally identical to the reference config) ----
NODE_IN, NODE_OUT = 32, 16
EDGE_IN, EDGE_OUT = 6, 8
NODE_FC = [32]
EDGE_FC = [16]
EDGE_MODEL_FC = [32, EDGE_OUT]     # edge-update MLP
NODE_MODEL_FC = [32, NODE_OUT]     # flow_in / flow_out MLPs
CLS_FC = [8]
NUM_ENC_STEPS = 4
NUM_CLASS_STEPS = 3
FIRST_CLASS_STEP = NUM_ENC_STEPS - NUM_CLASS_STEPS + 1
REATTACH_INITIAL_EDGES = True      # latent_edge := [initial_edge, latent_edge] per step
# node_agg_fn = 'sum'

LANES = 128
H_E = EDGE_MODEL_FC[0]             # 32
H_F = NODE_MODEL_FC[0]             # 32


# ------------------------------ parameter init ------------------------------ #
def _init_linear(key, din, dout):
    k1, k2 = jax.random.split(key)
    w = jax.random.normal(k1, (din, dout), jnp.float32) / np.sqrt(din)
    b = 0.01 * jax.random.normal(k2, (1, dout), jnp.float32)
    return w, b


def build_params(key):
    """All Linear weights.  First layers of concat-fed MLPs are stored row-split so
    that Linear(concat([a, b, ...])) == a @ W_a + b @ W_b + ... + bias."""
    ks = jax.random.split(key, 13)
    p = {}
    p['enc_node'] = [_init_linear(ks[0], NODE_IN, NODE_FC[0]),
                     _init_linear(ks[1], NODE_FC[0], NODE_OUT)]
    p['enc_edge'] = [_init_linear(ks[2], EDGE_IN, EDGE_FC[0]),
                     _init_linear(ks[3], EDGE_FC[0], EDGE_OUT)]

    # Edge model input = concat([x[row], x[col], initial_edge, latent_edge])
    em_in = 2 * NODE_OUT + 2 * EDGE_OUT
    w1, b1 = _init_linear(ks[4], em_in, EDGE_MODEL_FC[0])
    w2, b2 = _init_linear(ks[5], EDGE_MODEL_FC[0], EDGE_MODEL_FC[1])
    p['edge_model'] = {
        'w_src': w1[:NODE_OUT],
        'w_tgt': w1[NODE_OUT:2 * NODE_OUT],
        'w_e0':  w1[2 * NODE_OUT:2 * NODE_OUT + EDGE_OUT],
        'w_e':   w1[2 * NODE_OUT + EDGE_OUT:],
        'b1':    b1,
        'l2':    (w2, b2),
    }

    # Flow MLP input = concat([x[col], latent_edge])
    fm_in = NODE_OUT + EDGE_OUT
    for name, k0 in (('flow_out', 6), ('flow_in', 8)):
        w1, b1 = _init_linear(ks[k0], fm_in, NODE_MODEL_FC[0])
        w2, b2 = _init_linear(ks[k0 + 1], NODE_MODEL_FC[0], NODE_MODEL_FC[1])
        p[name] = {'w_x': w1[:NODE_OUT], 'w_e': w1[NODE_OUT:], 'b1': b1, 'l2': (w2, b2)}

    # node_mlp input = concat([flow_in, flow_out])
    w1, b1 = _init_linear(ks[10], 2 * NODE_OUT, NODE_OUT)
    p['node_mlp'] = {'w_in': w1[:NODE_OUT], 'w_out': w1[NODE_OUT:], 'b': b1}

    p['classifier'] = [_init_linear(ks[11], EDGE_OUT, CLS_FC[0]),
                       _init_linear(ks[12], CLS_FC[0], 1)]
    return p


# ------------------------- host-side packing helpers ------------------------- #
def _block_diag(blocks):
    r = sum(b.shape[0] for b in blocks)
    c = sum(b.shape[1] for b in blocks)
    out = np.zeros((r, c), np.float32)
    i = j = 0
    for b in blocks:
        out[i:i + b.shape[0], j:j + b.shape[1]] = b
        i += b.shape[0]
        j += b.shape[1]
    return out


def _pack_slab(entries):
    """Pack 2-D arrays (each width <= 128) into one (R, 128) slab, every block
    starting at an 8-aligned row.  Returns (slab, {name: (row0, (h, w))})."""
    index = {}
    blocks = []
    r = 0
    for name, a in entries:
        a = np.asarray(a, np.float32)
        assert a.ndim == 2 and a.shape[1] <= LANES, (name, a.shape)
        h, w = a.shape
        h_pad = ((h + 7) // 8) * 8
        blk = np.zeros((h_pad, LANES), np.float32)
        blk[:h, :w] = a
        index[name] = (r, (h, w))
        blocks.append(blk)
        r += h_pad
    return np.concatenate(blocks, axis=0), index


def _pack_params_and_graph(params, edge_index_np, N, M):
    """Fuse weights on the host and pack everything (weights + graph operators)
    into a single VMEM slab."""
    rows = np.asarray(edge_index_np[0])
    cols = np.asarray(edge_index_np[1])

    g_row = np.zeros((M, N), np.float32); g_row[np.arange(M), rows] = 1.0
    g_col = np.zeros((M, N), np.float32); g_col[np.arange(M), cols] = 1.0
    s_row = np.ascontiguousarray(g_row.T)                          # (N, M) scatter-add to row
    mask_out = (rows < cols).astype(np.float32)                    # flow_out edges
    mask_in = (rows > cols).astype(np.float32)                     # flow_in  edges
    mask_cat = np.concatenate([np.repeat(mask_out[:, None], NODE_OUT, 1),
                               np.repeat(mask_in[:, None], NODE_OUT, 1)], axis=1)  # (M, 2*NODE_OUT)

    f = lambda a: np.asarray(a, np.float32)
    em, fo, fi, nm = params['edge_model'], params['flow_out'], params['flow_in'], params['node_mlp']
    cls1, cls2 = params['classifier']

    entries = [
        # encoders
        ('enc_n_w1', f(params['enc_node'][0][0])), ('enc_n_b1', f(params['enc_node'][0][1])),
        ('enc_n_w2', f(params['enc_node'][1][0])), ('enc_n_b2', f(params['enc_node'][1][1])),
        ('enc_e_w1', f(params['enc_edge'][0][0])), ('enc_e_b1', f(params['enc_edge'][0][1])),
        ('enc_e_w2', f(params['enc_edge'][1][0])), ('enc_e_b2', f(params['enc_edge'][1][1])),
        # fused node-side first-layer weights: [w_src | w_tgt | fo.w_x | fi.w_x]  (16, 128)
        ('w_node_cat', np.concatenate([f(em['w_src']), f(em['w_tgt']),
                                       f(fo['w_x']), f(fi['w_x'])], axis=1)),
        # edge model
        ('em_w_e0', f(em['w_e0'])), ('em_w_e', f(em['w_e'])), ('em_b1', f(em['b1'])),
        ('em_w2', f(em['l2'][0])), ('em_b2', f(em['l2'][1])),
        # fused flow MLPs (flow_out block first, flow_in block second)
        ('w_e_flow', np.concatenate([f(fo['w_e']), f(fi['w_e'])], axis=1)),        # (8, 64)
        ('b1_flow', np.concatenate([f(fo['b1']), f(fi['b1'])], axis=1)),           # (1, 64)
        ('w2_flow', _block_diag([f(fo['l2'][0]), f(fi['l2'][0])])),                # (64, 32)
        ('b2_flow', np.concatenate([f(fo['l2'][1]), f(fi['l2'][1])], axis=1)),     # (1, 32)
        # node MLP: rows 0:16 apply to flow_out, rows 16:32 apply to flow_in
        ('w_node_oi', np.concatenate([f(nm['w_out']), f(nm['w_in'])], axis=0)),    # (32, 16)
        ('b_node', f(nm['b'])),
        # classifier over all class steps at once (block-diagonal)
        ('cls_w1_blk', _block_diag([f(cls1[0])] * NUM_CLASS_STEPS)),               # (24, 24)
        ('cls_b1_t', np.tile(f(cls1[1]), (1, NUM_CLASS_STEPS))),                   # (1, 24)
        ('cls_w2_blk', _block_diag([f(cls2[0])] * NUM_CLASS_STEPS)),               # (24, 3)
        ('cls_b2_t', np.tile(f(cls2[1]), (1, NUM_CLASS_STEPS))),                   # (1, 3)
        # graph operators
        ('g_row', g_row), ('g_col', g_col), ('s_row', s_row), ('mask_cat', mask_cat),
    ]
    slab, index = _pack_slab(entries)
    return jnp.asarray(slab), index


# -------------------------------- fused kernel ------------------------------ #
def _make_fused_kernel(index, N, M):
    def kernel(x_ref, ea_ref, slab_ref, node_out_ref, cls_out_ref):
        def W(name):
            r0, (h, w) = index[name]
            return slab_ref[r0:r0 + h, 0:w]      # static slice of the packed slab

        def dense(h, wname, bname, relu=True):
            y = jnp.dot(h, W(wname), preferred_element_type=jnp.float32) + W(bname)
            return jnp.maximum(y, 0.0) if relu else y

        # ---- weights / graph operators used inside the unrolled loop: load ONCE ----
        g_row = W('g_row')                      # (M, N) one-hot gather x[row]
        g_col = W('g_col')                      # (M, N) one-hot gather x[col]
        s_row = W('s_row')                      # (N, M) scatter-add to row
        mask_cat = W('mask_cat')                # (M, 2*NODE_OUT)  [row<col | row>col]
        w_node_cat = W('w_node_cat')            # (NODE_OUT, 128)
        em_w_e = W('em_w_e')                    # (EDGE_OUT, H_E)
        em_w2 = W('em_w2')                      # (H_E, EDGE_OUT)
        w_e_flow = W('w_e_flow')                # (EDGE_OUT, 2*H_F)
        w2_flow = W('w2_flow')                  # (2*H_F, 2*NODE_OUT)  block diagonal
        w_node_oi = W('w_node_oi')              # (2*NODE_OUT, NODE_OUT)
        # pre-broadcast biases (hoisted; Mosaic does not CSE broadcasts in the loop)
        b1_e = jnp.broadcast_to(W('em_b1'), (M, H_E))
        b2_e = jnp.broadcast_to(W('em_b2'), (M, EDGE_OUT))
        b1_f = jnp.broadcast_to(W('b1_flow'), (M, 2 * H_F))
        b2_f = jnp.broadcast_to(W('b2_flow'), (M, 2 * NODE_OUT))
        b_n = jnp.broadcast_to(W('b_node'), (N, NODE_OUT))

        # ---- encoders (MLPGraphIndependent) ----
        latent_node = dense(dense(x_ref[...], 'enc_n_w1', 'enc_n_b1'), 'enc_n_w2', 'enc_n_b2')
        latent_edge = dense(dense(ea_ref[...], 'enc_e_w1', 'enc_e_b1'), 'enc_e_w2', 'enc_e_b2')
        initial_edge = latent_edge
        # initial_edge term of the edge model is constant across steps -> hoist
        e0_term = jnp.dot(initial_edge, W('em_w_e0'), preferred_element_type=jnp.float32)  # (M, H_E)

        node_snaps = [latent_node]
        edge_snaps = []

        for step in range(1, NUM_ENC_STEPS + 1):
            # fused node-side first layers: one (N,16)@(16,128) matmul ...
            xw = jnp.dot(latent_node, w_node_cat, preferred_element_type=jnp.float32)   # (N, 128)
            # ... then two full-128-lane one-hot gathers (exact row selection)
            row_g = jnp.dot(g_row, xw, preferred_element_type=jnp.float32)              # (M, 128)
            col_g = jnp.dot(g_col, xw, preferred_element_type=jnp.float32)              # (M, 128)

            # ---- MetaLayer edge update: edge_model(x[row], x[col], [e0, e]) ----
            h_e = jnp.maximum(
                row_g[:, 0:H_E]                       # x[row] @ w_src
                + col_g[:, H_E:2 * H_E]               # x[col] @ w_tgt
                + e0_term
                + jnp.dot(latent_edge, em_w_e, preferred_element_type=jnp.float32)
                + b1_e, 0.0)
            latent_edge = jnp.maximum(
                jnp.dot(h_e, em_w2, preferred_element_type=jnp.float32) + b2_e, 0.0)

            # ---- MetaLayer node update (TimeAwareNodeModel, node_agg_fn='sum') ----
            # fused flow_out/flow_in MLPs on ALL edges; direction masks applied as a
            # per-edge multiply (exact for 'sum'); single scatter + fused node MLP.
            h_f = jnp.maximum(
                col_g[:, 2 * H_E:2 * H_E + 2 * H_F]   # [x[col]@fo.w_x | x[col]@fi.w_x]
                + jnp.dot(latent_edge, w_e_flow, preferred_element_type=jnp.float32)
                + b1_f, 0.0)
            flow_all = jnp.maximum(
                jnp.dot(h_f, w2_flow, preferred_element_type=jnp.float32) + b2_f, 0.0)  # (M, 32)
            scattered = jnp.dot(s_row, flow_all * mask_cat,
                                preferred_element_type=jnp.float32)                      # (N, 32)
            latent_node = jnp.maximum(
                jnp.dot(scattered, w_node_oi, preferred_element_type=jnp.float32) + b_n, 0.0)

            if step >= FIRST_CLASS_STEP:
                edge_snaps.append(latent_edge)
                node_snaps.append(latent_node)

        # ---- classifier head on all class-step edge embeddings at once ----
        e_wide = jnp.concatenate(edge_snaps, axis=1)                                     # (M, 3*EDGE_OUT)
        h_c = jnp.maximum(
            jnp.dot(e_wide, W('cls_w1_blk'), preferred_element_type=jnp.float32)
            + W('cls_b1_t'), 0.0)
        logits = jnp.dot(h_c, W('cls_w2_blk'), preferred_element_type=jnp.float32) + W('cls_b2_t')

        # single, packed stores (no per-step narrow HBM writes)
        node_out_ref[...] = jnp.concatenate(node_snaps, axis=1)   # (N, 4*NODE_OUT)
        cls_out_ref[...] = logits                                 # (M, NUM_CLASS_STEPS)

    return kernel


def _flops_estimate(N, M):
    f = 2 * N * (NODE_IN * NODE_FC[0] + NODE_FC[0] * NODE_OUT)
    f += 2 * M * (EDGE_IN * EDGE_FC[0] + EDGE_FC[0] * EDGE_OUT)
    f += 2 * M * EDGE_OUT * H_E                                      # e0 term
    per_step = (
        2 * N * NODE_OUT * LANES                                     # fused XW
        + 2 * 2 * M * N * LANES                                      # two gathers
        + 2 * M * (EDGE_OUT * H_E + H_E * EDGE_OUT)                  # edge MLP
        + 2 * M * (EDGE_OUT * 2 * H_F + 2 * H_F * 2 * NODE_OUT)      # fused flow MLPs
        + 2 * N * M * 2 * NODE_OUT                                   # scatter
        + 2 * N * 2 * NODE_OUT * NODE_OUT                            # node MLP
    )
    f += NUM_ENC_STEPS * per_step
    ce = NUM_CLASS_STEPS * EDGE_OUT
    f += 2 * M * (ce * ce + ce * NUM_CLASS_STEPS)                    # block-diag classifier
    return int(f)


# ------------------------------- forward wrapper ----------------------------- #
def motmpnet_forward(params, x, edge_index_np, edge_attr):
    """x: (N, NODE_IN) f32, edge_index_np: numpy (2, M) int, edge_attr: (M, EDGE_IN) f32."""
    N, M = x.shape[0], edge_attr.shape[0]

    slab, index = _pack_params_and_graph(params, edge_index_np, N, M)
    kernel = _make_fused_kernel(index, N, M)

    out_shape = (
        jax.ShapeDtypeStruct((N, (NUM_CLASS_STEPS + 1) * NODE_OUT), jnp.float32),
        jax.ShapeDtypeStruct((M, NUM_CLASS_STEPS), jnp.float32),
    )

    in_bytes = 4 * (x.size + edge_attr.size + slab.size)
    out_bytes = sum(int(np.prod(s.shape)) * 4 for s in out_shape)
    cost = pl.CostEstimate(flops=_flops_estimate(N, M), transcendentals=0,
                           bytes_accessed=in_bytes + out_bytes)

    node_out, cls_out = pl.pallas_call(
        kernel,
        out_shape=out_shape,
        cost_estimate=cost,
    )(x, edge_attr, slab)

    return {
        'classified_edges': [cls_out[:, k:k + 1] for k in range(NUM_CLASS_STEPS)],
        'node_feats': [node_out[:, k * NODE_OUT:(k + 1) * NODE_OUT]
                       for k in range(NUM_CLASS_STEPS + 1)],
    }


# ------------------------------------ main ----------------------------------- #
if __name__ == "__main__":
    key = jax.random.PRNGKey(0)
    N_NODES, N_EDGES = 16, 24

    k_x, k_e, k_p = jax.random.split(key, 3)
    x = jax.random.normal(k_x, (N_NODES, NODE_IN), jnp.float32)
    edge_attr = jax.random.normal(k_e, (N_EDGES, EDGE_IN), jnp.float32)

    # deterministic edge_index (2, M) with row != col; contains both row<col and row>col
    rng = np.random.RandomState(0)
    rows = rng.randint(0, N_NODES, size=N_EDGES)
    cols = (rows + 1 + rng.randint(0, N_NODES - 1, size=N_EDGES)) % N_NODES
    edge_index = np.stack([rows, cols]).astype(np.int32)

    params = build_params(k_p)
    out = motmpnet_forward(params, x, edge_index, edge_attr)
    jax.block_until_ready(out)

    assert len(out['classified_edges']) == NUM_CLASS_STEPS
    assert out['classified_edges'][0].shape == (N_EDGES, 1)
    assert out['node_feats'][-1].shape == (N_NODES, NODE_OUT)
    print("KERNEL_OK")
</pallas_src>

<mosaic_0001>
module attributes {stable_mosaic.version = 11 : i64} {
  func.func @kernel(%arg0: memref<16x32xf32, #tpu.memory_space<vmem>>, %arg1: memref<24x6xf32, #tpu.memory_space<vmem>>, %arg2: memref<480x128xf32, #tpu.memory_space<vmem>>, %arg3: memref<16x64xf32, #tpu.memory_space<vmem>>, %arg4: memref<24x3xf32, #tpu.memory_space<vmem>>) attributes {dimension_semantics = [], scalar_prefetch = 0 : i64, scratch_operands = 0 : i64, tpu.core_type = #tpu.core_type<tc>} {
    %c392 = arith.constant 392 : index
    %c0 = arith.constant 0 : index
    %0 = vector.load %arg2[%c392, %c0] : memref<480x128xf32, #tpu.memory_space<vmem>>, vector<24x16xf32>
    %c416 = arith.constant 416 : index
    %c0_0 = arith.constant 0 : index
    %1 = vector.load %arg2[%c416, %c0_0] : memref<480x128xf32, #tpu.memory_space<vmem>>, vector<24x16xf32>
    %c440 = arith.constant 440 : index
    %c0_1 = arith.constant 0 : index
    %2 = vector.load %arg2[%c440, %c0_1] : memref<480x128xf32, #tpu.memory_space<vmem>>, vector<16x24xf32>
    %c456 = arith.constant 456 : index
    %c0_2 = arith.constant 0 : index
    %3 = vector.load %arg2[%c456, %c0_2] : memref<480x128xf32, #tpu.memory_space<vmem>>, vector<24x32xf32>
    %c120 = arith.constant 120 : index
    %c0_3 = arith.constant 0 : index
    %4 = vector.load %arg2[%c120, %c0_3] : memref<480x128xf32, #tpu.memory_space<vmem>>, vector<16x128xf32>
    %c144 = arith.constant 144 : index
    %c0_4 = arith.constant 0 : index
    %5 = vector.load %arg2[%c144, %c0_4] : memref<480x128xf32, #tpu.memory_space<vmem>>, vector<8x32xf32>
    %c160 = arith.constant 160 : index
    %c0_5 = arith.constant 0 : index
    %6 = vector.load %arg2[%c160, %c0_5] : memref<480x128xf32, #tpu.memory_space<vmem>>, vector<32x8xf32>
    %c200 = arith.constant 200 : index
    %c0_6 = arith.constant 0 : index
    %7 = vector.load %arg2[%c200, %c0_6] : memref<480x128xf32, #tpu.memory_space<vmem>>, vector<8x64xf32>
    %c216 = arith.constant 216 : index
    %c0_7 = arith.constant 0 : index
    %8 = vector.load %arg2[%c216, %c0_7] : memref<480x128xf32, #tpu.memory_space<vmem>>, vector<64x32xf32>
    %c288 = arith.constant 288 : index
    %c0_8 = arith.constant 0 : index
    %9 = vector.load %arg2[%c288, %c0_8] : memref<480x128xf32, #tpu.memory_space<vmem>>, vector<32x16xf32>
    %c152 = arith.constant 152 : index
    %c0_9 = arith.constant 0 : index
    %10 = vector.load %arg2[%c152, %c0_9] : memref<480x128xf32, #tpu.memory_space<vmem>>, vector<1x32xf32>
    %11 = vector.shape_cast %10 : vector<1x32xf32> to vector<1x32xf32>
    %12 = vector.broadcast %11 : vector<1x32xf32> to vector<24x32xf32>
    %c192 = arith.constant 192 : index
    %c0_10 = arith.constant 0 : index
    %13 = vector.load %arg2[%c192, %c0_10] : memref<480x128xf32, #tpu.memory_space<vmem>>, vector<1x8xf32>
    %14 = vector.shape_cast %13 : vector<1x8xf32> to vector<1x8xf32>
    %15 = vector.broadcast %14 : vector<1x8xf32> to vector<24x8xf32>
    %c208 = arith.constant 208 : index
    %c0_11 = arith.constant 0 : index
    %16 = vector.load %arg2[%c208, %c0_11] : memref<480x128xf32, #tpu.memory_space<vmem>>, vector<1x64xf32>
    %17 = vector.shape_cast %16 : vector<1x64xf32> to vector<1x64xf32>
    %18 = vector.broadcast %17 : vector<1x64xf32> to vector<24x64xf32>
    %c280 = arith.constant 280 : index
    %c0_12 = arith.constant 0 : index
    %19 = vector.load %arg2[%c280, %c0_12] : memref<480x128xf32, #tpu.memory_space<vmem>>, vector<1x32xf32>
    %20 = vector.shape_cast %19 : vector<1x32xf32> to vector<1x32xf32>
    %21 = vector.broadcast %20 : vector<1x32xf32> to vector<24x32xf32>
    %c320 = arith.constant 320 : index
    %c0_13 = arith.constant 0 : index
    %22 = vector.load %arg2[%c320, %c0_13] : memref<480x128xf32, #tpu.memory_space<vmem>>, vector<1x16xf32>
    %23 = vector.shape_cast %22 : vector<1x16xf32> to vector<1x16xf32>
    %24 = vector.broadcast %23 : vector<1x16xf32> to vector<16x16xf32>
    %c0_14 = arith.constant 0 : index
    %c0_15 = arith.constant 0 : index
    %25 = vector.load %arg0[%c0_14, %c0_15] : memref<16x32xf32, #tpu.memory_space<vmem>>, vector<16x32xf32>
    %c0_16 = arith.constant 0 : index
    %c0_17 = arith.constant 0 : index
    %26 = vector.load %arg2[%c0_16, %c0_17] : memref<480x128xf32, #tpu.memory_space<vmem>>, vector<32x32xf32>
    %cst = arith.constant dense<0.000000e+00> : vector<16x32xf32>
    %27 = tpu.matmul %25, %26, %cst {dimension_numbers = #tpu.dot_dimension_numbers<[1], [0], [0], [1], [0, 0, 1, 1], [], []>} : vector<16x32xf32>, vector<32x32xf32>, vector<16x32xf32> -> vector<16x32xf32>
    %c32 = arith.constant 32 : index
    %c0_18 = arith.constant 0 : index
    %28 = vector.load %arg2[%c32, %c0_18] : memref<480x128xf32, #tpu.memory_space<vmem>>, vector<1x32xf32>
    %29 = vector.broadcast %28 : vector<1x32xf32> to vector<16x32xf32>
    %30 = arith.addf %27, %29 : vector<16x32xf32>
    %cst_19 = arith.constant 0.000000e+00 : f32
    %31 = vector.broadcast %cst_19 : f32 to vector<16x32xf32>
    %32 = arith.maximumf %30, %31 : vector<16x32xf32>
    %c40 = arith.constant 40 : index
    %c0_20 = arith.constant 0 : index
    %33 = vector.load %arg2[%c40, %c0_20] : memref<480x128xf32, #tpu.memory_space<vmem>>, vector<32x16xf32>
    %cst_21 = arith.constant dense<0.000000e+00> : vector<16x16xf32>
    %34 = tpu.matmul %32, %33, %cst_21 {dimension_numbers = #tpu.dot_dimension_numbers<[1], [0], [0], [1], [0, 0, 1, 1], [], []>} : vector<16x32xf32>, vector<32x16xf32>, vector<16x16xf32> -> vector<16x16xf32>
    %c72 = arith.constant 72 : index
    %c0_22 = arith.constant 0 : index
    %35 = vector.load %arg2[%c72, %c0_22] : memref<480x128xf32, #tpu.memory_space<vmem>>, vector<1x16xf32>
    %36 = vector.broadcast %35 : vector<1x16xf32> to vector<16x16xf32>
    %37 = arith.addf %34, %36 : vector<16x16xf32>
    %cst_23 = arith.constant 0.000000e+00 : f32
    %38 = vector.broadcast %cst_23 : f32 to vector<16x16xf32>
    %39 = arith.maximumf %37, %38 : vector<16x16xf32>
    %c0_24 = arith.constant 0 : index
    %c0_25 = arith.constant 0 : index
    %40 = vector.load %arg1[%c0_24, %c0_25] : memref<24x6xf32, #tpu.memory_space<vmem>>, vector<24x6xf32>
    %c80 = arith.constant 80 : index
    %c0_26 = arith.constant 0 : index
    %41 = vector.load %arg2[%c80, %c0_26] : memref<480x128xf32, #tpu.memory_space<vmem>>, vector<6x16xf32>
    %cst_27 = arith.constant dense<0.000000e+00> : vector<24x16xf32>
    %42 = tpu.matmul %40, %41, %cst_27 {dimension_numbers = #tpu.dot_dimension_numbers<[1], [0], [0], [1], [0, 0, 1, 1], [], []>} : vector<24x6xf32>, vector<6x16xf32>, vector<24x16xf32> -> vector<24x16xf32>
    %c88 = arith.constant 88 : index
    %c0_28 = arith.constant 0 : index
    %43 = vector.load %arg2[%c88, %c0_28] : memref<480x128xf32, #tpu.memory_space<vmem>>, vector<1x16xf32>
    %44 = vector.broadcast %43 : vector<1x16xf32> to vector<24x16xf32>
    %45 = arith.addf %42, %44 : vector<24x16xf32>
    %cst_29 = arith.constant 0.000000e+00 : f32
    %46 = vector.broadcast %cst_29 : f32 to vector<24x16xf32>
    %47 = arith.maximumf %45, %46 : vector<24x16xf32>
    %c96 = arith.constant 96 : index
    %c0_30 = arith.constant 0 : index
    %48 = vector.load %arg2[%c96, %c0_30] : memref<480x128xf32, #tpu.memory_space<vmem>>, vector<16x8xf32>
    %cst_31 = arith.constant dense<0.000000e+00> : vector<24x8xf32>
    %49 = tpu.matmul %47, %48, %cst_31 {dimension_numbers = #tpu.dot_dimension_numbers<[1], [0], [0], [1], [0, 0, 1, 1], [], []>} : vector<24x16xf32>, vector<16x8xf32>, vector<24x8xf32> -> vector<24x8xf32>
    %c112 = arith.constant 112 : index
    %c0_32 = arith.constant 0 : index
    %50 = vector.load %arg2[%c112, %c0_32] : memref<480x128xf32, #tpu.memory_space<vmem>>, vector<1x8xf32>
    %51 = vector.broadcast %50 : vector<1x8xf32> to vector<24x8xf32>
    %52 = arith.addf %49, %51 : vector<24x8xf32>
    %cst_33 = arith.constant 0.000000e+00 : f32
    %53 = vector.broadcast %cst_33 : f32 to vector<24x8xf32>
    %54 = arith.maximumf %52, %53 : vector<24x8xf32>
    %c136 = arith.constant 136 : index
    %c0_34 = arith.constant 0 : index
    %55 = vector.load %arg2[%c136, %c0_34] : memref<480x128xf32, #tpu.memory_space<vmem>>, vector<8x32xf32>
    %cst_35 = arith.constant dense<0.000000e+00> : vector<24x32xf32>
    %56 = tpu.matmul %54, %55, %cst_35 {dimension_numbers = #tpu.dot_dimension_numbers<[1], [0], [0], [1], [0, 0, 1, 1], [], []>} : vector<24x8xf32>, vector<8x32xf32>, vector<24x32xf32> -> vector<24x32xf32>
    %cst_36 = arith.constant dense<0.000000e+00> : vector<16x128xf32>
    %57 = tpu.matmul %39, %4, %cst_36 {dimension_numbers = #tpu.dot_dimension_numbers<[1], [0], [0], [1], [0, 0, 1, 1], [], []>} : vector<16x16xf32>, vector<16x128xf32>, vector<16x128xf32> -> vector<16x128xf32>
    %cst_37 = arith.constant dense<0.000000e+00> : vector<24x128xf32>
    %58 = tpu.matmul %0, %57, %cst_37 {dimension_numbers = #tpu.dot_dimension_numbers<[1], [0], [0], [1], [0, 0, 1, 1], [], []>} : vector<24x16xf32>, vector<16x128xf32>, vector<24x128xf32> -> vector<24x128xf32>
    %cst_38 = arith.constant dense<0.000000e+00> : vector<24x128xf32>
    %59 = tpu.matmul %1, %57, %cst_38 {dimension_numbers = #tpu.dot_dimension_numbers<[1], [0], [0], [1], [0, 0, 1, 1], [], []>} : vector<24x16xf32>, vector<16x128xf32>, vector<24x128xf32> -> vector<24x128xf32>
    %60 = vector.extract_strided_slice %58 {offsets = [0, 0], sizes = [24, 32], strides = [1, 1]} : vector<24x128xf32> to vector<24x32xf32>
    %61 = vector.extract_strided_slice %59 {offsets = [0, 32], sizes = [24, 32], strides = [1, 1]} : vector<24x128xf32> to vector<24x32xf32>
    %62 = arith.addf %60, %61 : vector<24x32xf32>
    %63 = arith.addf %62, %56 : vector<24x32xf32>
    %cst_39 = arith.constant dense<0.000000e+00> : vector<24x32xf32>
    %64 = tpu.matmul %54, %5, %cst_39 {dimension_numbers = #tpu.dot_dimension_numbers<[1], [0], [0], [1], [0, 0, 1, 1], [], []>} : vector<24x8xf32>, vector<8x32xf32>, vector<24x32xf32> -> vector<24x32xf32>
    %65 = arith.addf %63, %64 : vector<24x32xf32>
    %66 = arith.addf %65, %12 : vector<24x32xf32>
    %cst_40 = arith.constant 0.000000e+00 : f32
    %67 = vector.broadcast %cst_40 : f32 to vector<24x32xf32>
    %68 = arith.maximumf %66, %67 : vector<24x32xf32>
    %cst_41 = arith.constant dense<0.000000e+00> : vector<24x8xf32>
    %69 = tpu.matmul %68, %6, %cst_41 {dimension_numbers = #tpu.dot_dimension_numbers<[1], [0], [0], [1], [0, 0, 1, 1], [], []>} : vector<24x32xf32>, vector<32x8xf32>, vector<24x8xf32> -> vector<24x8xf32>
    %70 = arith.addf %69, %15 : vector<24x8xf32>
    %cst_42 = arith.constant 0.000000e+00 : f32
    %71 = vector.broadcast %cst_42 : f32 to vector<24x8xf32>
    %72 = arith.maximumf %70, %71 : vector<24x8xf32>
    %73 = vector.extract_strided_slice %59 {offsets = [0, 64], sizes = [24, 64], strides = [1, 1]} : vector<24x128xf32> to vector<24x64xf32>
    %cst_43 = arith.constant dense<0.000000e+00> : vector<24x64xf32>
    %74 = tpu.matmul %72, %7, %cst_43 {dimension_numbers = #tpu.dot_dimension_numbers<[1], [0], [0], [1], [0, 0, 1, 1], [], []>} : vector<24x8xf32>, vector<8x64xf32>, vector<24x64xf32> -> vector<24x64xf32>
    %75 = arith.addf %73, %74 : vector<24x64xf32>
    %76 = arith.addf %75, %18 : vector<24x64xf32>
    %cst_44 = arith.constant 0.000000e+00 : f32
    %77 = vector.broadcast %cst_44 : f32 to vector<24x64xf32>
    %78 = arith.maximumf %76, %77 : vector<24x64xf32>
    %cst_45 = arith.constant dense<0.000000e+00> : vector<24x32xf32>
    %79 = tpu.matmul %78, %8, %cst_45 {dimension_numbers = #tpu.dot_dimension_numbers<[1], [0], [0], [1], [0, 0, 1, 1], [], []>} : vector<24x64xf32>, vector<64x32xf32>, vector<24x32xf32> -> vector<24x32xf32>
    %80 = arith.addf %79, %21 : vector<24x32xf32>
    %cst_46 = arith.constant 0.000000e+00 : f32
    %81 = vector.broadcast %cst_46 : f32 to vector<24x32xf32>
    %82 = arith.maximumf %80, %81 : vector<24x32xf32>
    %83 = arith.mulf %82, %3 : vector<24x32xf32>
    %cst_47 = arith.constant dense<0.000000e+00> : vector<16x32xf32>
    %84 = tpu.matmul %2, %83, %cst_47 {dimension_numbers = #tpu.dot_dimension_numbers<[1], [0], [0], [1], [0, 0, 1, 1], [], []>} : vector<16x24xf32>, vector<24x32xf32>, vector<16x32xf32> -> vector<16x32xf32>
    %cst_48 = arith.constant dense<0.000000e+00> : vector<16x16xf32>
    %85 = tpu.matmul %84, %9, %cst_48 {dimension_numbers = #tpu.dot_dimension_numbers<[1], [0], [0], [1], [0, 0, 1, 1], [], []>} : vector<16x32xf32>, vector<32x16xf32>, vector<16x16xf32> -> vector<16x16xf32>
    %86 = arith.addf %85, %24 : vector<16x16xf32>
    %cst_49 = arith.constant 0.000000e+00 : f32
    %87 = vector.broadcast %cst_49 : f32 to vector<16x16xf32>
    %88 = arith.maximumf %86, %87 : vector<16x16xf32>
    %cst_50 = arith.constant dense<0.000000e+00> : vector<16x128xf32>
    %89 = tpu.matmul %88, %4, %cst_50 {dimension_numbers = #tpu.dot_dimension_numbers<[1], [0], [0], [1], [0, 0, 1, 1], [], []>} : vector<16x16xf32>, vector<16x128xf32>, vector<16x128xf32> -> vector<16x128xf32>
    %cst_51 = arith.constant dense<0.000000e+00> : vector<24x128xf32>
    %90 = tpu.matmul %0, %89, %cst_51 {dimension_numbers = #tpu.dot_dimension_numbers<[1], [0], [0], [1], [0, 0, 1, 1], [], []>} : vector<24x16xf32>, vector<16x128xf32>, vector<24x128xf32> -> vector<24x128xf32>
    %cst_52 = arith.constant dense<0.000000e+00> : vector<24x128xf32>
    %91 = tpu.matmul %1, %89, %cst_52 {dimension_numbers = #tpu.dot_dimension_numbers<[1], [0], [0], [1], [0, 0, 1, 1], [], []>} : vector<24x16xf32>, vector<16x128xf32>, vector<24x128xf32> -> vector<24x128xf32>
    %92 = vector.extract_strided_slice %90 {offsets = [0, 0], sizes = [24, 32], strides = [1, 1]} : vector<24x128xf32> to vector<24x32xf32>
    %93 = vector.extract_strided_slice %91 {offsets = [0, 32], sizes = [24, 32], strides = [1, 1]} : vector<24x128xf32> to vector<24x32xf32>
    %94 = arith.addf %92, %93 : vector<24x32xf32>
    %95 = arith.addf %94, %56 : vector<24x32xf32>
    %cst_53 = arith.constant dense<0.000000e+00> : vector<24x32xf32>
    %96 = tpu.matmul %72, %5, %cst_53 {dimension_numbers = #tpu.dot_dimension_numbers<[1], [0], [0], [1], [0, 0, 1, 1], [], []>} : vector<24x8xf32>, vector<8x32xf32>, vector<24x32xf32> -> vector<24x32xf32>
    %97 = arith.addf %95, %96 : vector<24x32xf32>
    %98 = arith.addf %97, %12 : vector<24x32xf32>
    %cst_54 = arith.constant 0.000000e+00 : f32
    %99 = vector.broadcast %cst_54 : f32 to vector<24x32xf32>
    %100 = arith.maximumf %98, %99 : vector<24x32xf32>
    %cst_55 = arith.constant dense<0.000000e+00> : vector<24x8xf32>
    %101 = tpu.matmul %100, %6, %cst_55 {dimension_numbers = #tpu.dot_dimension_numbers<[1], [0], [0], [1], [0, 0, 1, 1], [], []>} : vector<24x32xf32>, vector<32x8xf32>, vector<24x8xf32> -> vector<24x8xf32>
    %102 = arith.addf %101, %15 : vector<24x8xf32>
    %cst_56 = arith.constant 0.000000e+00 : f32
    %103 = vector.broadcast %cst_56 : f32 to vector<24x8xf32>
    %104 = arith.maximumf %102, %103 : vector<24x8xf32>
    %105 = vector.extract_strided_slice %91 {offsets = [0, 64], sizes = [24, 64], strides = [1, 1]} : vector<24x128xf32> to vector<24x64xf32>
    %cst_57 = arith.constant dense<0.000000e+00> : vector<24x64xf32>
    %106 = tpu.matmul %104, %7, %cst_57 {dimension_numbers = #tpu.dot_dimension_numbers<[1], [0], [0], [1], [0, 0, 1, 1], [], []>} : vector<24x8xf32>, vector<8x64xf32>, vector<24x64xf32> -> vector<24x64xf32>
    %107 = arith.addf %105, %106 : vector<24x64xf32>
    %108 = arith.addf %107, %18 : vector<24x64xf32>
    %cst_58 = arith.constant 0.000000e+00 : f32
    %109 = vector.broadcast %cst_58 : f32 to vector<24x64xf32>
    %110 = arith.maximumf %108, %109 : vector<24x64xf32>
    %cst_59 = arith.constant dense<0.000000e+00> : vector<24x32xf32>
    %111 = tpu.matmul %110, %8, %cst_59 {dimension_numbers = #tpu.dot_dimension_numbers<[1], [0], [0], [1], [0, 0, 1, 1], [], []>} : vector<24x64xf32>, vector<64x32xf32>, vector<24x32xf32> -> vector<24x32xf32>
    %112 = arith.addf %111, %21 : vector<24x32xf32>
    %cst_60 = arith.constant 0.000000e+00 : f32
    %113 = vector.broadcast %cst_60 : f32 to vector<24x32xf32>
    %114 = arith.maximumf %112, %113 : vector<24x32xf32>
    %115 = arith.mulf %114, %3 : vector<24x32xf32>
    %cst_61 = arith.constant dense<0.000000e+00> : vector<16x32xf32>
    %116 = tpu.matmul %2, %115, %cst_61 {dimension_numbers = #tpu.dot_dimension_numbers<[1], [0], [0], [1], [0, 0, 1, 1], [], []>} : vector<16x24xf32>, vector<24x32xf32>, vector<16x32xf32> -> vector<16x32xf32>
    %cst_62 = arith.constant dense<0.000000e+00> : vector<16x16xf32>
    %117 = tpu.matmul %116, %9, %cst_62 {dimension_numbers = #tpu.dot_dimension_numbers<[1], [0], [0], [1], [0, 0, 1, 1], [], []>} : vector<16x32xf32>, vector<32x16xf32>, vector<16x16xf32> -> vector<16x16xf32>
    %118 = arith.addf %117, %24 : vector<16x16xf32>
    %cst_63 = arith.constant 0.000000e+00 : f32
    %119 = vector.broadcast %cst_63 : f32 to vector<16x16xf32>
    %120 = arith.maximumf %118, %119 : vector<16x16xf32>
    %cst_64 = arith.constant dense<0.000000e+00> : vector<16x128xf32>
    %121 = tpu.matmul %120, %4, %cst_64 {dimension_numbers = #tpu.dot_dimension_numbers<[1], [0], [0], [1], [0, 0, 1, 1], [], []>} : vector<16x16xf32>, vector<16x128xf32>, vector<16x128xf32> -> vector<16x128xf32>
    %cst_65 = arith.constant dense<0.000000e+00> : vector<24x128xf32>
    %122 = tpu.matmul %0, %121, %cst_65 {dimension_numbers = #tpu.dot_dimension_numbers<[1], [0], [0], [1], [0, 0, 1, 1], [], []>} : vector<24x16xf32>, vector<16x128xf32>, vector<24x128xf32> -> vector<24x128xf32>
    %cst_66 = arith.constant dense<0.000000e+00> : vector<24x128xf32>
    %123 = tpu.matmul %1, %121, %cst_66 {dimension_numbers = #tpu.dot_dimension_numbers<[1], [0], [0], [1], [0, 0, 1, 1], [], []>} : vector<24x16xf32>, vector<16x128xf32>, vector<24x128xf32> -> vector<24x128xf32>
    %124 = vector.extract_strided_slice %122 {offsets = [0, 0], sizes = [24, 32], strides = [1, 1]} : vector<24x128xf32> to vector<24x32xf32>
    %125 = vector.extract_strided_slice %123 {offsets = [0, 32], sizes = [24, 32], strides = [1, 1]} : vector<24x128xf32> to vector<24x32xf32>
    %126 = arith.addf %124, %125 : vector<24x32xf32>
    %127 = arith.addf %126, %56 : vector<24x32xf32>
    %cst_67 = arith.constant dense<0.000000e+00> : vector<24x32xf32>
    %128 = tpu.matmul %104, %5, %cst_67 {dimension_numbers = #tpu.dot_dimension_numbers<[1], [0], [0], [1], [0, 0, 1, 1], [], []>} : vector<24x8xf32>, vector<8x32xf32>, vector<24x32xf32> -> vector<24x32xf32>
    %129 = arith.addf %127, %128 : vector<24x32xf32>
    %130 = arith.addf %129, %12 : vector<24x32xf32>
    %cst_68 = arith.constant 0.000000e+00 : f32
    %131 = vector.broadcast %cst_68 : f32 to vector<24x32xf32>
    %132 = arith.maximumf %130, %131 : vector<24x32xf32>
    %cst_69 = arith.constant dense<0.000000e+00> : vector<24x8xf32>
    %133 = tpu.matmul %132, %6, %cst_69 {dimension_numbers = #tpu.dot_dimension_numbers<[1], [0], [0], [1], [0, 0, 1, 1], [], []>} : vector<24x32xf32>, vector<32x8xf32>, vector<24x8xf32> -> vector<24x8xf32>
    %134 = arith.addf %133, %15 : vector<24x8xf32>
    %cst_70 = arith.constant 0.000000e+00 : f32
    %135 = vector.broadcast %cst_70 : f32 to vector<24x8xf32>
    %136 = arith.maximumf %134, %135 : vector<24x8xf32>
    %137 = vector.extract_strided_slice %123 {offsets = [0, 64], sizes = [24, 64], strides = [1, 1]} : vector<24x128xf32> to vector<24x64xf32>
    %cst_71 = arith.constant dense<0.000000e+00> : vector<24x64xf32>
    %138 = tpu.matmul %136, %7, %cst_71 {dimension_numbers = #tpu.dot_dimension_numbers<[1], [0], [0], [1], [0, 0, 1, 1], [], []>} : vector<24x8xf32>, vector<8x64xf32>, vector<24x64xf32> -> vector<24x64xf32>
    %139 = arith.addf %137, %138 : vector<24x64xf32>
    %140 = arith.addf %139, %18 : vector<24x64xf32>
    %cst_72 = arith.constant 0.000000e+00 : f32
    %141 = vector.broadcast %cst_72 : f32 to vector<24x64xf32>
    %142 = arith.maximumf %140, %141 : vector<24x64xf32>
    %cst_73 = arith.constant dense<0.000000e+00> : vector<24x32xf32>
    %143 = tpu.matmul %142, %8, %cst_73 {dimension_numbers = #tpu.dot_dimension_numbers<[1], [0], [0], [1], [0, 0, 1, 1], [], []>} : vector<24x64xf32>, vector<64x32xf32>, vector<24x32xf32> -> vector<24x32xf32>
    %144 = arith.addf %143, %21 : vector<24x32xf32>
    %cst_74 = arith.constant 0.000000e+00 : f32
    %145 = vector.broadcast %cst_74 : f32 to vector<24x32xf32>
    %146 = arith.maximumf %144, %145 : vector<24x32xf32>
    %147 = arith.mulf %146, %3 : vector<24x32xf32>
    %cst_75 = arith.constant dense<0.000000e+00> : vector<16x32xf32>
    %148 = tpu.matmul %2, %147, %cst_75 {dimension_numbers = #tpu.dot_dimension_numbers<[1], [0], [0], [1], [0, 0, 1, 1], [], []>} : vector<16x24xf32>, vector<24x32xf32>, vector<16x32xf32> -> vector<16x32xf32>
    %cst_76 = arith.constant dense<0.000000e+00> : vector<16x16xf32>
    %149 = tpu.matmul %148, %9, %cst_76 {dimension_numbers = #tpu.dot_dimension_numbers<[1], [0], [0], [1], [0, 0, 1, 1], [], []>} : vector<16x32xf32>, vector<32x16xf32>, vector<16x16xf32> -> vector<16x16xf32>
    %150 = arith.addf %149, %24 : vector<16x16xf32>
    %cst_77 = arith.constant 0.000000e+00 : f32
    %151 = vector.broadcast %cst_77 : f32 to vector<16x16xf32>
    %152 = arith.maximumf %150, %151 : vector<16x16xf32>
    %cst_78 = arith.constant dense<0.000000e+00> : vector<16x128xf32>
    %153 = tpu.matmul %152, %4, %cst_78 {dimension_numbers = #tpu.dot_dimension_numbers<[1], [0], [0], [1], [0, 0, 1, 1], [], []>} : vector<16x16xf32>, vector<16x128xf32>, vector<16x128xf32> -> vector<16x128xf32>
    %cst_79 = arith.constant dense<0.000000e+00> : vector<24x128xf32>
    %154 = tpu.matmul %0, %153, %cst_79 {dimension_numbers = #tpu.dot_dimension_numbers<[1], [0], [0], [1], [0, 0, 1, 1], [], []>} : vector<24x16xf32>, vector<16x128xf32>, vector<24x128xf32> -> vector<24x128xf32>
    %cst_80 = arith.constant dense<0.000000e+00> : vector<24x128xf32>
    %155 = tpu.matmul %1, %153, %cst_80 {dimension_numbers = #tpu.dot_dimension_numbers<[1], [0], [0], [1], [0, 0, 1, 1], [], []>} : vector<24x16xf32>, vector<16x128xf32>, vector<24x128xf32> -> vector<24x128xf32>
    %156 = vector.extract_strided_slice %154 {offsets = [0, 0], sizes = [24, 32], strides = [1, 1]} : vector<24x128xf32> to vector<24x32xf32>
    %157 = vector.extract_strided_slice %155 {offsets = [0, 32], sizes = [24, 32], strides = [1, 1]} : vector<24x128xf32> to vector<24x32xf32>
    %158 = arith.addf %156, %157 : vector<24x32xf32>
    %159 = arith.addf %158, %56 : vector<24x32xf32>
    %cst_81 = arith.constant dense<0.000000e+00> : vector<24x32xf32>
    %160 = tpu.matmul %136, %5, %cst_81 {dimension_numbers = #tpu.dot_dimension_numbers<[1], [0], [0], [1], [0, 0, 1, 1], [], []>} : vector<24x8xf32>, vector<8x32xf32>, vector<24x32xf32> -> vector<24x32xf32>
    %161 = arith.addf %159, %160 : vector<24x32xf32>
    %162 = arith.addf %161, %12 : vector<24x32xf32>
    %cst_82 = arith.constant 0.000000e+00 : f32
    %163 = vector.broadcast %cst_82 : f32 to vector<24x32xf32>
    %164 = arith.maximumf %162, %163 : vector<24x32xf32>
    %cst_83 = arith.constant dense<0.000000e+00> : vector<24x8xf32>
    %165 = tpu.matmul %164, %6, %cst_83 {dimension_numbers = #tpu.dot_dimension_numbers<[1], [0], [0], [1], [0, 0, 1, 1], [], []>} : vector<24x32xf32>, vector<32x8xf32>, vector<24x8xf32> -> vector<24x8xf32>
    %166 = arith.addf %165, %15 : vector<24x8xf32>
    %cst_84 = arith.constant 0.000000e+00 : f32
    %167 = vector.broadcast %cst_84 : f32 to vector<24x8xf32>
    %168 = arith.maximumf %166, %167 : vector<24x8xf32>
    %169 = vector.extract_strided_slice %155 {offsets = [0, 64], sizes = [24, 64], strides = [1, 1]} : vector<24x128xf32> to vector<24x64xf32>
    %cst_85 = arith.constant dense<0.000000e+00> : vector<24x64xf32>
    %170 = tpu.matmul %168, %7, %cst_85 {dimension_numbers = #tpu.dot_dimension_numbers<[1], [0], [0], [1], [0, 0, 1, 1], [], []>} : vector<24x8xf32>, vector<8x64xf32>, vector<24x64xf32> -> vector<24x64xf32>
    %171 = arith.addf %169, %170 : vector<24x64xf32>
    %172 = arith.addf %171, %18 : vector<24x64xf32>
    %cst_86 = arith.constant 0.000000e+00 : f32
    %173 = vector.broadcast %cst_86 : f32 to vector<24x64xf32>
    %174 = arith.maximumf %172, %173 : vector<24x64xf32>
    %cst_87 = arith.constant dense<0.000000e+00> : vector<24x32xf32>
    %175 = tpu.matmul %174, %8, %cst_87 {dimension_numbers = #tpu.dot_dimension_numbers<[1], [0], [0], [1], [0, 0, 1, 1], [], []>} : vector<24x64xf32>, vector<64x32xf32>, vector<24x32xf32> -> vector<24x32xf32>
    %176 = arith.addf %175, %21 : vector<24x32xf32>
    %cst_88 = arith.constant 0.000000e+00 : f32
    %177 = vector.broadcast %cst_88 : f32 to vector<24x32xf32>
    %178 = arith.maximumf %176, %177 : vector<24x32xf32>
    %179 = arith.mulf %178, %3 : vector<24x32xf32>
    %cst_89 = arith.constant dense<0.000000e+00> : vector<16x32xf32>
    %180 = tpu.matmul %2, %179, %cst_89 {dimension_numbers = #tpu.dot_dimension_numbers<[1], [0], [0], [1], [0, 0, 1, 1], [], []>} : vector<16x24xf32>, vector<24x32xf32>, vector<16x32xf32> -> vector<16x32xf32>
    %cst_90 = arith.constant dense<0.000000e+00> : vector<16x16xf32>
    %181 = tpu.matmul %180, %9, %cst_90 {dimension_numbers = #tpu.dot_dimension_numbers<[1], [0], [0], [1], [0, 0, 1, 1], [], []>} : vector<16x32xf32>, vector<32x16xf32>, vector<16x16xf32> -> vector<16x16xf32>
    %182 = arith.addf %181, %24 : vector<16x16xf32>
    %cst_91 = arith.constant 0.000000e+00 : f32
    %183 = vector.broadcast %cst_91 : f32 to vector<16x16xf32>
    %184 = arith.maximumf %182, %183 : vector<16x16xf32>
    %185 = tpu.concatenate %104, %136, %168 in 1 : vector<24x8xf32>, vector<24x8xf32>, vector<24x8xf32> -> vector<24x24xf32>
    %c328 = arith.constant 328 : index
    %c0_92 = arith.constant 0 : index
    %186 = vector.load %arg2[%c328, %c0_92] : memref<480x128xf32, #tpu.memory_space<vmem>>, vector<24x24xf32>
    %cst_93 = arith.constant dense<0.000000e+00> : vector<24x24xf32>
    %187 = tpu.matmul %185, %186, %cst_93 {dimension_numbers = #tpu.dot_dimension_numbers<[1], [0], [0], [1], [0, 0, 1, 1], [], []>} : vector<24x24xf32>, vector<24x24xf32>, vector<24x24xf32> -> vector<24x24xf32>
    %c352 = arith.constant 352 : index
    %c0_94 = arith.constant 0 : index
    %188 = vector.load %arg2[%c352, %c0_94] : memref<480x128xf32, #tpu.memory_space<vmem>>, vector<1x24xf32>
    %189 = vector.broadcast %188 : vector<1x24xf32> to vector<24x24xf32>
    %190 = arith.addf %187, %189 : vector<24x24xf32>
    %cst_95 = arith.constant 0.000000e+00 : f32
    %191 = vector.broadcast %cst_95 : f32 to vector<24x24xf32>
    %192 = arith.maximumf %190, %191 : vector<24x24xf32>
    %c360 = arith.constant 360 : index
    %c0_96 = arith.constant 0 : index
    %193 = vector.load %arg2[%c360, %c0_96] : memref<480x128xf32, #tpu.memory_space<vmem>>, vector<24x3xf32>
    %cst_97 = arith.constant dense<0.000000e+00> : vector<24x3xf32>
    %194 = tpu.matmul %192, %193, %cst_97 {dimension_numbers = #tpu.dot_dimension_numbers<[1], [0], [0], [1], [0, 0, 1, 1], [], []>} : vector<24x24xf32>, vector<24x3xf32>, vector<24x3xf32> -> vector<24x3xf32>
    %c384 = arith.constant 384 : index
    %c0_98 = arith.constant 0 : index
    %195 = vector.load %arg2[%c384, %c0_98] : memref<480x128xf32, #tpu.memory_space<vmem>>, vector<1x3xf32>
    %196 = vector.broadcast %195 : vector<1x3xf32> to vector<24x3xf32>
    %197 = arith.addf %194, %196 : vector<24x3xf32>
    %198 = tpu.concatenate %39, %120, %152, %184 in 1 : vector<16x16xf32>, vector<16x16xf32>, vector<16x16xf32>, vector<16x16xf32> -> vector<16x64xf32>
    %c0_99 = arith.constant 0 : index
    %c0_100 = arith.constant 0 : index
    %199 = vector.load %arg3[%c0_99, %c0_100] : memref<16x64xf32, #tpu.memory_space<vmem>>, vector<16x64xf32>
    tpu.vector_store %arg3[%c0_99, %c0_100], %198 {strides = array<i32>} : memref<16x64xf32, #tpu.memory_space<vmem>>, vector<16x64xf32>,
    %c0_101 = arith.constant 0 : index
    %c0_102 = arith.constant 0 : index
    %200 = vector.load %arg4[%c0_101, %c0_102] : memref<24x3xf32, #tpu.memory_space<vmem>>, vector<24x3xf32>
    tpu.vector_store %arg4[%c0_101, %c0_102], %197 {strides = array<i32>} : memref<24x3xf32, #tpu.memory_space<vmem>>, vector<24x3xf32>,
    return
  }
}

</mosaic_0001>

<llo_original>
// kernel: tpu_custom_call.1
$region0: #{tpu_custom_call.1}
  #allocation0 [shape = 'u32[]', space=smem, size = 0x4, offset = 0x4, fixed_abs, tag = 'smem constant byte address 0x4 - core index']
  #allocation1 [shape = 'u32[144,128]{1,0:T(1,128)}', space=vmem, size = 0x12000, scoped, tag = 'internal scratch']
  %s0 = inlined_call_operand.vmem [shape: f32[16,32], index: 0, kind: input, shape index: {}]
  %s1 = inlined_call_operand.vmem [shape: f32[24,6], index: 1, kind: input, shape index: {}]
  %s2 = inlined_call_operand.hbm [shape: f32[480,128], index: 2, kind: input, shape index: {}]
  %s3 = inlined_call_operand.hbm [shape: f32[16,64], index: 3, kind: output, shape index: {0}]
  %s4 = inlined_call_operand.vmem [shape: f32[24,3], index: 4, kind: output, shape index: {1}]
  %5 = xla_tuple %s3, %s4
  %s6 = sld [smem:[#allocation0]]
  $region34: #{tpu_custom_call.1} parent=0
    _
  %s8 = ssub.s32 1, %s6
  %s9 = scalar_select 0, %s8, %s6
  $region1: #{tpu_custom_call.1} parent=0
    #allocation2 [shape = 'u8[245760]{0}', space=vmem, size = 0x3c000, scoped, tag = 'input window, operand 2, single buffered']
    #allocation3 [shape = 's32[1]{0}', space=sflag, size = 0x4, scoped, tag = 'scoped memory for tpu_custom_call.1']
    #allocation4 [shape = 's32[1]{0}', space=sflag, size = 0x4, scoped, tag = 'scoped memory for tpu_custom_call.1']
    #allocation5 [shape = 'u8[8192]{0}', space=vmem, size = 0x2000, scoped, tag = 'output window, operand 0, single buffered']
    %10 = vsyncpa [#allocation3], 0
    %11 = vsyncpa [#allocation4], 0
    // Predicated region
    $region2: #{tpu_custom_call.1} parent=1 // pred_check
      _
    $region3: #{tpu_custom_call.1} parent=1 // pred_check_branch
      %13 = sbr.rel (0) target = $region5
    $region4: #{tpu_custom_call.1} parent=1 // pred_region
      _
    $region5: #{tpu_custom_call.1} parent=1 // pred_fallthru
      _
    // Predicated region
    $region6: #{tpu_custom_call.1} parent=1 // pred_check
      _
    $region7: #{tpu_custom_call.1} parent=1 // pred_check_branch
      %15 = sbr.rel (0) target = $region9
    $region8: #{tpu_custom_call.1} parent=1 // pred_region
      _
    $region9: #{tpu_custom_call.1} parent=1 // pred_fallthru
      _
    // Predicated region
    $region10: #{tpu_custom_call.1} parent=1 // pred_check
      _
    $region11: #{tpu_custom_call.1} parent=1 // pred_check_branch
      %17 = sbr.rel (0) target = $region13
    $region12: #{tpu_custom_call.1} parent=1 // pred_region
      %s19 = ssub.s32 7680, 7680
      %20 = vsyncadd [#allocation3], %s19
      %s21 = sshll.u32 [#allocation2], 4
      %s22 = int_to_ptr.vmem [resolvable:$true] %s21
      %27 = dma.hbm_to_vmem [thread:$0]  %s2, 7680, %s22, [#allocation3], 128, 128, 8
    $region13: #{tpu_custom_call.1} parent=1 // pred_fallthru
      _
    // Predicated region
    $region14: #{tpu_custom_call.1} parent=1 // pred_check
      _
    $region15: #{tpu_custom_call.1} parent=1 // pred_check_branch
      %29 = sbr.rel (0) target = $region17
    $region16: #{tpu_custom_call.1} parent=1 // pred_region
      %30 = dma.done [#allocation3], 7680
    $region17: #{tpu_custom_call.1} parent=1 // pred_fallthru
      _
    %v31 = vld [vmem:[#allocation2 + $0x188] sm:$0xff]
    %v32 = vld [vmem:[#allocation2 + $0x190] sm:$0xff]
    %v33 = vld [vmem:[#allocation2 + $0x198] sm:$0xff]
    %v34 = vld [vmem:[#allocation2 + $0x1a0] sm:$0xff]
    %v35 = vld [vmem:[#allocation2 + $0x1a8] sm:$0xff]
    %v36 = vld [vmem:[#allocation2 + $0x1b0] sm:$0xff]
    %v37 = vld [vmem:[#allocation2 + $0x1b8] sm:$0xff]
    %v38 = vld [vmem:[#allocation2 + $0x1c0] sm:$0xff]
    %v39 = vld [vmem:[#allocation2 + $0x1c8] sm:$0xff]
    %v40 = vld [vmem:[#allocation2 + $0x1d0] sm:$0xff]
    %v41 = vld [vmem:[#allocation2 + $0x1d8] sm:$0xff]
    %v42 = vld [vmem:[#allocation2 + $0x78] sm:$0xff]
    %v43 = vld [vmem:[#allocation2 + $0x80] sm:$0xff]
    %v44 = vld [vmem:[#allocation2 + $0x90] sm:$0xff]
    %v45 = vld [vmem:[#allocation2 + $0xa0] sm:$0xff]
    %v46 = vld [vmem:[#allocation2 + $0xa8] sm:$0xff]
    %v47 = vld [vmem:[#allocation2 + $0xb0] sm:$0xff]
    %v48 = vld [vmem:[#allocation2 + $0xb8] sm:$0xff]
    %v49 = vld [vmem:[#allocation2 + $0xc8] sm:$0xff]
    %v50 = vld [vmem:[#allocation2 + $0xd8] sm:$0xff]
    %v51 = vld [vmem:[#allocation2 + $0xe0] sm:$0xff]
    %v52 = vld [vmem:[#allocation2 + $0xe8] sm:$0xff]
    %v53 = vld [vmem:[#allocation2 + $0xf0] sm:$0xff]
    %v54 = vld [vmem:[#allocation2 + $0xf8] sm:$0xff]
    %v55 = vld [vmem:[#allocation2 + $0x100] sm:$0xff]
    %v56 = vld [vmem:[#allocation2 + $0x108] sm:$0xff]
    %v57 = vld [vmem:[#allocation2 + $0x110] sm:$0xff]
    %v58 = vld [vmem:[#allocation2 + $0x120] sm:$0xff]
    %v59 = vld [vmem:[#allocation2 + $0x128] sm:$0xff]
    %v60 = vld [vmem:[#allocation2 + $0x130] sm:$0xff]
    %v61 = vld [vmem:[#allocation2 + $0x138] sm:$0xff]
    %v62 = vld [vmem:[#allocation2 + $0x98] sm:$0x1]
    %v63 = vlaneseq
    %v64 = vshrl.u32 %v63, 7
    %v65 = vsub.s32 0, %v64
    %v66 = vrot.slane %v62, %v65
    %v67 = vld [vmem:[#allocation2 + $0xc0] sm:$0x1]
    %v68 = vlaneseq
    %v69 = vshrl.u32 %v68, 7
    %v70 = vsub.s32 0, %v69
    %v71 = vrot.slane %v67, %v70
    %v72 = vld [vmem:[#allocation2 + $0xd0] sm:$0x1]
    %v73 = vlaneseq
    %v74 = vshrl.u32 %v73, 7
    %v75 = vsub.s32 0, %v74
    %v76 = vrot.slane %v72, %v75
    %v77 = vld [vmem:[#allocation2 + $0x118] sm:$0x1]
    %v78 = vlaneseq
    %v79 = vshrl.u32 %v78, 7
    %v80 = vsub.s32 0, %v79
    %v81 = vrot.slane %v77, %v80
    %v82 = vld [vmem:[#allocation2 + $0x140] sm:$0x1]
    %v83 = vlaneseq
    %v84 = vshrl.u32 %v83, 7
    %v85 = vsub.s32 0, %v84
    %v86 = vrot.slane %v82, %v85
    %v87 = vld [vmem:[%s0] sm:$0xff]
    %v88 = vld [vmem:[%s0 + $0x8] sm:$0xff]
    %v89 = vld [vmem:[#allocation2] sm:$0xff]
    %v90 = vld [vmem:[#allocation2 + $0x8] sm:$0xff]
    %v91 = vld [vmem:[#allocation2 + $0x10] sm:$0xff]
    %v92 = vld [vmem:[#allocation2 + $0x18] sm:$0xff]
    %v93 = vld [vmem:[#allocation2 + $0x20] sm:$0x1]
    %v94 = vlaneseq
    %v95 = vshrl.u32 %v94, 7
    %v96 = vsub.s32 0, %v95
    %v97 = vrot.slane %v93, %v96
    %vm98 = vcmask 261120
    %v100 = vsel %vm98, %v87, 0
    %v103 = vsel %vm98, %v88, 0
    %105 = vmatprep.subr.mxu0 0.0
    %106 = vmatpush1.msra.mxu0 0.0
    %107 = vmatprep.subr.mxu0 0.0
    %108 = vmatpush1.msra.mxu0 0.0
    %109 = vmatprep.subr.mxu0 0.0
    %110 = vmatpush1.msra.mxu0 0.0
    %111 = vmatprep.subr.mxu0 0.0
    %112 = vmatpush1.msra.mxu0 0.0
    %113 = vmatprep.subr.mxu0 0.0
    %114 = vmatpush1.msra.mxu0 0.0
    %115 = vmatprep.subr.mxu0 0.0
    %116 = vmatpush1.msra.mxu0 0.0
    %117 = vmatprep.subr.mxu0 0.0
    %118 = vmatpush1.msra.mxu0 0.0
    %119 = vmatprep.subr.mxu0 0.0
    %120 = vmatpush1.msra.mxu0 0.0
    %121 = vmatprep.subr.mxu0 0.0
    %122 = vmatpush1.msra.mxu0 0.0
    %123 = vmatprep.subr.mxu0 0.0
    %124 = vmatpush1.msra.mxu0 0.0
    %125 = vmatprep.subr.mxu0 0.0
    %126 = vmatpush1.msra.mxu0 0.0
    %127 = vmatprep.subr.mxu0 0.0
    %128 = vmatpush1.msra.mxu0 0.0
    %129 = vmatprep.subr.mxu0 0.0
    %130 = vmatpush1.msra.mxu0 %v92
    %131 = vmatprep.subr.mxu0 0.0
    %132 = vmatpush1.msra.mxu0 %v91
    %133 = vmatprep.subr.mxu0 0.0
    %134 = vmatpush1.msra.mxu0 %v90
    %135 = vmatprep.subr.mxu0 0.0
    %136 = vmatpush1.msra.mxu0 %v89
    %137 = vmatprep.subr.mxu0 0.0
    %138 = vmatpush2.msra.mxu0 0.0
    %139 = vmatprep.subr.mxu0 0.0
    %140 = vmatpush2.msra.mxu0 0.0
    %141 = vmatprep.subr.mxu0 0.0
    %142 = vmatpush2.msra.mxu0 0.0
    %143 = vmatprep.subr.mxu0 0.0
    %144 = vmatpush2.msra.mxu0 0.0
    %145 = vmatprep.subr.mxu0 0.0
    %146 = vmatpush2.msra.mxu0 0.0
    %147 = vmatprep.subr.mxu0 0.0
    %148 = vmatpush2.msra.mxu0 0.0
    %149 = vmatprep.subr.mxu0 0.0
    %150 = vmatpush2.msra.mxu0 0.0
    %151 = vmatprep.subr.mxu0 0.0
    %152 = vmatpush2.msra.mxu0 0.0
    %153 = vmatprep.subr.mxu0 0.0
    %154 = vmatpush2.msra.mxu0 0.0
    %155 = vmatprep.subr.mxu0 0.0
    %156 = vmatpush2.msra.mxu0 0.0
    %157 = vmatprep.subr.mxu0 0.0
    %158 = vmatpush2.msra.mxu0 0.0
    %159 = vmatprep.subr.mxu0 0.0
    %160 = vmatpush2.msra.mxu0 0.0
    %161 = vmatprep.subr.mxu0 0.0
    %162 = vmatpush2.msra.mxu0 0.0
    %163 = vmatprep.subr.mxu0 0.0
    %164 = vmatpush2.msra.mxu0 0.0
    %165 = vmatprep.subr.mxu0 0.0
    %166 = vmatpush2.msra.mxu0 0.0
    %167 = vmatprep.subr.mxu0 0.0
    %168 = vmatpush2.msra.mxu0 0.0
    %169 = vmatprep.mubr.f32.mxu0 0.0
    %170 = vmatmul.mubr.f32.gmra.mxu0 %v100
    %v171 = vpop.f32.mrf.mxu0
    %v172 = vadd.f32 %v97, %v171
    %v173 = vpop.f32.mrf.mxu0
    %174 = vmatprep.mubr.f32.mxu0 0.0
    %175 = vmatmul.mubr.f32.gmra.mxu0 %v103
    %v176 = vpop.f32.mrf.mxu0
    %v177 = vadd.f32 %v97, %v176
    %v178 = vpop.f32.mrf.mxu0
    %179 = vdwg.mxu0
    %v180 = vmax.f32 %v172, 0.0
    %v181 = vmax.f32 %v177, 0.0
    %v182 = vld [vmem:[#allocation2 + $0x28] sm:$0xff]
    %v183 = vld [vmem:[#allocation2 + $0x30] sm:$0xff]
    %v184 = vld [vmem:[#allocation2 + $0x38] sm:$0xff]
    %v185 = vld [vmem:[#allocation2 + $0x40] sm:$0xff]
    %v186 = vld [vmem:[#allocation2 + $0x48] sm:$0x1]
    %v187 = vlaneseq
    %v188 = vshrl.u32 %v187, 7
    %v189 = vsub.s32 0, %v188
    %v190 = vrot.slane %v186, %v189
    %v192 = vsel %vm98, %v180, 0
    %v195 = vsel %vm98, %v181, 0
    %197 = vmatprep.subr.mxu0 0.0
    %198 = vmatpush1.msra.mxu0 0.0
    %199 = vmatprep.subr.mxu0 0.0
    %200 = vmatpush1.msra.mxu0 0.0
    %201 = vmatprep.subr.mxu0 0.0
    %202 = vmatpush1.msra.mxu0 0.0
    %203 = vmatprep.subr.mxu0 0.0
    %204 = vmatpush1.msra.mxu0 0.0
    %205 = vmatprep.subr.mxu0 0.0
    %206 = vmatpush1.msra.mxu0 0.0
    %207 = vmatprep.subr.mxu0 0.0
    %208 = vmatpush1.msra.mxu0 0.0
    %209 = vmatprep.subr.mxu0 0.0
    %210 = vmatpush1.msra.mxu0 0.0
    %211 = vmatprep.subr.mxu0 0.0
    %212 = vmatpush1.msra.mxu0 0.0
    %213 = vmatprep.subr.mxu0 0.0
    %214 = vmatpush1.msra.mxu0 0.0
    %215 = vmatprep.subr.mxu0 0.0
    %216 = vmatpush1.msra.mxu0 0.0
    %217 = vmatprep.subr.mxu0 0.0
    %218 = vmatpush1.msra.mxu0 0.0
    %219 = vmatprep.subr.mxu0 0.0
    %220 = vmatpush1.msra.mxu0 0.0
    %221 = vmatprep.subr.mxu0 0.0
    %222 = vmatpush1.msra.mxu0 %v185
    %223 = vmatprep.subr.mxu0 0.0
    %224 = vmatpush1.msra.mxu0 %v184
    %225 = vmatprep.subr.mxu0 0.0
    %226 = vmatpush1.msra.mxu0 %v183
    %227 = vmatprep.subr.mxu0 0.0
    %228 = vmatpush1.msra.mxu0 %v182
    %229 = vmatprep.subr.mxu0 0.0
    %230 = vmatpush2.msra.mxu0 0.0
    %231 = vmatprep.subr.mxu0 0.0
    %232 = vmatpush2.msra.mxu0 0.0
    %233 = vmatprep.subr.mxu0 0.0
    %234 = vmatpush2.msra.mxu0 0.0
    %235 = vmatprep.subr.mxu0 0.0
    %236 = vmatpush2.msra.mxu0 0.0
    %237 = vmatprep.subr.mxu0 0.0
    %238 = vmatpush2.msra.mxu0 0.0
    %239 = vmatprep.subr.mxu0 0.0
    %240 = vmatpush2.msra.mxu0 0.0
    %241 = vmatprep.subr.mxu0 0.0
    %242 = vmatpush2.msra.mxu0 0.0
    %243 = vmatprep.subr.mxu0 0.0
    %244 = vmatpush2.msra.mxu0 0.0
    %245 = vmatprep.subr.mxu0 0.0
    %246 = vmatpush2.msra.mxu0 0.0
    %247 = vmatprep.subr.mxu0 0.0
    %248 = vmatpush2.msra.mxu0 0.0
    %249 = vmatprep.subr.mxu0 0.0
    %250 = vmatpush2.msra.mxu0 0.0
    %251 = vmatprep.subr.mxu0 0.0
    %252 = vmatpush2.msra.mxu0 0.0
    %253 = vmatprep.subr.mxu0 0.0
    %254 = vmatpush2.msra.mxu0 0.0
    %255 = vmatprep.subr.mxu0 0.0
    %256 = vmatpush2.msra.mxu0 0.0
    %257 = vmatprep.subr.mxu0 0.0
    %258 = vmatpush2.msra.mxu0 0.0
    %259 = vmatprep.subr.mxu0 0.0
    %260 = vmatpush2.msra.mxu0 0.0
    %261 = vmatprep.mubr.f32.mxu0 0.0
    %262 = vmatmul.mubr.f32.gmra.mxu0 %v192
    %v263 = vpop.f32.mrf.mxu0
    %v264 = vadd.f32 %v190, %v263
    %v265 = vpop.f32.mrf.mxu0
    %266 = vmatprep.mubr.f32.mxu0 0.0
    %267 = vmatmul.mubr.f32.gmra.mxu0 %v195
    %v268 = vpop.f32.mrf.mxu0
    %v269 = vadd.f32 %v190, %v268
    %v270 = vpop.f32.mrf.mxu0
    %271 = vdwg.mxu0
    %v272 = vmax.f32 %v264, 0.0
    %v273 = vmax.f32 %v269, 0.0
    %v274 = vld [vmem:[%s1] sm:$0xff]
    %v275 = vld [vmem:[%s1 + $0x8] sm:$0xff]
    %v276 = vld [vmem:[%s1 + $0x10] sm:$0xff]
    %v277 = vld [vmem:[#allocation2 + $0x50] sm:$0x3f]
    %v278 = vld [vmem:[#allocation2 + $0x58] sm:$0x1]
    %v279 = vlaneseq
    %v280 = vshrl.u32 %v279, 7
    %v281 = vsub.s32 0, %v280
    %v282 = vrot.slane %v278, %v281
    %vm283 = vcmask 48128
    %v285 = vsel %vm283, %v274, 0
    %v288 = vsel %vm283, %v275, 0
    %v291 = vsel %vm283, %v276, 0
    %vm293 = vcmask 1045504
    %v295 = vsel %vm293, %v277, 0
    %297 = vmatprep.subr.mxu0 0.0
    %298 = vmatpush1.msra.mxu0 0.0
    %299 = vmatprep.subr.mxu0 0.0
    %300 = vmatpush1.msra.mxu0 0.0
    %301 = vmatprep.subr.mxu0 0.0
    %302 = vmatpush1.msra.mxu0 0.0
    %303 = vmatprep.subr.mxu0 0.0
    %304 = vmatpush1.msra.mxu0 0.0
    %305 = vmatprep.subr.mxu0 0.0
    %306 = vmatpush1.msra.mxu0 0.0
    %307 = vmatprep.subr.mxu0 0.0
    %308 = vmatpush1.msra.mxu0 0.0
    %309 = vmatprep.subr.mxu0 0.0
    %310 = vmatpush1.msra.mxu0 0.0
    %311 = vmatprep.subr.mxu0 0.0
    %312 = vmatpush1.msra.mxu0 0.0
    %313 = vmatprep.subr.mxu0 0.0
    %314 = vmatpush1.msra.mxu0 0.0
    %315 = vmatprep.subr.mxu0 0.0
    %316 = vmatpush1.msra.mxu0 0.0
    %317 = vmatprep.subr.mxu0 0.0
    %318 = vmatpush1.msra.mxu0 0.0
    %319 = vmatprep.subr.mxu0 0.0
    %320 = vmatpush1.msra.mxu0 0.0
    %321 = vmatprep.subr.mxu0 0.0
    %322 = vmatpush1.msra.mxu0 0.0
    %323 = vmatprep.subr.mxu0 0.0
    %324 = vmatpush1.msra.mxu0 0.0
    %325 = vmatprep.subr.mxu0 0.0
    %326 = vmatpush1.msra.mxu0 0.0
    %327 = vmatprep.subr.mxu0 0.0
    %328 = vmatpush1.msra.mxu0 %v295
    %329 = vmatprep.subr.mxu0 0.0
    %330 = vmatpush2.msra.mxu0 0.0
    %331 = vmatprep.subr.mxu0 0.0
    %332 = vmatpush2.msra.mxu0 0.0
    %333 = vmatprep.subr.mxu0 0.0
    %334 = vmatpush2.msra.mxu0 0.0
    %335 = vmatprep.subr.mxu0 0.0
    %336 = vmatpush2.msra.mxu0 0.0
    %337 = vmatprep.subr.mxu0 0.0
    %338 = vmatpush2.msra.mxu0 0.0
    %339 = vmatprep.subr.mxu0 0.0
    %340 = vmatpush2.msra.mxu0 0.0
    %341 = vmatprep.subr.mxu0 0.0
    %342 = vmatpush2.msra.mxu0 0.0
    %343 = vmatprep.subr.mxu0 0.0
    %344 = vmatpush2.msra.mxu0 0.0
    %345 = vmatprep.subr.mxu0 0.0
    %346 = vmatpush2.msra.mxu0 0.0
    %347 = vmatprep.subr.mxu0 0.0
    %348 = vmatpush2.msra.mxu0 0.0
    %349 = vmatprep.subr.mxu0 0.0
    %350 = vmatpush2.msra.mxu0 0.0
    %351 = vmatprep.subr.mxu0 0.0
    %352 = vmatpush2.msra.mxu0 0.0
    %353 = vmatprep.subr.mxu0 0.0
    %354 = vmatpush2.msra.mxu0 0.0
    %355 = vmatprep.subr.mxu0 0.0
    %356 = vmatpush2.msra.mxu0 0.0
    %357 = vmatprep.subr.mxu0 0.0
    %358 = vmatpush2.msra.mxu0 0.0
    %359 = vmatprep.subr.mxu0 0.0
    %360 = vmatpush2.msra.mxu0 0.0
    %361 = vmatprep.mubr.f32.mxu0 0.0
    %362 = vmatmul.mubr.f32.gmra.mxu0 %v285
    %v363 = vpop.f32.mrf.mxu0
    %v364 = vadd.f32 %v282, %v363
    %v365 = vpop.f32.mrf.mxu0
    %366 = vmatprep.mubr.f32.mxu0 0.0
    %367 = vmatmul.mubr.f32.gmra.mxu0 %v288
    %v368 = vpop.f32.mrf.mxu0
    %v369 = vadd.f32 %v282, %v368
    %v370 = vpop.f32.mrf.mxu0
    %371 = vmatprep.mubr.f32.mxu0 0.0
    %372 = vmatmul.mubr.f32.gmra.mxu0 %v291
    %v373 = vpop.f32.mrf.mxu0
    %v374 = vadd.f32 %v282, %v373
    %v375 = vpop.f32.mrf.mxu0
    %376 = vdwg.mxu0
    %v377 = vmax.f32 %v364, 0.0
    %v378 = vmax.f32 %v369, 0.0
    %v379 = vmax.f32 %v374, 0.0
    %v380 = vld [vmem:[#allocation2 + $0x60] sm:$0xff]
    %v381 = vld [vmem:[#allocation2 + $0x68] sm:$0xff]
    %v382 = vld [vmem:[#allocation2 + $0x70] sm:$0x1]
    %v383 = vlaneseq
    %v384 = vshrl.u32 %v383, 7
    %v385 = vsub.s32 0, %v384
    %v386 = vrot.slane %v382, %v385
    %vm387 = vcmask 130048
    %v389 = vsel %vm387, %v377, 0
    %v392 = vsel %vm387, %v378, 0
    %v395 = vsel %vm387, %v379, 0
    %397 = vmatprep.subr.mxu0 0.0
    %398 = vmatpush1.msra.mxu0 0.0
    %399 = vmatprep.subr.mxu0 0.0
    %400 = vmatpush1.msra.mxu0 0.0
    %401 = vmatprep.subr.mxu0 0.0
    %402 = vmatpush1.msra.mxu0 0.0
    %403 = vmatprep.subr.mxu0 0.0
    %404 = vmatpush1.msra.mxu0 0.0
    %405 = vmatprep.subr.mxu0 0.0
    %406 = vmatpush1.msra.mxu0 0.0
    %407 = vmatprep.subr.mxu0 0.0
    %408 = vmatpush1.msra.mxu0 0.0
    %409 = vmatprep.subr.mxu0 0.0
    %410 = vmatpush1.msra.mxu0 0.0
    %411 = vmatprep.subr.mxu0 0.0
    %412 = vmatpush1.msra.mxu0 0.0
    %413 = vmatprep.subr.mxu0 0.0
    %414 = vmatpush1.msra.mxu0 0.0
    %415 = vmatprep.subr.mxu0 0.0
    %416 = vmatpush1.msra.mxu0 0.0
    %417 = vmatprep.subr.mxu0 0.0
    %418 = vmatpush1.msra.mxu0 0.0
    %419 = vmatprep.subr.mxu0 0.0
    %420 = vmatpush1.msra.mxu0 0.0
    %421 = vmatprep.subr.mxu0 0.0
    %422 = vmatpush1.msra.mxu0 0.0
    %423 = vmatprep.subr.mxu0 0.0
    %424 = vmatpush1.msra.mxu0 0.0
    %425 = vmatprep.subr.mxu0 0.0
    %426 = vmatpush1.msra.mxu0 %v381
    %427 = vmatprep.subr.mxu0 0.0
    %428 = vmatpush1.msra.mxu0 %v380
    %429 = vmatprep.subr.mxu0 0.0
    %430 = vmatpush2.msra.mxu0 0.0
    %431 = vmatprep.subr.mxu0 0.0
    %432 = vmatpush2.msra.mxu0 0.0
    %433 = vmatprep.subr.mxu0 0.0
    %434 = vmatpush2.msra.mxu0 0.0
    %435 = vmatprep.subr.mxu0 0.0
    %436 = vmatpush2.msra.mxu0 0.0
    %437 = vmatprep.subr.mxu0 0.0
    %438 = vmatpush2.msra.mxu0 0.0
    %439 = vmatprep.subr.mxu0 0.0
    %440 = vmatpush2.msra.mxu0 0.0
    %441 = vmatprep.subr.mxu0 0.0
    %442 = vmatpush2.msra.mxu0 0.0
    %443 = vmatprep.subr.mxu0 0.0
    %444 = vmatpush2.msra.mxu0 0.0
    %445 = vmatprep.subr.mxu0 0.0
    %446 = vmatpush2.msra.mxu0 0.0
    %447 = vmatprep.subr.mxu0 0.0
    %448 = vmatpush2.msra.mxu0 0.0
    %449 = vmatprep.subr.mxu0 0.0
    %450 = vmatpush2.msra.mxu0 0.0
    %451 = vmatprep.subr.mxu0 0.0
    %452 = vmatpush2.msra.mxu0 0.0
    %453 = vmatprep.subr.mxu0 0.0
    %454 = vmatpush2.msra.mxu0 0.0
    %455 = vmatprep.subr.mxu0 0.0
    %456 = vmatpush2.msra.mxu0 0.0
    %457 = vmatprep.subr.mxu0 0.0
    %458 = vmatpush2.msra.mxu0 0.0
    %459 = vmatprep.subr.mxu0 0.0
    %460 = vmatpush2.msra.mxu0 0.0
    %461 = vmatprep.mubr.f32.mxu0 0.0
    %462 = vmatmul.mubr.f32.gmra.mxu0 %v389
    %v463 = vpop.f32.mrf.mxu0
    %v464 = vadd.f32 %v386, %v463
    %v465 = vpop.f32.mrf.mxu0
    %466 = vmatprep.mubr.f32.mxu0 0.0
    %467 = vmatmul.mubr.f32.gmra.mxu0 %v392
    %v468 = vpop.f32.mrf.mxu0
    %v469 = vadd.f32 %v386, %v468
    %v470 = vpop.f32.mrf.mxu0
    %471 = vmatprep.mubr.f32.mxu0 0.0
    %472 = vmatmul.mubr.f32.gmra.mxu0 %v395
    %v473 = vpop.f32.mrf.mxu0
    %v474 = vadd.f32 %v386, %v473
    %v475 = vpop.f32.mrf.mxu0
    %476 = vdwg.mxu0
    %v477 = vmax.f32 %v464, 0.0
    %v478 = vmax.f32 %v469, 0.0
    %v479 = vmax.f32 %v474, 0.0
    %v480 = vld [vmem:[#allocation2 + $0x88] sm:$0xff]
    %vm481 = vcmask 64512
    %v483 = vsel %vm481, %v477, 0
    %v486 = vsel %vm481, %v478, 0
    %v489 = vsel %vm481, %v479, 0
    %491 = vmatprep.subr.mxu0 0.0
    %492 = vmatpush1.msra.mxu0 0.0
    %493 = vmatprep.subr.mxu0 0.0
    %494 = vmatpush1.msra.mxu0 0.0
    %495 = vmatprep.subr.mxu0 0.0
    %496 = vmatpush1.msra.mxu0 0.0
    %497 = vmatprep.subr.mxu0 0.0
    %498 = vmatpush1.msra.mxu0 0.0
    %499 = vmatprep.subr.mxu0 0.0
    %500 = vmatpush1.msra.mxu0 0.0
    %501 = vmatprep.subr.mxu0 0.0
    %502 = vmatpush1.msra.mxu0 0.0
    %503 = vmatprep.subr.mxu0 0.0
    %504 = vmatpush1.msra.mxu0 0.0
    %505 = vmatprep.subr.mxu0 0.0
    %506 = vmatpush1.msra.mxu0 0.0
    %507 = vmatprep.subr.mxu0 0.0
    %508 = vmatpush1.msra.mxu0 0.0
    %509 = vmatprep.subr.mxu0 0.0
    %510 = vmatpush1.msra.mxu0 0.0
    %511 = vmatprep.subr.mxu0 0.0
    %512 = vmatpush1.msra.mxu0 0.0
    %513 = vmatprep.subr.mxu0 0.0
    %514 = vmatpush1.msra.mxu0 0.0
    %515 = vmatprep.subr.mxu0 0.0
    %516 = vmatpush1.msra.mxu0 0.0
    %517 = vmatprep.subr.mxu0 0.0
    %518 = vmatpush1.msra.mxu0 0.0
    %519 = vmatprep.subr.mxu0 0.0
    %520 = vmatpush1.msra.mxu0 0.0
    %521 = vmatprep.subr.mxu0 0.0
    %522 = vmatpush1.msra.mxu0 %v480
    %523 = vmatprep.subr.mxu0 0.0
    %524 = vmatpush2.msra.mxu0 0.0
    %525 = vmatprep.subr.mxu0 0.0
    %526 = vmatpush2.msra.mxu0 0.0
    %527 = vmatprep.subr.mxu0 0.0
    %528 = vmatpush2.msra.mxu0 0.0
    %529 = vmatprep.subr.mxu0 0.0
    %530 = vmatpush2.msra.mxu0 0.0
    %531 = vmatprep.subr.mxu0 0.0
    %532 = vmatpush2.msra.mxu0 0.0
    %533 = vmatprep.subr.mxu0 0.0
    %534 = vmatpush2.msra.mxu0 0.0
    %535 = vmatprep.subr.mxu0 0.0
    %536 = vmatpush2.msra.mxu0 0.0
    %537 = vmatprep.subr.mxu0 0.0
    %538 = vmatpush2.msra.mxu0 0.0
    %539 = vmatprep.subr.mxu0 0.0
    %540 = vmatpush2.msra.mxu0 0.0
    %541 = vmatprep.subr.mxu0 0.0
    %542 = vmatpush2.msra.mxu0 0.0
    %543 = vmatprep.subr.mxu0 0.0
    %544 = vmatpush2.msra.mxu0 0.0
    %545 = vmatprep.subr.mxu0 0.0
    %546 = vmatpush2.msra.mxu0 0.0
    %547 = vmatprep.subr.mxu0 0.0
    %548 = vmatpush2.msra.mxu0 0.0
    %549 = vmatprep.subr.mxu0 0.0
    %550 = vmatpush2.msra.mxu0 0.0
    %551 = vmatprep.subr.mxu0 0.0
    %552 = vmatpush2.msra.mxu0 0.0
    %553 = vmatprep.subr.mxu0 0.0
    %554 = vmatpush2.msra.mxu0 0.0
    %555 = vmatprep.mubr.f32.mxu0 0.0
    %556 = vmatmul.mubr.f32.gmra.mxu0 %v483
    %v557 = vpop.f32.mrf.mxu0
    %v558 = vadd.f32 0.0, %v557
    %v559 = vpop.f32.mrf.mxu0
    %560 = vmatprep.mubr.f32.mxu0 0.0
    %561 = vmatmul.mubr.f32.gmra.mxu0 %v486
    %v562 = vpop.f32.mrf.mxu0
    %v563 = vadd.f32 0.0, %v562
    %v564 = vpop.f32.mrf.mxu0
    %565 = vmatprep.mubr.f32.mxu0 0.0
    %566 = vmatmul.mubr.f32.gmra.mxu0 %v489
    %v567 = vpop.f32.mrf.mxu0
    %v568 = vadd.f32 0.0, %v567
    %v569 = vpop.f32.mrf.mxu0
    %570 = vdwg.mxu0
    %v572 = vsel %vm387, %v272, 0
    %v575 = vsel %vm387, %v273, 0
    %577 = vmatprep.subr.mxu0 0.0
    %578 = vmatpush1.msra.mxu0 0.0
    %579 = vmatprep.subr.mxu0 0.0
    %580 = vmatpush1.msra.mxu0 0.0
    %581 = vmatprep.subr.mxu0 0.0
    %582 = vmatpush1.msra.mxu0 0.0
    %583 = vmatprep.subr.mxu0 0.0
    %584 = vmatpush1.msra.mxu0 0.0
    %585 = vmatprep.subr.mxu0 0.0
    %586 = vmatpush1.msra.mxu0 0.0
    %587 = vmatprep.subr.mxu0 0.0
    %588 = vmatpush1.msra.mxu0 0.0
    %589 = vmatprep.subr.mxu0 0.0
    %590 = vmatpush1.msra.mxu0 0.0
    %591 = vmatprep.subr.mxu0 0.0
    %592 = vmatpush1.msra.mxu0 0.0
    %593 = vmatprep.subr.mxu0 0.0
    %594 = vmatpush1.msra.mxu0 0.0
    %595 = vmatprep.subr.mxu0 0.0
    %596 = vmatpush1.msra.mxu0 0.0
    %597 = vmatprep.subr.mxu0 0.0
    %598 = vmatpush1.msra.mxu0 0.0
    %599 = vmatprep.subr.mxu0 0.0
    %600 = vmatpush1.msra.mxu0 0.0
    %601 = vmatprep.subr.mxu0 0.0
    %602 = vmatpush1.msra.mxu0 0.0
    %603 = vmatprep.subr.mxu0 0.0
    %604 = vmatpush1.msra.mxu0 0.0
    %605 = vmatprep.subr.mxu0 0.0
    %606 = vmatpush1.msra.mxu0 %v43
    %607 = vmatprep.subr.mxu0 0.0
    %608 = vmatpush1.msra.mxu0 %v42
    %609 = vmatprep.subr.mxu0 0.0
    %610 = vmatpush2.msra.mxu0 0.0
    %611 = vmatprep.subr.mxu0 0.0
    %612 = vmatpush2.msra.mxu0 0.0
    %613 = vmatprep.subr.mxu0 0.0
    %614 = vmatpush2.msra.mxu0 0.0
    %615 = vmatprep.subr.mxu0 0.0
    %616 = vmatpush2.msra.mxu0 0.0
    %617 = vmatprep.subr.mxu0 0.0
    %618 = vmatpush2.msra.mxu0 0.0
    %619 = vmatprep.subr.mxu0 0.0
    %620 = vmatpush2.msra.mxu0 0.0
    %621 = vmatprep.subr.mxu0 0.0
    %622 = vmatpush2.msra.mxu0 0.0
    %623 = vmatprep.subr.mxu0 0.0
    %624 = vmatpush2.msra.mxu0 0.0
    %625 = vmatprep.subr.mxu0 0.0
    %626 = vmatpush2.msra.mxu0 0.0
    %627 = vmatprep.subr.mxu0 0.0
    %628 = vmatpush2.msra.mxu0 0.0
    %629 = vmatprep.subr.mxu0 0.0
    %630 = vmatpush2.msra.mxu0 0.0
    %631 = vmatprep.subr.mxu0 0.0
    %632 = vmatpush2.msra.mxu0 0.0
    %633 = vmatprep.subr.mxu0 0.0
    %634 = vmatpush2.msra.mxu0 0.0
    %635 = vmatprep.subr.mxu0 0.0
    %636 = vmatpush2.msra.mxu0 0.0
    %637 = vmatprep.subr.mxu0 0.0
    %638 = vmatpush2.msra.mxu0 0.0
    %639 = vmatprep.subr.mxu0 0.0
    %640 = vmatpush2.msra.mxu0 0.0
    %641 = vmatprep.mubr.f32.mxu0 0.0
    %642 = vmatmul.mubr.f32.gmra.mxu0 %v572
    %v643 = vpop.f32.mrf.mxu0
    %v644 = vadd.f32 0.0, %v643
    %v645 = vpop.f32.mrf.mxu0
    %646 = vmatprep.mubr.f32.mxu0 0.0
    %647 = vmatmul.mubr.f32.gmra.mxu0 %v575
    %v648 = vpop.f32.mrf.mxu0
    %v649 = vadd.f32 0.0, %v648
    %v650 = vpop.f32.mrf.mxu0
    %651 = vdwg.mxu0
    %v653 = vsel %vm387, %v31, 0
    %v656 = vsel %vm387, %v32, 0
    %v659 = vsel %vm387, %v33, 0
    %661 = vmatprep.subr.mxu0 0.0
    %662 = vmatpush1.msra.mxu0 0.0
    %663 = vmatprep.subr.mxu0 0.0
    %664 = vmatpush1.msra.mxu0 0.0
    %665 = vmatprep.subr.mxu0 0.0
    %666 = vmatpush1.msra.mxu0 0.0
    %667 = vmatprep.subr.mxu0 0.0
    %668 = vmatpush1.msra.mxu0 0.0
    %669 = vmatprep.subr.mxu0 0.0
    %670 = vmatpush1.msra.mxu0 0.0
    %671 = vmatprep.subr.mxu0 0.0
    %672 = vmatpush1.msra.mxu0 0.0
    %673 = vmatprep.subr.mxu0 0.0
    %674 = vmatpush1.msra.mxu0 0.0
    %675 = vmatprep.subr.mxu0 0.0
    %676 = vmatpush1.msra.mxu0 0.0
    %677 = vmatprep.subr.mxu0 0.0
    %678 = vmatpush1.msra.mxu0 0.0
    %679 = vmatprep.subr.mxu0 0.0
    %680 = vmatpush1.msra.mxu0 0.0
    %681 = vmatprep.subr.mxu0 0.0
    %682 = vmatpush1.msra.mxu0 0.0
    %683 = vmatprep.subr.mxu0 0.0
    %684 = vmatpush1.msra.mxu0 0.0
    %685 = vmatprep.subr.mxu0 0.0
    %686 = vmatpush1.msra.mxu0 0.0
    %687 = vmatprep.subr.mxu0 0.0
    %688 = vmatpush1.msra.mxu0 0.0
    %689 = vmatprep.subr.mxu0 0.0
    %690 = vmatpush1.msra.mxu0 %v649
    %691 = vmatprep.subr.mxu0 0.0
    %692 = vmatpush1.msra.mxu0 %v644
    %693 = vmatprep.subr.mxu0 0.0
    %694 = vmatpush2.msra.mxu0 0.0
    %695 = vmatprep.subr.mxu0 0.0
    %696 = vmatpush2.msra.mxu0 0.0
    %697 = vmatprep.subr.mxu0 0.0
    %698 = vmatpush2.msra.mxu0 0.0
    %699 = vmatprep.subr.mxu0 0.0
    %700 = vmatpush2.msra.mxu0 0.0
    %701 = vmatprep.subr.mxu0 0.0
    %702 = vmatpush2.msra.mxu0 0.0
    %703 = vmatprep.subr.mxu0 0.0
    %704 = vmatpush2.msra.mxu0 0.0
    %705 = vmatprep.subr.mxu0 0.0
    %706 = vmatpush2.msra.mxu0 0.0
    %707 = vmatprep.subr.mxu0 0.0
    %708 = vmatpush2.msra.mxu0 0.0
    %709 = vmatprep.subr.mxu0 0.0
    %710 = vmatpush2.msra.mxu0 0.0
    %711 = vmatprep.subr.mxu0 0.0
    %712 = vmatpush2.msra.mxu0 0.0
    %713 = vmatprep.subr.mxu0 0.0
    %714 = vmatpush2.msra.mxu0 0.0
    %715 = vmatprep.subr.mxu0 0.0
    %716 = vmatpush2.msra.mxu0 0.0
    %717 = vmatprep.subr.mxu0 0.0
    %718 = vmatpush2.msra.mxu0 0.0
    %719 = vmatprep.subr.mxu0 0.0
    %720 = vmatpush2.msra.mxu0 0.0
    %721 = vmatprep.subr.mxu0 0.0
    %722 = vmatpush2.msra.mxu0 0.0
    %723 = vmatprep.subr.mxu0 0.0
    %724 = vmatpush2.msra.mxu0 0.0
    %725 = vmatprep.mubr.f32.mxu0 0.0
    %726 = vmatmul.mubr.f32.gmra.mxu0 %v653
    %v727 = vpop.f32.mrf.mxu0
    %v728 = vadd.f32 0.0, %v727
    %v729 = vpop.f32.mrf.mxu0
    %730 = vmatprep.mubr.f32.mxu0 0.0
    %731 = vmatmul.mubr.f32.gmra.mxu0 %v656
    %v732 = vpop.f32.mrf.mxu0
    %v733 = vadd.f32 0.0, %v732
    %v734 = vpop.f32.mrf.mxu0
    %735 = vmatprep.mubr.f32.mxu0 0.0
    %736 = vmatmul.mubr.f32.gmra.mxu0 %v659
    %v737 = vpop.f32.mrf.mxu0
    %v738 = vadd.f32 0.0, %v737
    %v739 = vpop.f32.mrf.mxu0
    %740 = vdwg.mxu0
    %v742 = vsel %vm387, %v34, 0
    %v745 = vsel %vm387, %v35, 0
    %v748 = vsel %vm387, %v36, 0
    %750 = vmatprep.subr.mxu0 0.0
    %751 = vmatpush1.msra.mxu0 0.0
    %752 = vmatprep.subr.mxu0 0.0
    %753 = vmatpush1.msra.mxu0 0.0
    %754 = vmatprep.subr.mxu0 0.0
    %755 = vmatpush1.msra.mxu0 0.0
    %756 = vmatprep.subr.mxu0 0.0
    %757 = vmatpush1.msra.mxu0 0.0
    %758 = vmatprep.subr.mxu0 0.0
    %759 = vmatpush1.msra.mxu0 0.0
    %760 = vmatprep.subr.mxu0 0.0
    %761 = vmatpush1.msra.mxu0 0.0
    %762 = vmatprep.subr.mxu0 0.0
    %763 = vmatpush1.msra.mxu0 0.0
    %764 = vmatprep.subr.mxu0 0.0
    %765 = vmatpush1.msra.mxu0 0.0
    %766 = vmatprep.subr.mxu0 0.0
    %767 = vmatpush1.msra.mxu0 0.0
    %768 = vmatprep.subr.mxu0 0.0
    %769 = vmatpush1.msra.mxu0 0.0
    %770 = vmatprep.subr.mxu0 0.0
    %771 = vmatpush1.msra.mxu0 0.0
    %772 = vmatprep.subr.mxu0 0.0
    %773 = vmatpush1.msra.mxu0 0.0
    %774 = vmatprep.subr.mxu0 0.0
    %775 = vmatpush1.msra.mxu0 0.0
    %776 = vmatprep.subr.mxu0 0.0
    %777 = vmatpush1.msra.mxu0 0.0
    %778 = vmatprep.subr.mxu0 0.0
    %779 = vmatpush1.msra.mxu0 %v649
    %780 = vmatprep.subr.mxu0 0.0
    %781 = vmatpush1.msra.mxu0 %v644
    %782 = vmatprep.subr.mxu0 0.0
    %783 = vmatpush2.msra.mxu0 0.0
    %784 = vmatprep.subr.mxu0 0.0
    %785 = vmatpush2.msra.mxu0 0.0
    %786 = vmatprep.subr.mxu0 0.0
    %787 = vmatpush2.msra.mxu0 0.0
    %788 = vmatprep.subr.mxu0 0.0
    %789 = vmatpush2.msra.mxu0 0.0
    %790 = vmatprep.subr.mxu0 0.0
    %791 = vmatpush2.msra.mxu0 0.0
    %792 = vmatprep.subr.mxu0 0.0
    %793 = vmatpush2.msra.mxu0 0.0
    %794 = vmatprep.subr.mxu0 0.0
    %795 = vmatpush2.msra.mxu0 0.0
    %796 = vmatprep.subr.mxu0 0.0
    %797 = vmatpush2.msra.mxu0 0.0
    %798 = vmatprep.subr.mxu0 0.0
    %799 = vmatpush2.msra.mxu0 0.0
    %800 = vmatprep.subr.mxu0 0.0
    %801 = vmatpush2.msra.mxu0 0.0
    %802 = vmatprep.subr.mxu0 0.0
    %803 = vmatpush2.msra.mxu0 0.0
    %804 = vmatprep.subr.mxu0 0.0
    %805 = vmatpush2.msra.mxu0 0.0
    %806 = vmatprep.subr.mxu0 0.0
    %807 = vmatpush2.msra.mxu0 0.0
    %808 = vmatprep.subr.mxu0 0.0
    %809 = vmatpush2.msra.mxu0 0.0
    %810 = vmatprep.subr.mxu0 0.0
    %811 = vmatpush2.msra.mxu0 0.0
    %812 = vmatprep.subr.mxu0 0.0
    %813 = vmatpush2.msra.mxu0 0.0
    %814 = vmatprep.mubr.f32.mxu0 0.0
    %815 = vmatmul.mubr.f32.gmra.mxu0 %v742
    %v816 = vpop.f32.mrf.mxu0
    %v817 = vadd.f32 0.0, %v816
    %v818 = vpop.f32.mrf.mxu0
    %819 = vmatprep.mubr.f32.mxu0 0.0
    %820 = vmatmul.mubr.f32.gmra.mxu0 %v745
    %v821 = vpop.f32.mrf.mxu0
    %v822 = vadd.f32 0.0, %v821
    %v823 = vpop.f32.mrf.mxu0
    %824 = vmatprep.mubr.f32.mxu0 0.0
    %825 = vmatmul.mubr.f32.gmra.mxu0 %v748
    %v826 = vpop.f32.mrf.mxu0
    %v827 = vadd.f32 0.0, %v826
    %v828 = vpop.f32.mrf.mxu0
    %829 = vdwg.mxu0
    %833 = vrot.lane.b32.xlu0 %v817, 96
    %v834 = vpop.permute.xlu0 %833
    %835 = vrot.lane.b32.xlu0 %v822, 96
    %v836 = vpop.permute.xlu0 %835
    %837 = vrot.lane.b32.xlu0 %v827, 96
    %v838 = vpop.permute.xlu0 %837
    %v842 = vadd.f32 %v728, %v834
    %v843 = vadd.f32 %v733, %v836
    %v844 = vadd.f32 %v738, %v838
    %v845 = vadd.f32 %v842, %v558
    %v846 = vadd.f32 %v843, %v563
    %v847 = vadd.f32 %v844, %v568
    %848 = vmatprep.subr.mxu0 0.0
    %849 = vmatpush1.msra.mxu0 0.0
    %850 = vmatprep.subr.mxu0 0.0
    %851 = vmatpush1.msra.mxu0 0.0
    %852 = vmatprep.subr.mxu0 0.0
    %853 = vmatpush1.msra.mxu0 0.0
    %854 = vmatprep.subr.mxu0 0.0
    %855 = vmatpush1.msra.mxu0 0.0
    %856 = vmatprep.subr.mxu0 0.0
    %857 = vmatpush1.msra.mxu0 0.0
    %858 = vmatprep.subr.mxu0 0.0
    %859 = vmatpush1.msra.mxu0 0.0
    %860 = vmatprep.subr.mxu0 0.0
    %861 = vmatpush1.msra.mxu0 0.0
    %862 = vmatprep.subr.mxu0 0.0
    %863 = vmatpush1.msra.mxu0 0.0
    %864 = vmatprep.subr.mxu0 0.0
    %865 = vmatpush1.msra.mxu0 0.0
    %866 = vmatprep.subr.mxu0 0.0
    %867 = vmatpush1.msra.mxu0 0.0
    %868 = vmatprep.subr.mxu0 0.0
    %869 = vmatpush1.msra.mxu0 0.0
    %870 = vmatprep.subr.mxu0 0.0
    %871 = vmatpush1.msra.mxu0 0.0
    %872 = vmatprep.subr.mxu0 0.0
    %873 = vmatpush1.msra.mxu0 0.0
    %874 = vmatprep.subr.mxu0 0.0
    %875 = vmatpush1.msra.mxu0 0.0
    %876 = vmatprep.subr.mxu0 0.0
    %877 = vmatpush1.msra.mxu0 0.0
    %878 = vmatprep.subr.mxu0 0.0
    %879 = vmatpush1.msra.mxu0 %v44
    %880 = vmatprep.subr.mxu0 0.0
    %881 = vmatpush2.msra.mxu0 0.0
    %882 = vmatprep.subr.mxu0 0.0
    %883 = vmatpush2.msra.mxu0 0.0
    %884 = vmatprep.subr.mxu0 0.0
    %885 = vmatpush2.msra.mxu0 0.0
    %886 = vmatprep.subr.mxu0 0.0
    %887 = vmatpush2.msra.mxu0 0.0
    %888 = vmatprep.subr.mxu0 0.0
    %889 = vmatpush2.msra.mxu0 0.0
    %890 = vmatprep.subr.mxu0 0.0
    %891 = vmatpush2.msra.mxu0 0.0
    %892 = vmatprep.subr.mxu0 0.0
    %893 = vmatpush2.msra.mxu0 0.0
    %894 = vmatprep.subr.mxu0 0.0
    %895 = vmatpush2.msra.mxu0 0.0
    %896 = vmatprep.subr.mxu0 0.0
    %897 = vmatpush2.msra.mxu0 0.0
    %898 = vmatprep.subr.mxu0 0.0
    %899 = vmatpush2.msra.mxu0 0.0
    %900 = vmatprep.subr.mxu0 0.0
    %901 = vmatpush2.msra.mxu0 0.0
    %902 = vmatprep.subr.mxu0 0.0
    %903 = vmatpush2.msra.mxu0 0.0
    %904 = vmatprep.subr.mxu0 0.0
    %905 = vmatpush2.msra.mxu0 0.0
    %906 = vmatprep.subr.mxu0 0.0
    %907 = vmatpush2.msra.mxu0 0.0
    %908 = vmatprep.subr.mxu0 0.0
    %909 = vmatpush2.msra.mxu0 0.0
    %910 = vmatprep.subr.mxu0 0.0
    %911 = vmatpush2.msra.mxu0 0.0
    %912 = vmatprep.mubr.f32.mxu0 0.0
    %913 = vmatmul.mubr.f32.gmra.mxu0 %v483
    %v914 = vpop.f32.mrf.mxu0
    %v915 = vadd.f32 0.0, %v914
    %v916 = vpop.f32.mrf.mxu0
    %917 = vmatprep.mubr.f32.mxu0 0.0
    %918 = vmatmul.mubr.f32.gmra.mxu0 %v486
    %v919 = vpop.f32.mrf.mxu0
    %v920 = vadd.f32 0.0, %v919
    %v921 = vpop.f32.mrf.mxu0
    %922 = vmatprep.mubr.f32.mxu0 0.0
    %923 = vmatmul.mubr.f32.gmra.mxu0 %v489
    %v924 = vpop.f32.mrf.mxu0
    %v925 = vadd.f32 0.0, %v924
    %v926 = vpop.f32.mrf.mxu0
    %927 = vdwg.mxu0
    %v928 = vadd.f32 %v845, %v915
    %v929 = vadd.f32 %v846, %v920
    %v930 = vadd.f32 %v847, %v925
    %v931 = vadd.f32 %v928, %v66
    %v932 = vadd.f32 %v929, %v66
    %v933 = vadd.f32 %v930, %v66
    %v934 = vmax.f32 %v931, 0.0
    %v935 = vmax.f32 %v932, 0.0
    %v936 = vmax.f32 %v933, 0.0
    %v938 = vsel %vm98, %v934, 0
    %v941 = vsel %vm98, %v935, 0
    %v944 = vsel %vm98, %v936, 0
    %946 = vmatprep.subr.mxu0 0.0
    %947 = vmatpush1.msra.mxu0 0.0
    %948 = vmatprep.subr.mxu0 0.0
    %949 = vmatpush1.msra.mxu0 0.0
    %950 = vmatprep.subr.mxu0 0.0
    %951 = vmatpush1.msra.mxu0 0.0
    %952 = vmatprep.subr.mxu0 0.0
    %953 = vmatpush1.msra.mxu0 0.0
    %954 = vmatprep.subr.mxu0 0.0
    %955 = vmatpush1.msra.mxu0 0.0
    %956 = vmatprep.subr.mxu0 0.0
    %957 = vmatpush1.msra.mxu0 0.0
    %958 = vmatprep.subr.mxu0 0.0
    %959 = vmatpush1.msra.mxu0 0.0
    %960 = vmatprep.subr.mxu0 0.0
    %961 = vmatpush1.msra.mxu0 0.0
    %962 = vmatprep.subr.mxu0 0.0
    %963 = vmatpush1.msra.mxu0 0.0
    %964 = vmatprep.subr.mxu0 0.0
    %965 = vmatpush1.msra.mxu0 0.0
    %966 = vmatprep.subr.mxu0 0.0
    %967 = vmatpush1.msra.mxu0 0.0
    %968 = vmatprep.subr.mxu0 0.0
    %969 = vmatpush1.msra.mxu0 0.0
    %970 = vmatprep.subr.mxu0 0.0
    %971 = vmatpush1.msra.mxu0 %v48
    %972 = vmatprep.subr.mxu0 0.0
    %973 = vmatpush1.msra.mxu0 %v47
    %974 = vmatprep.subr.mxu0 0.0
    %975 = vmatpush1.msra.mxu0 %v46
    %976 = vmatprep.subr.mxu0 0.0
    %977 = vmatpush1.msra.mxu0 %v45
    %978 = vmatprep.subr.mxu0 0.0
    %979 = vmatpush2.msra.mxu0 0.0
    %980 = vmatprep.subr.mxu0 0.0
    %981 = vmatpush2.msra.mxu0 0.0
    %982 = vmatprep.subr.mxu0 0.0
    %983 = vmatpush2.msra.mxu0 0.0
    %984 = vmatprep.subr.mxu0 0.0
    %985 = vmatpush2.msra.mxu0 0.0
    %986 = vmatprep.subr.mxu0 0.0
    %987 = vmatpush2.msra.mxu0 0.0
    %988 = vmatprep.subr.mxu0 0.0
    %989 = vmatpush2.msra.mxu0 0.0
    %990 = vmatprep.subr.mxu0 0.0
    %991 = vmatpush2.msra.mxu0 0.0
    %992 = vmatprep.subr.mxu0 0.0
    %993 = vmatpush2.msra.mxu0 0.0
    %994 = vmatprep.subr.mxu0 0.0
    %995 = vmatpush2.msra.mxu0 0.0
    %996 = vmatprep.subr.mxu0 0.0
    %997 = vmatpush2.msra.mxu0 0.0
    %998 = vmatprep.subr.mxu0 0.0
    %999 = vmatpush2.msra.mxu0 0.0
    %1000 = vmatprep.subr.mxu0 0.0
    %1001 = vmatpush2.msra.mxu0 0.0
    %1002 = vmatprep.subr.mxu0 0.0
    %1003 = vmatpush2.msra.mxu0 0.0
    %1004 = vmatprep.subr.mxu0 0.0
    %1005 = vmatpush2.msra.mxu0 0.0
    %1006 = vmatprep.subr.mxu0 0.0
    %1007 = vmatpush2.msra.mxu0 0.0
    %1008 = vmatprep.subr.mxu0 0.0
    %1009 = vmatpush2.msra.mxu0 0.0
    %1010 = vmatprep.mubr.f32.mxu0 0.0
    %1011 = vmatmul.mubr.f32.gmra.mxu0 %v938
    %v1012 = vpop.f32.mrf.mxu0
    %v1013 = vadd.f32 %v71, %v1012
    %v1014 = vpop.f32.mrf.mxu0
    %1015 = vmatprep.mubr.f32.mxu0 0.0
    %1016 = vmatmul.mubr.f32.gmra.mxu0 %v941
    %v1017 = vpop.f32.mrf.mxu0
    %v1018 = vadd.f32 %v71, %v1017
    %v1019 = vpop.f32.mrf.mxu0
    %1020 = vmatprep.mubr.f32.mxu0 0.0
    %1021 = vmatmul.mubr.f32.gmra.mxu0 %v944
    %v1022 = vpop.f32.mrf.mxu0
    %v1023 = vadd.f32 %v71, %v1022
    %v1024 = vpop.f32.mrf.mxu0
    %1025 = vdwg.mxu0
    %v1026 = vmax.f32 %v1013, 0.0
    %v1027 = vmax.f32 %v1018, 0.0
    %v1028 = vmax.f32 %v1023, 0.0
    %v1030 = vsel %vm481, %v1026, 0
    %v1033 = vsel %vm481, %v1027, 0
    %v1036 = vsel %vm481, %v1028, 0
    %1038 = vmatprep.subr.mxu0 0.0
    %1039 = vmatpush1.msra.mxu0 0.0
    %1040 = vmatprep.subr.mxu0 0.0
    %1041 = vmatpush1.msra.mxu0 0.0
    %1042 = vmatprep.subr.mxu0 0.0
    %1043 = vmatpush1.msra.mxu0 0.0
    %1044 = vmatprep.subr.mxu0 0.0
    %1045 = vmatpush1.msra.mxu0 0.0
    %1046 = vmatprep.subr.mxu0 0.0
    %1047 = vmatpush1.msra.mxu0 0.0
    %1048 = vmatprep.subr.mxu0 0.0
    %1049 = vmatpush1.msra.mxu0 0.0
    %1050 = vmatprep.subr.mxu0 0.0
    %1051 = vmatpush1.msra.mxu0 0.0
    %1052 = vmatprep.subr.mxu0 0.0
    %1053 = vmatpush1.msra.mxu0 0.0
    %1054 = vmatprep.subr.mxu0 0.0
    %1055 = vmatpush1.msra.mxu0 0.0
    %1056 = vmatprep.subr.mxu0 0.0
    %1057 = vmatpush1.msra.mxu0 0.0
    %1058 = vmatprep.subr.mxu0 0.0
    %1059 = vmatpush1.msra.mxu0 0.0
    %1060 = vmatprep.subr.mxu0 0.0
    %1061 = vmatpush1.msra.mxu0 0.0
    %1062 = vmatprep.subr.mxu0 0.0
    %1063 = vmatpush1.msra.mxu0 0.0
    %1064 = vmatprep.subr.mxu0 0.0
    %1065 = vmatpush1.msra.mxu0 0.0
    %1066 = vmatprep.subr.mxu0 0.0
    %1067 = vmatpush1.msra.mxu0 0.0
    %1068 = vmatprep.subr.mxu0 0.0
    %1069 = vmatpush1.msra.mxu0 %v49
    %1070 = vmatprep.subr.mxu0 0.0
    %1071 = vmatpush2.msra.mxu0 0.0
    %1072 = vmatprep.subr.mxu0 0.0
    %1073 = vmatpush2.msra.mxu0 0.0
    %1074 = vmatprep.subr.mxu0 0.0
    %1075 = vmatpush2.msra.mxu0 0.0
    %1076 = vmatprep.subr.mxu0 0.0
    %1077 = vmatpush2.msra.mxu0 0.0
    %1078 = vmatprep.subr.mxu0 0.0
    %1079 = vmatpush2.msra.mxu0 0.0
    %1080 = vmatprep.subr.mxu0 0.0
    %1081 = vmatpush2.msra.mxu0 0.0
    %1082 = vmatprep.subr.mxu0 0.0
    %1083 = vmatpush2.msra.mxu0 0.0
    %1084 = vmatprep.subr.mxu0 0.0
    %1085 = vmatpush2.msra.mxu0 0.0
    %1086 = vmatprep.subr.mxu0 0.0
    %1087 = vmatpush2.msra.mxu0 0.0
    %1088 = vmatprep.subr.mxu0 0.0
    %1089 = vmatpush2.msra.mxu0 0.0
    %1090 = vmatprep.subr.mxu0 0.0
    %1091 = vmatpush2.msra.mxu0 0.0
    %1092 = vmatprep.subr.mxu0 0.0
    %1093 = vmatpush2.msra.mxu0 0.0
    %1094 = vmatprep.subr.mxu0 0.0
    %1095 = vmatpush2.msra.mxu0 0.0
    %1096 = vmatprep.subr.mxu0 0.0
    %1097 = vmatpush2.msra.mxu0 0.0
    %1098 = vmatprep.subr.mxu0 0.0
    %1099 = vmatpush2.msra.mxu0 0.0
    %1100 = vmatprep.subr.mxu0 0.0
    %1101 = vmatpush2.msra.mxu0 0.0
    %1102 = vmatprep.mubr.f32.mxu0 0.0
    %1103 = vmatmul.mubr.f32.gmra.mxu0 %v1030
    %v1104 = vpop.f32.mrf.mxu0
    %v1105 = vadd.f32 0.0, %v1104
    %v1106 = vpop.f32.mrf.mxu0
    %1107 = vmatprep.mubr.f32.mxu0 0.0
    %1108 = vmatmul.mubr.f32.gmra.mxu0 %v1033
    %v1109 = vpop.f32.mrf.mxu0
    %v1110 = vadd.f32 0.0, %v1109
    %v1111 = vpop.f32.mrf.mxu0
    %1112 = vmatprep.mubr.f32.mxu0 0.0
    %1113 = vmatmul.mubr.f32.gmra.mxu0 %v1036
    %v1114 = vpop.f32.mrf.mxu0
    %v1115 = vadd.f32 0.0, %v1114
    %v1116 = vpop.f32.mrf.mxu0
    %1117 = vdwg.mxu0
    %1121 = vrot.lane.b32.xlu0 %v1105, 64
    %v1122 = vpop.permute.xlu0 %1121
    %1123 = vrot.lane.b32.xlu0 %v1110, 64
    %v1124 = vpop.permute.xlu0 %1123
    %1125 = vrot.lane.b32.xlu0 %v1115, 64
    %v1126 = vpop.permute.xlu0 %1125
    %v1130 = vadd.f32 %v817, %v1122
    %v1131 = vadd.f32 %v822, %v1124
    %v1132 = vadd.f32 %v827, %v1126
    %1134 = vrot.lane.b32.xlu0 %v76, 64
    %v1135 = vpop.permute.xlu0 %1134
    %v1137 = vadd.f32 %v1130, %v1135
    %v1138 = vadd.f32 %v1131, %v1135
    %v1139 = vadd.f32 %v1132, %v1135
    %v1140 = vmax.f32 %v1137, 0.0
    %v1141 = vmax.f32 %v1138, 0.0
    %v1142 = vmax.f32 %v1139, 0.0
    %1146 = vrot.lane.b32.xlu0 %v1140, 64
    %v1147 = vpop.permute.xlu0 %1146
    %1148 = vrot.lane.b32.xlu0 %v1141, 64
    %v1149 = vpop.permute.xlu0 %1148
    %1150 = vrot.lane.b32.xlu0 %v1142, 64
    %v1151 = vpop.permute.xlu0 %1150
    %vm1152 = vcmask 523264
    %v1153 = vsel %vm1152, %v1147, 0
    %v1155 = vsel %vm1152, %v1149, 0
    %v1157 = vsel %vm1152, %v1151, 0
    %1159 = vmatprep.subr.mxu0 0.0
    %1160 = vmatpush1.msra.mxu0 0.0
    %1161 = vmatprep.subr.mxu0 0.0
    %1162 = vmatpush1.msra.mxu0 0.0
    %1163 = vmatprep.subr.mxu0 0.0
    %1164 = vmatpush1.msra.mxu0 0.0
    %1165 = vmatprep.subr.mxu0 0.0
    %1166 = vmatpush1.msra.mxu0 0.0
    %1167 = vmatprep.subr.mxu0 0.0
    %1168 = vmatpush1.msra.mxu0 0.0
    %1169 = vmatprep.subr.mxu0 0.0
    %1170 = vmatpush1.msra.mxu0 0.0
    %1171 = vmatprep.subr.mxu0 0.0
    %1172 = vmatpush1.msra.mxu0 0.0
    %1173 = vmatprep.subr.mxu0 0.0
    %1174 = vmatpush1.msra.mxu0 0.0
    %1175 = vmatprep.subr.mxu0 0.0
    %1176 = vmatpush1.msra.mxu0 %v57
    %1177 = vmatprep.subr.mxu0 0.0
    %1178 = vmatpush1.msra.mxu0 %v56
    %1179 = vmatprep.subr.mxu0 0.0
    %1180 = vmatpush1.msra.mxu0 %v55
    %1181 = vmatprep.subr.mxu0 0.0
    %1182 = vmatpush1.msra.mxu0 %v54
    %1183 = vmatprep.subr.mxu0 0.0
    %1184 = vmatpush1.msra.mxu0 %v53
    %1185 = vmatprep.subr.mxu0 0.0
    %1186 = vmatpush1.msra.mxu0 %v52
    %1187 = vmatprep.subr.mxu0 0.0
    %1188 = vmatpush1.msra.mxu0 %v51
    %1189 = vmatprep.subr.mxu0 0.0
    %1190 = vmatpush1.msra.mxu0 %v50
    %1191 = vmatprep.subr.mxu0 0.0
    %1192 = vmatpush2.msra.mxu0 0.0
    %1193 = vmatprep.subr.mxu0 0.0
    %1194 = vmatpush2.msra.mxu0 0.0
    %1195 = vmatprep.subr.mxu0 0.0
    %1196 = vmatpush2.msra.mxu0 0.0
    %1197 = vmatprep.subr.mxu0 0.0
    %1198 = vmatpush2.msra.mxu0 0.0
    %1199 = vmatprep.subr.mxu0 0.0
    %1200 = vmatpush2.msra.mxu0 0.0
    %1201 = vmatprep.subr.mxu0 0.0
    %1202 = vmatpush2.msra.mxu0 0.0
    %1203 = vmatprep.subr.mxu0 0.0
    %1204 = vmatpush2.msra.mxu0 0.0
    %1205 = vmatprep.subr.mxu0 0.0
    %1206 = vmatpush2.msra.mxu0 0.0
    %1207 = vmatprep.subr.mxu0 0.0
    %1208 = vmatpush2.msra.mxu0 0.0
    %1209 = vmatprep.subr.mxu0 0.0
    %1210 = vmatpush2.msra.mxu0 0.0
    %1211 = vmatprep.subr.mxu0 0.0
    %1212 = vmatpush2.msra.mxu0 0.0
    %1213 = vmatprep.subr.mxu0 0.0
    %1214 = vmatpush2.msra.mxu0 0.0
    %1215 = vmatprep.subr.mxu0 0.0
    %1216 = vmatpush2.msra.mxu0 0.0
    %1217 = vmatprep.subr.mxu0 0.0
    %1218 = vmatpush2.msra.mxu0 0.0
    %1219 = vmatprep.subr.mxu0 0.0
    %1220 = vmatpush2.msra.mxu0 0.0
    %1221 = vmatprep.subr.mxu0 0.0
    %1222 = vmatpush2.msra.mxu0 0.0
    %1223 = vmatprep.mubr.f32.mxu0 0.0
    %1224 = vmatmul.mubr.f32.gmra.mxu0 %v1153
    %v1225 = vpop.f32.mrf.mxu0
    %v1226 = vadd.f32 %v81, %v1225
    %v1227 = vpop.f32.mrf.mxu0
    %1228 = vmatprep.mubr.f32.mxu0 0.0
    %1229 = vmatmul.mubr.f32.gmra.mxu0 %v1155
    %v1230 = vpop.f32.mrf.mxu0
    %v1231 = vadd.f32 %v81, %v1230
    %v1232 = vpop.f32.mrf.mxu0
    %1233 = vmatprep.mubr.f32.mxu0 0.0
    %1234 = vmatmul.mubr.f32.gmra.mxu0 %v1157
    %v1235 = vpop.f32.mrf.mxu0
    %v1236 = vadd.f32 %v81, %v1235
    %v1237 = vpop.f32.mrf.mxu0
    %1238 = vdwg.mxu0
    %v1239 = vmax.f32 %v1226, 0.0
    %v1240 = vmax.f32 %v1231, 0.0
    %v1241 = vmax.f32 %v1236, 0.0
    %v1242 = vmul.f32 %v1239, %v39
    %v1243 = vmul.f32 %v1240, %v40
    %v1244 = vmul.f32 %v1241, %v41
    %vm1245 = vcmask 195584
    %v1247 = vsel %vm1245, %v37, 0
    %v1250 = vsel %vm1245, %v38, 0
    %1252 = vmatprep.subr.mxu0 0.0
    %1253 = vmatpush1.msra.mxu0 0.0
    %1254 = vmatprep.subr.mxu0 0.0
    %1255 = vmatpush1.msra.mxu0 0.0
    %1256 = vmatprep.subr.mxu0 0.0
    %1257 = vmatpush1.msra.mxu0 0.0
    %1258 = vmatprep.subr.mxu0 0.0
    %1259 = vmatpush1.msra.mxu0 0.0
    %1260 = vmatprep.subr.mxu0 0.0
    %1261 = vmatpush1.msra.mxu0 0.0
    %1262 = vmatprep.subr.mxu0 0.0
    %1263 = vmatpush1.msra.mxu0 0.0
    %1264 = vmatprep.subr.mxu0 0.0
    %1265 = vmatpush1.msra.mxu0 0.0
    %1266 = vmatprep.subr.mxu0 0.0
    %1267 = vmatpush1.msra.mxu0 0.0
    %1268 = vmatprep.subr.mxu0 0.0
    %1269 = vmatpush1.msra.mxu0 0.0
    %1270 = vmatprep.subr.mxu0 0.0
    %1271 = vmatpush1.msra.mxu0 0.0
    %1272 = vmatprep.subr.mxu0 0.0
    %1273 = vmatpush1.msra.mxu0 0.0
    %1274 = vmatprep.subr.mxu0 0.0
    %1275 = vmatpush1.msra.mxu0 0.0
    %1276 = vmatprep.subr.mxu0 0.0
    %1277 = vmatpush1.msra.mxu0 0.0
    %1278 = vmatprep.subr.mxu0 0.0
    %1279 = vmatpush1.msra.mxu0 %v1244
    %1280 = vmatprep.subr.mxu0 0.0
    %1281 = vmatpush1.msra.mxu0 %v1243
    %1282 = vmatprep.subr.mxu0 0.0
    %1283 = vmatpush1.msra.mxu0 %v1242
    %1284 = vmatprep.subr.mxu0 0.0
    %1285 = vmatpush2.msra.mxu0 0.0
    %1286 = vmatprep.subr.mxu0 0.0
    %1287 = vmatpush2.msra.mxu0 0.0
    %1288 = vmatprep.subr.mxu0 0.0
    %1289 = vmatpush2.msra.mxu0 0.0
    %1290 = vmatprep.subr.mxu0 0.0
    %1291 = vmatpush2.msra.mxu0 0.0
    %1292 = vmatprep.subr.mxu0 0.0
    %1293 = vmatpush2.msra.mxu0 0.0
    %1294 = vmatprep.subr.mxu0 0.0
    %1295 = vmatpush2.msra.mxu0 0.0
    %1296 = vmatprep.subr.mxu0 0.0
    %1297 = vmatpush2.msra.mxu0 0.0
    %1298 = vmatprep.subr.mxu0 0.0
    %1299 = vmatpush2.msra.mxu0 0.0
    %1300 = vmatprep.subr.mxu0 0.0
    %1301 = vmatpush2.msra.mxu0 0.0
    %1302 = vmatprep.subr.mxu0 0.0
    %1303 = vmatpush2.msra.mxu0 0.0
    %1304 = vmatprep.subr.mxu0 0.0
    %1305 = vmatpush2.msra.mxu0 0.0
    %1306 = vmatprep.subr.mxu0 0.0
    %1307 = vmatpush2.msra.mxu0 0.0
    %1308 = vmatprep.subr.mxu0 0.0
    %1309 = vmatpush2.msra.mxu0 0.0
    %1310 = vmatprep.subr.mxu0 0.0
    %1311 = vmatpush2.msra.mxu0 0.0
    %1312 = vmatprep.subr.mxu0 0.0
    %1313 = vmatpush2.msra.mxu0 0.0
    %1314 = vmatprep.subr.mxu0 0.0
    %1315 = vmatpush2.msra.mxu0 0.0
    %1316 = vmatprep.mubr.f32.mxu0 0.0
    %1317 = vmatmul.mubr.f32.gmra.mxu0 %v1247
    %v1318 = vpop.f32.mrf.mxu0
    %v1319 = vadd.f32 0.0, %v1318
    %v1320 = vpop.f32.mrf.mxu0
    %1321 = vmatprep.mubr.f32.mxu0 0.0
    %1322 = vmatmul.mubr.f32.gmra.mxu0 %v1250
    %v1323 = vpop.f32.mrf.mxu0
    %v1324 = vadd.f32 0.0, %v1323
    %v1325 = vpop.f32.mrf.mxu0
    %1326 = vdwg.mxu0
    %v1328 = vsel %vm98, %v1319, 0
    %v1331 = vsel %vm98, %v1324, 0
    %1333 = vmatprep.subr.mxu0 0.0
    %1334 = vmatpush1.msra.mxu0 0.0
    %1335 = vmatprep.subr.mxu0 0.0
    %1336 = vmatpush1.msra.mxu0 0.0
    %1337 = vmatprep.subr.mxu0 0.0
    %1338 = vmatpush1.msra.mxu0 0.0
    %1339 = vmatprep.subr.mxu0 0.0
    %1340 = vmatpush1.msra.mxu0 0.0
    %1341 = vmatprep.subr.mxu0 0.0
    %1342 = vmatpush1.msra.mxu0 0.0
    %1343 = vmatprep.subr.mxu0 0.0
    %1344 = vmatpush1.msra.mxu0 0.0
    %1345 = vmatprep.subr.mxu0 0.0
    %1346 = vmatpush1.msra.mxu0 0.0
    %1347 = vmatprep.subr.mxu0 0.0
    %1348 = vmatpush1.msra.mxu0 0.0
    %1349 = vmatprep.subr.mxu0 0.0
    %1350 = vmatpush1.msra.mxu0 0.0
    %1351 = vmatprep.subr.mxu0 0.0
    %1352 = vmatpush1.msra.mxu0 0.0
    %1353 = vmatprep.subr.mxu0 0.0
    %1354 = vmatpush1.msra.mxu0 0.0
    %1355 = vmatprep.subr.mxu0 0.0
    %1356 = vmatpush1.msra.mxu0 0.0
    %1357 = vmatprep.subr.mxu0 0.0
    %1358 = vmatpush1.msra.mxu0 %v61
    %1359 = vmatprep.subr.mxu0 0.0
    %1360 = vmatpush1.msra.mxu0 %v60
    %1361 = vmatprep.subr.mxu0 0.0
    %1362 = vmatpush1.msra.mxu0 %v59
    %1363 = vmatprep.subr.mxu0 0.0
    %1364 = vmatpush1.msra.mxu0 %v58
    %1365 = vmatprep.subr.mxu0 0.0
    %1366 = vmatpush2.msra.mxu0 0.0
    %1367 = vmatprep.subr.mxu0 0.0
    %1368 = vmatpush2.msra.mxu0 0.0
    %1369 = vmatprep.subr.mxu0 0.0
    %1370 = vmatpush2.msra.mxu0 0.0
    %1371 = vmatprep.subr.mxu0 0.0
    %1372 = vmatpush2.msra.mxu0 0.0
    %1373 = vmatprep.subr.mxu0 0.0
    %1374 = vmatpush2.msra.mxu0 0.0
    %1375 = vmatprep.subr.mxu0 0.0
    %1376 = vmatpush2.msra.mxu0 0.0
    %1377 = vmatprep.subr.mxu0 0.0
    %1378 = vmatpush2.msra.mxu0 0.0
    %1379 = vmatprep.subr.mxu0 0.0
    %1380 = vmatpush2.msra.mxu0 0.0
    %1381 = vmatprep.subr.mxu0 0.0
    %1382 = vmatpush2.msra.mxu0 0.0
    %1383 = vmatprep.subr.mxu0 0.0
    %1384 = vmatpush2.msra.mxu0 0.0
    %1385 = vmatprep.subr.mxu0 0.0
    %1386 = vmatpush2.msra.mxu0 0.0
    %1387 = vmatprep.subr.mxu0 0.0
    %1388 = vmatpush2.msra.mxu0 0.0
    %1389 = vmatprep.subr.mxu0 0.0
    %1390 = vmatpush2.msra.mxu0 0.0
    %1391 = vmatprep.subr.mxu0 0.0
    %1392 = vmatpush2.msra.mxu0 0.0
    %1393 = vmatprep.subr.mxu0 0.0
    %1394 = vmatpush2.msra.mxu0 0.0
    %1395 = vmatprep.subr.mxu0 0.0
    %1396 = vmatpush2.msra.mxu0 0.0
    %1397 = vmatprep.mubr.f32.mxu0 0.0
    %1398 = vmatmul.mubr.f32.gmra.mxu0 %v1328
    %v1399 = vpop.f32.mrf.mxu0
    %v1400 = vadd.f32 %v86, %v1399
    %v1401 = vpop.f32.mrf.mxu0
    %1402 = vmatprep.mubr.f32.mxu0 0.0
    %1403 = vmatmul.mubr.f32.gmra.mxu0 %v1331
    %v1404 = vpop.f32.mrf.mxu0
    %v1405 = vadd.f32 %v86, %v1404
    %v1406 = vpop.f32.mrf.mxu0
    %1407 = vdwg.mxu0
    %v1408 = vmax.f32 %v1400, 0.0
    %v1409 = vmax.f32 %v1405, 0.0
    %v1411 = vsel %vm387, %v1408, 0
    %v1414 = vsel %vm387, %v1409, 0
    %1416 = vmatprep.subr.mxu0 0.0
    %1417 = vmatpush1.msra.mxu0 0.0
    %1418 = vmatprep.subr.mxu0 0.0
    %1419 = vmatpush1.msra.mxu0 0.0
    %1420 = vmatprep.subr.mxu0 0.0
    %1421 = vmatpush1.msra.mxu0 0.0
    %1422 = vmatprep.subr.mxu0 0.0
    %1423 = vmatpush1.msra.mxu0 0.0
    %1424 = vmatprep.subr.mxu0 0.0
    %1425 = vmatpush1.msra.mxu0 0.0
    %1426 = vmatprep.subr.mxu0 0.0
    %1427 = vmatpush1.msra.mxu0 0.0
    %1428 = vmatprep.subr.mxu0 0.0
    %1429 = vmatpush1.msra.mxu0 0.0
    %1430 = vmatprep.subr.mxu0 0.0
    %1431 = vmatpush1.msra.mxu0 0.0
    %1432 = vmatprep.subr.mxu0 0.0
    %1433 = vmatpush1.msra.mxu0 0.0
    %1434 = vmatprep.subr.mxu0 0.0
    %1435 = vmatpush1.msra.mxu0 0.0
    %1436 = vmatprep.subr.mxu0 0.0
    %1437 = vmatpush1.msra.mxu0 0.0
    %1438 = vmatprep.subr.mxu0 0.0
    %1439 = vmatpush1.msra.mxu0 0.0
    %1440 = vmatprep.subr.mxu0 0.0
    %1441 = vmatpush1.msra.mxu0 0.0
    %1442 = vmatprep.subr.mxu0 0.0
    %1443 = vmatpush1.msra.mxu0 0.0
    %1444 = vmatprep.subr.mxu0 0.0
    %1445 = vmatpush1.msra.mxu0 %v43
    %1446 = vmatprep.subr.mxu0 0.0
    %1447 = vmatpush1.msra.mxu0 %v42
    %1448 = vmatprep.subr.mxu0 0.0
    %1449 = vmatpush2.msra.mxu0 0.0
    %1450 = vmatprep.subr.mxu0 0.0
    %1451 = vmatpush2.msra.mxu0 0.0
    %1452 = vmatprep.subr.mxu0 0.0
    %1453 = vmatpush2.msra.mxu0 0.0
    %1454 = vmatprep.subr.mxu0 0.0
    %1455 = vmatpush2.msra.mxu0 0.0
    %1456 = vmatprep.subr.mxu0 0.0
    %1457 = vmatpush2.msra.mxu0 0.0
    %1458 = vmatprep.subr.mxu0 0.0
    %1459 = vmatpush2.msra.mxu0 0.0
    %1460 = vmatprep.subr.mxu0 0.0
    %1461 = vmatpush2.msra.mxu0 0.0
    %1462 = vmatprep.subr.mxu0 0.0
    %1463 = vmatpush2.msra.mxu0 0.0
    %1464 = vmatprep.subr.mxu0 0.0
    %1465 = vmatpush2.msra.mxu0 0.0
    %1466 = vmatprep.subr.mxu0 0.0
    %1467 = vmatpush2.msra.mxu0 0.0
    %1468 = vmatprep.subr.mxu0 0.0
    %1469 = vmatpush2.msra.mxu0 0.0
    %1470 = vmatprep.subr.mxu0 0.0
    %1471 = vmatpush2.msra.mxu0 0.0
    %1472 = vmatprep.subr.mxu0 0.0
    %1473 = vmatpush2.msra.mxu0 0.0
    %1474 = vmatprep.subr.mxu0 0.0
    %1475 = vmatpush2.msra.mxu0 0.0
    %1476 = vmatprep.subr.mxu0 0.0
    %1477 = vmatpush2.msra.mxu0 0.0
    %1478 = vmatprep.subr.mxu0 0.0
    %1479 = vmatpush2.msra.mxu0 0.0
    %1480 = vmatprep.mubr.f32.mxu0 0.0
    %1481 = vmatmul.mubr.f32.gmra.mxu0 %v1411
    %v1482 = vpop.f32.mrf.mxu0
    %v1483 = vadd.f32 0.0, %v1482
    %v1484 = vpop.f32.mrf.mxu0
    %1485 = vmatprep.mubr.f32.mxu0 0.0
    %1486 = vmatmul.mubr.f32.gmra.mxu0 %v1414
    %v1487 = vpop.f32.mrf.mxu0
    %v1488 = vadd.f32 0.0, %v1487
    %v1489 = vpop.f32.mrf.mxu0
    %1490 = vdwg.mxu0
    %1491 = vmatprep.subr.mxu0 0.0
    %1492 = vmatpush1.msra.mxu0 0.0
    %1493 = vmatprep.subr.mxu0 0.0
    %1494 = vmatpush1.msra.mxu0 0.0
    %1495 = vmatprep.subr.mxu0 0.0
    %1496 = vmatpush1.msra.mxu0 0.0
    %1497 = vmatprep.subr.mxu0 0.0
    %1498 = vmatpush1.msra.mxu0 0.0
    %1499 = vmatprep.subr.mxu0 0.0
    %1500 = vmatpush1.msra.mxu0 0.0
    %1501 = vmatprep.subr.mxu0 0.0
    %1502 = vmatpush1.msra.mxu0 0.0
    %1503 = vmatprep.subr.mxu0 0.0
    %1504 = vmatpush1.msra.mxu0 0.0
    %1505 = vmatprep.subr.mxu0 0.0
    %1506 = vmatpush1.msra.mxu0 0.0
    %1507 = vmatprep.subr.mxu0 0.0
    %1508 = vmatpush1.msra.mxu0 0.0
    %1509 = vmatprep.subr.mxu0 0.0
    %1510 = vmatpush1.msra.mxu0 0.0
    %1511 = vmatprep.subr.mxu0 0.0
    %1512 = vmatpush1.msra.mxu0 0.0
    %1513 = vmatprep.subr.mxu0 0.0
    %1514 = vmatpush1.msra.mxu0 0.0
    %1515 = vmatprep.subr.mxu0 0.0
    %1516 = vmatpush1.msra.mxu0 0.0
    %1517 = vmatprep.subr.mxu0 0.0
    %1518 = vmatpush1.msra.mxu0 0.0
    %1519 = vmatprep.subr.mxu0 0.0
    %1520 = vmatpush1.msra.mxu0 %v1488
    %1521 = vmatprep.subr.mxu0 0.0
    %1522 = vmatpush1.msra.mxu0 %v1483
    %1523 = vmatprep.subr.mxu0 0.0
    %1524 = vmatpush2.msra.mxu0 0.0
    %1525 = vmatprep.subr.mxu0 0.0
    %1526 = vmatpush2.msra.mxu0 0.0
    %1527 = vmatprep.subr.mxu0 0.0
    %1528 = vmatpush2.msra.mxu0 0.0
    %1529 = vmatprep.subr.mxu0 0.0
    %1530 = vmatpush2.msra.mxu0 0.0
    %1531 = vmatprep.subr.mxu0 0.0
    %1532 = vmatpush2.msra.mxu0 0.0
    %1533 = vmatprep.subr.mxu0 0.0
    %1534 = vmatpush2.msra.mxu0 0.0
    %1535 = vmatprep.subr.mxu0 0.0
    %1536 = vmatpush2.msra.mxu0 0.0
    %1537 = vmatprep.subr.mxu0 0.0
    %1538 = vmatpush2.msra.mxu0 0.0
    %1539 = vmatprep.subr.mxu0 0.0
    %1540 = vmatpush2.msra.mxu0 0.0
    %1541 = vmatprep.subr.mxu0 0.0
    %1542 = vmatpush2.msra.mxu0 0.0
    %1543 = vmatprep.subr.mxu0 0.0
    %1544 = vmatpush2.msra.mxu0 0.0
    %1545 = vmatprep.subr.mxu0 0.0
    %1546 = vmatpush2.msra.mxu0 0.0
    %1547 = vmatprep.subr.mxu0 0.0
    %1548 = vmatpush2.msra.mxu0 0.0
    %1549 = vmatprep.subr.mxu0 0.0
    %1550 = vmatpush2.msra.mxu0 0.0
    %1551 = vmatprep.subr.mxu0 0.0
    %1552 = vmatpush2.msra.mxu0 0.0
    %1553 = vmatprep.subr.mxu0 0.0
    %1554 = vmatpush2.msra.mxu0 0.0
    %1555 = vmatprep.mubr.f32.mxu0 0.0
    %1556 = vmatmul.mubr.f32.gmra.mxu0 %v653
    %v1557 = vpop.f32.mrf.mxu0
    %v1558 = vadd.f32 0.0, %v1557
    %v1559 = vpop.f32.mrf.mxu0
    %1560 = vmatprep.mubr.f32.mxu0 0.0
    %1561 = vmatmul.mubr.f32.gmra.mxu0 %v656
    %v1562 = vpop.f32.mrf.mxu0
    %v1563 = vadd.f32 0.0, %v1562
    %v1564 = vpop.f32.mrf.mxu0
    %1565 = vmatprep.mubr.f32.mxu0 0.0
    %1566 = vmatmul.mubr.f32.gmra.mxu0 %v659
    %v1567 = vpop.f32.mrf.mxu0
    %v1568 = vadd.f32 0.0, %v1567
    %v1569 = vpop.f32.mrf.mxu0
    %1570 = vdwg.mxu0
    %1571 = vmatprep.subr.mxu0 0.0
    %1572 = vmatpush1.msra.mxu0 0.0
    %1573 = vmatprep.subr.mxu0 0.0
    %1574 = vmatpush1.msra.mxu0 0.0
    %1575 = vmatprep.subr.mxu0 0.0
    %1576 = vmatpush1.msra.mxu0 0.0
    %1577 = vmatprep.subr.mxu0 0.0
    %1578 = vmatpush1.msra.mxu0 0.0
    %1579 = vmatprep.subr.mxu0 0.0
    %1580 = vmatpush1.msra.mxu0 0.0
    %1581 = vmatprep.subr.mxu0 0.0
    %1582 = vmatpush1.msra.mxu0 0.0
    %1583 = vmatprep.subr.mxu0 0.0
    %1584 = vmatpush1.msra.mxu0 0.0
    %1585 = vmatprep.subr.mxu0 0.0
    %1586 = vmatpush1.msra.mxu0 0.0
    %1587 = vmatprep.subr.mxu0 0.0
    %1588 = vmatpush1.msra.mxu0 0.0
    %1589 = vmatprep.subr.mxu0 0.0
    %1590 = vmatpush1.msra.mxu0 0.0
    %1591 = vmatprep.subr.mxu0 0.0
    %1592 = vmatpush1.msra.mxu0 0.0
    %1593 = vmatprep.subr.mxu0 0.0
    %1594 = vmatpush1.msra.mxu0 0.0
    %1595 = vmatprep.subr.mxu0 0.0
    %1596 = vmatpush1.msra.mxu0 0.0
    %1597 = vmatprep.subr.mxu0 0.0
    %1598 = vmatpush1.msra.mxu0 0.0
    %1599 = vmatprep.subr.mxu0 0.0
    %1600 = vmatpush1.msra.mxu0 %v1488
    %1601 = vmatprep.subr.mxu0 0.0
    %1602 = vmatpush1.msra.mxu0 %v1483
    %1603 = vmatprep.subr.mxu0 0.0
    %1604 = vmatpush2.msra.mxu0 0.0
    %1605 = vmatprep.subr.mxu0 0.0
    %1606 = vmatpush2.msra.mxu0 0.0
    %1607 = vmatprep.subr.mxu0 0.0
    %1608 = vmatpush2.msra.mxu0 0.0
    %1609 = vmatprep.subr.mxu0 0.0
    %1610 = vmatpush2.msra.mxu0 0.0
    %1611 = vmatprep.subr.mxu0 0.0
    %1612 = vmatpush2.msra.mxu0 0.0
    %1613 = vmatprep.subr.mxu0 0.0
    %1614 = vmatpush2.msra.mxu0 0.0
    %1615 = vmatprep.subr.mxu0 0.0
    %1616 = vmatpush2.msra.mxu0 0.0
    %1617 = vmatprep.subr.mxu0 0.0
    %1618 = vmatpush2.msra.mxu0 0.0
    %1619 = vmatprep.subr.mxu0 0.0
    %1620 = vmatpush2.msra.mxu0 0.0
    %1621 = vmatprep.subr.mxu0 0.0
    %1622 = vmatpush2.msra.mxu0 0.0
    %1623 = vmatprep.subr.mxu0 0.0
    %1624 = vmatpush2.msra.mxu0 0.0
    %1625 = vmatprep.subr.mxu0 0.0
    %1626 = vmatpush2.msra.mxu0 0.0
    %1627 = vmatprep.subr.mxu0 0.0
    %1628 = vmatpush2.msra.mxu0 0.0
    %1629 = vmatprep.subr.mxu0 0.0
    %1630 = vmatpush2.msra.mxu0 0.0
    %1631 = vmatprep.subr.mxu0 0.0
    %1632 = vmatpush2.msra.mxu0 0.0
    %1633 = vmatprep.subr.mxu0 0.0
    %1634 = vmatpush2.msra.mxu0 0.0
    %1635 = vmatprep.mubr.f32.mxu0 0.0
    %1636 = vmatmul.mubr.f32.gmra.mxu0 %v742
    %v1637 = vpop.f32.mrf.mxu0
    %v1638 = vadd.f32 0.0, %v1637
    %v1639 = vpop.f32.mrf.mxu0
    %1640 = vmatprep.mubr.f32.mxu0 0.0
    %1641 = vmatmul.mubr.f32.gmra.mxu0 %v745
    %v1642 = vpop.f32.mrf.mxu0
    %v1643 = vadd.f32 0.0, %v1642
    %v1644 = vpop.f32.mrf.mxu0
    %1645 = vmatprep.mubr.f32.mxu0 0.0
    %1646 = vmatmul.mubr.f32.gmra.mxu0 %v748
    %v1647 = vpop.f32.mrf.mxu0
    %v1648 = vadd.f32 0.0, %v1647
    %v1649 = vpop.f32.mrf.mxu0
    %1650 = vdwg.mxu0
    %1654 = vrot.lane.b32.xlu0 %v1638, 96
    %v1655 = vpop.permute.xlu0 %1654
    %1656 = vrot.lane.b32.xlu0 %v1643, 96
    %v1657 = vpop.permute.xlu0 %1656
    %1658 = vrot.lane.b32.xlu0 %v1648, 96
    %v1659 = vpop.permute.xlu0 %1658
    %v1663 = vadd.f32 %v1558, %v1655
    %v1664 = vadd.f32 %v1563, %v1657
    %v1665 = vadd.f32 %v1568, %v1659
    %v1666 = vadd.f32 %v1663, %v558
    %v1667 = vadd.f32 %v1664, %v563
    %v1668 = vadd.f32 %v1665, %v568
    %1669 = vmatprep.subr.mxu0 0.0
    %1670 = vmatpush1.msra.mxu0 0.0
    %1671 = vmatprep.subr.mxu0 0.0
    %1672 = vmatpush1.msra.mxu0 0.0
    %1673 = vmatprep.subr.mxu0 0.0
    %1674 = vmatpush1.msra.mxu0 0.0
    %1675 = vmatprep.subr.mxu0 0.0
    %1676 = vmatpush1.msra.mxu0 0.0
    %1677 = vmatprep.subr.mxu0 0.0
    %1678 = vmatpush1.msra.mxu0 0.0
    %1679 = vmatprep.subr.mxu0 0.0
    %1680 = vmatpush1.msra.mxu0 0.0
    %1681 = vmatprep.subr.mxu0 0.0
    %1682 = vmatpush1.msra.mxu0 0.0
    %1683 = vmatprep.subr.mxu0 0.0
    %1684 = vmatpush1.msra.mxu0 0.0
    %1685 = vmatprep.subr.mxu0 0.0
    %1686 = vmatpush1.msra.mxu0 0.0
    %1687 = vmatprep.subr.mxu0 0.0
    %1688 = vmatpush1.msra.mxu0 0.0
    %1689 = vmatprep.subr.mxu0 0.0
    %1690 = vmatpush1.msra.mxu0 0.0
    %1691 = vmatprep.subr.mxu0 0.0
    %1692 = vmatpush1.msra.mxu0 0.0
    %1693 = vmatprep.subr.mxu0 0.0
    %1694 = vmatpush1.msra.mxu0 0.0
    %1695 = vmatprep.subr.mxu0 0.0
    %1696 = vmatpush1.msra.mxu0 0.0
    %1697 = vmatprep.subr.mxu0 0.0
    %1698 = vmatpush1.msra.mxu0 0.0
    %1699 = vmatprep.subr.mxu0 0.0
    %1700 = vmatpush1.msra.mxu0 %v44
    %1701 = vmatprep.subr.mxu0 0.0
    %1702 = vmatpush2.msra.mxu0 0.0
    %1703 = vmatprep.subr.mxu0 0.0
    %1704 = vmatpush2.msra.mxu0 0.0
    %1705 = vmatprep.subr.mxu0 0.0
    %1706 = vmatpush2.msra.mxu0 0.0
    %1707 = vmatprep.subr.mxu0 0.0
    %1708 = vmatpush2.msra.mxu0 0.0
    %1709 = vmatprep.subr.mxu0 0.0
    %1710 = vmatpush2.msra.mxu0 0.0
    %1711 = vmatprep.subr.mxu0 0.0
    %1712 = vmatpush2.msra.mxu0 0.0
    %1713 = vmatprep.subr.mxu0 0.0
    %1714 = vmatpush2.msra.mxu0 0.0
    %1715 = vmatprep.subr.mxu0 0.0
    %1716 = vmatpush2.msra.mxu0 0.0
    %1717 = vmatprep.subr.mxu0 0.0
    %1718 = vmatpush2.msra.mxu0 0.0
    %1719 = vmatprep.subr.mxu0 0.0
    %1720 = vmatpush2.msra.mxu0 0.0
    %1721 = vmatprep.subr.mxu0 0.0
    %1722 = vmatpush2.msra.mxu0 0.0
    %1723 = vmatprep.subr.mxu0 0.0
    %1724 = vmatpush2.msra.mxu0 0.0
    %1725 = vmatprep.subr.mxu0 0.0
    %1726 = vmatpush2.msra.mxu0 0.0
    %1727 = vmatprep.subr.mxu0 0.0
    %1728 = vmatpush2.msra.mxu0 0.0
    %1729 = vmatprep.subr.mxu0 0.0
    %1730 = vmatpush2.msra.mxu0 0.0
    %1731 = vmatprep.subr.mxu0 0.0
    %1732 = vmatpush2.msra.mxu0 0.0
    %1733 = vmatprep.mubr.f32.mxu0 0.0
    %1734 = vmatmul.mubr.f32.gmra.mxu0 %v1030
    %v1735 = vpop.f32.mrf.mxu0
    %v1736 = vadd.f32 0.0, %v1735
    %v1737 = vpop.f32.mrf.mxu0
    %1738 = vmatprep.mubr.f32.mxu0 0.0
    %1739 = vmatmul.mubr.f32.gmra.mxu0 %v1033
    %v1740 = vpop.f32.mrf.mxu0
    %v1741 = vadd.f32 0.0, %v1740
    %v1742 = vpop.f32.mrf.mxu0
    %1743 = vmatprep.mubr.f32.mxu0 0.0
    %1744 = vmatmul.mubr.f32.gmra.mxu0 %v1036
    %v1745 = vpop.f32.mrf.mxu0
    %v1746 = vadd.f32 0.0, %v1745
    %v1747 = vpop.f32.mrf.mxu0
    %1748 = vdwg.mxu0
    %v1749 = vadd.f32 %v1666, %v1736
    %v1750 = vadd.f32 %v1667, %v1741
    %v1751 = vadd.f32 %v1668, %v1746
    %v1752 = vadd.f32 %v1749, %v66
    %v1753 = vadd.f32 %v1750, %v66
    %v1754 = vadd.f32 %v1751, %v66
    %v1755 = vmax.f32 %v1752, 0.0
    %v1756 = vmax.f32 %v1753, 0.0
    %v1757 = vmax.f32 %v1754, 0.0
    %v1759 = vsel %vm98, %v1755, 0
    %v1762 = vsel %vm98, %v1756, 0
    %v1765 = vsel %vm98, %v1757, 0
    %1767 = vmatprep.subr.mxu0 0.0
    %1768 = vmatpush1.msra.mxu0 0.0
    %1769 = vmatprep.subr.mxu0 0.0
    %1770 = vmatpush1.msra.mxu0 0.0
    %1771 = vmatprep.subr.mxu0 0.0
    %1772 = vmatpush1.msra.mxu0 0.0
    %1773 = vmatprep.subr.mxu0 0.0
    %1774 = vmatpush1.msra.mxu0 0.0
    %1775 = vmatprep.subr.mxu0 0.0
    %1776 = vmatpush1.msra.mxu0 0.0
    %1777 = vmatprep.subr.mxu0 0.0
    %1778 = vmatpush1.msra.mxu0 0.0
    %1779 = vmatprep.subr.mxu0 0.0
    %1780 = vmatpush1.msra.mxu0 0.0
    %1781 = vmatprep.subr.mxu0 0.0
    %1782 = vmatpush1.msra.mxu0 0.0
    %1783 = vmatprep.subr.mxu0 0.0
    %1784 = vmatpush1.msra.mxu0 0.0
    %1785 = vmatprep.subr.mxu0 0.0
    %1786 = vmatpush1.msra.mxu0 0.0
    %1787 = vmatprep.subr.mxu0 0.0
    %1788 = vmatpush1.msra.mxu0 0.0
    %1789 = vmatprep.subr.mxu0 0.0
    %1790 = vmatpush1.msra.mxu0 0.0
    %1791 = vmatprep.subr.mxu0 0.0
    %1792 = vmatpush1.msra.mxu0 %v48
    %1793 = vmatprep.subr.mxu0 0.0
    %1794 = vmatpush1.msra.mxu0 %v47
    %1795 = vmatprep.subr.mxu0 0.0
    %1796 = vmatpush1.msra.mxu0 %v46
    %1797 = vmatprep.subr.mxu0 0.0
    %1798 = vmatpush1.msra.mxu0 %v45
    %1799 = vmatprep.subr.mxu0 0.0
    %1800 = vmatpush2.msra.mxu0 0.0
    %1801 = vmatprep.subr.mxu0 0.0
    %1802 = vmatpush2.msra.mxu0 0.0
    %1803 = vmatprep.subr.mxu0 0.0
    %1804 = vmatpush2.msra.mxu0 0.0
    %1805 = vmatprep.subr.mxu0 0.0
    %1806 = vmatpush2.msra.mxu0 0.0
    %1807 = vmatprep.subr.mxu0 0.0
    %1808 = vmatpush2.msra.mxu0 0.0
    %1809 = vmatprep.subr.mxu0 0.0
    %1810 = vmatpush2.msra.mxu0 0.0
    %1811 = vmatprep.subr.mxu0 0.0
    %1812 = vmatpush2.msra.mxu0 0.0
    %1813 = vmatprep.subr.mxu0 0.0
    %1814 = vmatpush2.msra.mxu0 0.0
    %1815 = vmatprep.subr.mxu0 0.0
    %1816 = vmatpush2.msra.mxu0 0.0
    %1817 = vmatprep.subr.mxu0 0.0
    %1818 = vmatpush2.msra.mxu0 0.0
    %1819 = vmatprep.subr.mxu0 0.0
    %1820 = vmatpush2.msra.mxu0 0.0
    %1821 = vmatprep.subr.mxu0 0.0
    %1822 = vmatpush2.msra.mxu0 0.0
    %1823 = vmatprep.subr.mxu0 0.0
    %1824 = vmatpush2.msra.mxu0 0.0
    %1825 = vmatprep.subr.mxu0 0.0
    %1826 = vmatpush2.msra.mxu0 0.0
    %1827 = vmatprep.subr.mxu0 0.0
    %1828 = vmatpush2.msra.mxu0 0.0
    %1829 = vmatprep.subr.mxu0 0.0
    %1830 = vmatpush2.msra.mxu0 0.0
    %1831 = vmatprep.mubr.f32.mxu0 0.0
    %1832 = vmatmul.mubr.f32.gmra.mxu0 %v1759
    %v1833 = vpop.f32.mrf.mxu0
    %v1834 = vadd.f32 %v71, %v1833
    %v1835 = vpop.f32.mrf.mxu0
    %1836 = vmatprep.mubr.f32.mxu0 0.0
    %1837 = vmatmul.mubr.f32.gmra.mxu0 %v1762
    %v1838 = vpop.f32.mrf.mxu0
    %v1839 = vadd.f32 %v71, %v1838
    %v1840 = vpop.f32.mrf.mxu0
    %1841 = vmatprep.mubr.f32.mxu0 0.0
    %1842 = vmatmul.mubr.f32.gmra.mxu0 %v1765
    %v1843 = vpop.f32.mrf.mxu0
    %v1844 = vadd.f32 %v71, %v1843
    %v1845 = vpop.f32.mrf.mxu0
    %1846 = vdwg.mxu0
    %v1847 = vmax.f32 %v1834, 0.0
    %v1848 = vmax.f32 %v1839, 0.0
    %v1849 = vmax.f32 %v1844, 0.0
    %v1851 = vsel %vm481, %v1847, 0
    %v1854 = vsel %vm481, %v1848, 0
    %v1857 = vsel %vm481, %v1849, 0
    %1859 = vmatprep.subr.mxu0 0.0
    %1860 = vmatpush1.msra.mxu0 0.0
    %1861 = vmatprep.subr.mxu0 0.0
    %1862 = vmatpush1.msra.mxu0 0.0
    %1863 = vmatprep.subr.mxu0 0.0
    %1864 = vmatpush1.msra.mxu0 0.0
    %1865 = vmatprep.subr.mxu0 0.0
    %1866 = vmatpush1.msra.mxu0 0.0
    %1867 = vmatprep.subr.mxu0 0.0
    %1868 = vmatpush1.msra.mxu0 0.0
    %1869 = vmatprep.subr.mxu0 0.0
    %1870 = vmatpush1.msra.mxu0 0.0
    %1871 = vmatprep.subr.mxu0 0.0
    %1872 = vmatpush1.msra.mxu0 0.0
    %1873 = vmatprep.subr.mxu0 0.0
    %1874 = vmatpush1.msra.mxu0 0.0
    %1875 = vmatprep.subr.mxu0 0.0
    %1876 = vmatpush1.msra.mxu0 0.0
    %1877 = vmatprep.subr.mxu0 0.0
    %1878 = vmatpush1.msra.mxu0 0.0
    %1879 = vmatprep.subr.mxu0 0.0
    %1880 = vmatpush1.msra.mxu0 0.0
    %1881 = vmatprep.subr.mxu0 0.0
    %1882 = vmatpush1.msra.mxu0 0.0
    %1883 = vmatprep.subr.mxu0 0.0
    %1884 = vmatpush1.msra.mxu0 0.0
    %1885 = vmatprep.subr.mxu0 0.0
    %1886 = vmatpush1.msra.mxu0 0.0
    %1887 = vmatprep.subr.mxu0 0.0
    %1888 = vmatpush1.msra.mxu0 0.0
    %1889 = vmatprep.subr.mxu0 0.0
    %1890 = vmatpush1.msra.mxu0 %v49
    %1891 = vmatprep.subr.mxu0 0.0
    %1892 = vmatpush2.msra.mxu0 0.0
    %1893 = vmatprep.subr.mxu0 0.0
    %1894 = vmatpush2.msra.mxu0 0.0
    %1895 = vmatprep.subr.mxu0 0.0
    %1896 = vmatpush2.msra.mxu0 0.0
    %1897 = vmatprep.subr.mxu0 0.0
    %1898 = vmatpush2.msra.mxu0 0.0
    %1899 = vmatprep.subr.mxu0 0.0
    %1900 = vmatpush2.msra.mxu0 0.0
    %1901 = vmatprep.subr.mxu0 0.0
    %1902 = vmatpush2.msra.mxu0 0.0
    %1903 = vmatprep.subr.mxu0 0.0
    %1904 = vmatpush2.msra.mxu0 0.0
    %1905 = vmatprep.subr.mxu0 0.0
    %1906 = vmatpush2.msra.mxu0 0.0
    %1907 = vmatprep.subr.mxu0 0.0
    %1908 = vmatpush2.msra.mxu0 0.0
    %1909 = vmatprep.subr.mxu0 0.0
    %1910 = vmatpush2.msra.mxu0 0.0
    %1911 = vmatprep.subr.mxu0 0.0
    %1912 = vmatpush2.msra.mxu0 0.0
    %1913 = vmatprep.subr.mxu0 0.0
    %1914 = vmatpush2.msra.mxu0 0.0
    %1915 = vmatprep.subr.mxu0 0.0
    %1916 = vmatpush2.msra.mxu0 0.0
    %1917 = vmatprep.subr.mxu0 0.0
    %1918 = vmatpush2.msra.mxu0 0.0
    %1919 = vmatprep.subr.mxu0 0.0
    %1920 = vmatpush2.msra.mxu0 0.0
    %1921 = vmatprep.subr.mxu0 0.0
    %1922 = vmatpush2.msra.mxu0 0.0
    %1923 = vmatprep.mubr.f32.mxu0 0.0
    %1924 = vmatmul.mubr.f32.gmra.mxu0 %v1851
    %v1925 = vpop.f32.mrf.mxu0
    %v1926 = vadd.f32 0.0, %v1925
    %v1927 = vpop.f32.mrf.mxu0
    %1928 = vmatprep.mubr.f32.mxu0 0.0
    %1929 = vmatmul.mubr.f32.gmra.mxu0 %v1854
    %v1930 = vpop.f32.mrf.mxu0
    %v1931 = vadd.f32 0.0, %v1930
    %v1932 = vpop.f32.mrf.mxu0
    %1933 = vmatprep.mubr.f32.mxu0 0.0
    %1934 = vmatmul.mubr.f32.gmra.mxu0 %v1857
    %v1935 = vpop.f32.mrf.mxu0
    %v1936 = vadd.f32 0.0, %v1935
    %v1937 = vpop.f32.mrf.mxu0
    %1938 = vdwg.mxu0
    %1942 = vrot.lane.b32.xlu0 %v1926, 64
    %v1943 = vpop.permute.xlu0 %1942
    %1944 = vrot.lane.b32.xlu0 %v1931, 64
    %v1945 = vpop.permute.xlu0 %1944
    %1946 = vrot.lane.b32.xlu0 %v1936, 64
    %v1947 = vpop.permute.xlu0 %1946
    %v1951 = vadd.f32 %v1638, %v1943
    %v1952 = vadd.f32 %v1643, %v1945
    %v1953 = vadd.f32 %v1648, %v1947
    %v1954 = vadd.f32 %v1951, %v1135
    %v1955 = vadd.f32 %v1952, %v1135
    %v1956 = vadd.f32 %v1953, %v1135
    %v1957 = vmax.f32 %v1954, 0.0
    %v1958 = vmax.f32 %v1955, 0.0
    %v1959 = vmax.f32 %v1956, 0.0
    %1963 = vrot.lane.b32.xlu0 %v1957, 64
    %v1964 = vpop.permute.xlu0 %1963
    %1965 = vrot.lane.b32.xlu0 %v1958, 64
    %v1966 = vpop.permute.xlu0 %1965
    %1967 = vrot.lane.b32.xlu0 %v1959, 64
    %v1968 = vpop.permute.xlu0 %1967
    %v1969 = vsel %vm1152, %v1964, 0
    %v1971 = vsel %vm1152, %v1966, 0
    %v1973 = vsel %vm1152, %v1968, 0
    %1975 = vmatprep.subr.mxu0 0.0
    %1976 = vmatpush1.msra.mxu0 0.0
    %1977 = vmatprep.subr.mxu0 0.0
    %1978 = vmatpush1.msra.mxu0 0.0
    %1979 = vmatprep.subr.mxu0 0.0
    %1980 = vmatpush1.msra.mxu0 0.0
    %1981 = vmatprep.subr.mxu0 0.0
    %1982 = vmatpush1.msra.mxu0 0.0
    %1983 = vmatprep.subr.mxu0 0.0
    %1984 = vmatpush1.msra.mxu0 0.0
    %1985 = vmatprep.subr.mxu0 0.0
    %1986 = vmatpush1.msra.mxu0 0.0
    %1987 = vmatprep.subr.mxu0 0.0
    %1988 = vmatpush1.msra.mxu0 0.0
    %1989 = vmatprep.subr.mxu0 0.0
    %1990 = vmatpush1.msra.mxu0 0.0
    %1991 = vmatprep.subr.mxu0 0.0
    %1992 = vmatpush1.msra.mxu0 %v57
    %1993 = vmatprep.subr.mxu0 0.0
    %1994 = vmatpush1.msra.mxu0 %v56
    %1995 = vmatprep.subr.mxu0 0.0
    %1996 = vmatpush1.msra.mxu0 %v55
    %1997 = vmatprep.subr.mxu0 0.0
    %1998 = vmatpush1.msra.mxu0 %v54
    %1999 = vmatprep.subr.mxu0 0.0
    %2000 = vmatpush1.msra.mxu0 %v53
    %2001 = vmatprep.subr.mxu0 0.0
    %2002 = vmatpush1.msra.mxu0 %v52
    %2003 = vmatprep.subr.mxu0 0.0
    %2004 = vmatpush1.msra.mxu0 %v51
    %2005 = vmatprep.subr.mxu0 0.0
    %2006 = vmatpush1.msra.mxu0 %v50
    %2007 = vmatprep.subr.mxu0 0.0
    %2008 = vmatpush2.msra.mxu0 0.0
    %2009 = vmatprep.subr.mxu0 0.0
    %2010 = vmatpush2.msra.mxu0 0.0
    %2011 = vmatprep.subr.mxu0 0.0
    %2012 = vmatpush2.msra.mxu0 0.0
    %2013 = vmatprep.subr.mxu0 0.0
    %2014 = vmatpush2.msra.mxu0 0.0
    %2015 = vmatprep.subr.mxu0 0.0
    %2016 = vmatpush2.msra.mxu0 0.0
    %2017 = vmatprep.subr.mxu0 0.0
    %2018 = vmatpush2.msra.mxu0 0.0
    %2019 = vmatprep.subr.mxu0 0.0
    %2020 = vmatpush2.msra.mxu0 0.0
    %2021 = vmatprep.subr.mxu0 0.0
    %2022 = vmatpush2.msra.mxu0 0.0
    %2023 = vmatprep.subr.mxu0 0.0
    %2024 = vmatpush2.msra.mxu0 0.0
    %2025 = vmatprep.subr.mxu0 0.0
    %2026 = vmatpush2.msra.mxu0 0.0
    %2027 = vmatprep.subr.mxu0 0.0
    %2028 = vmatpush2.msra.mxu0 0.0
    %2029 = vmatprep.subr.mxu0 0.0
    %2030 = vmatpush2.msra.mxu0 0.0
    %2031 = vmatprep.subr.mxu0 0.0
    %2032 = vmatpush2.msra.mxu0 0.0
    %2033 = vmatprep.subr.mxu0 0.0
    %2034 = vmatpush2.msra.mxu0 0.0
    %2035 = vmatprep.subr.mxu0 0.0
    %2036 = vmatpush2.msra.mxu0 0.0
    %2037 = vmatprep.subr.mxu0 0.0
    %2038 = vmatpush2.msra.mxu0 0.0
    %2039 = vmatprep.mubr.f32.mxu0 0.0
    %2040 = vmatmul.mubr.f32.gmra.mxu0 %v1969
    %v2041 = vpop.f32.mrf.mxu0
    %v2042 = vadd.f32 %v81, %v2041
    %v2043 = vpop.f32.mrf.mxu0
    %2044 = vmatprep.mubr.f32.mxu0 0.0
    %2045 = vmatmul.mubr.f32.gmra.mxu0 %v1971
    %v2046 = vpop.f32.mrf.mxu0
    %v2047 = vadd.f32 %v81, %v2046
    %v2048 = vpop.f32.mrf.mxu0
    %2049 = vmatprep.mubr.f32.mxu0 0.0
    %2050 = vmatmul.mubr.f32.gmra.mxu0 %v1973
    %v2051 = vpop.f32.mrf.mxu0
    %v2052 = vadd.f32 %v81, %v2051
    %v2053 = vpop.f32.mrf.mxu0
    %2054 = vdwg.mxu0
    %v2055 = vmax.f32 %v2042, 0.0
    %v2056 = vmax.f32 %v2047, 0.0
    %v2057 = vmax.f32 %v2052, 0.0
    %v2058 = vmul.f32 %v2055, %v39
    %v2059 = vmul.f32 %v2056, %v40
    %v2060 = vmul.f32 %v2057, %v41
    %2061 = vmatprep.subr.mxu0 0.0
    %2062 = vmatpush1.msra.mxu0 0.0
    %2063 = vmatprep.subr.mxu0 0.0
    %2064 = vmatpush1.msra.mxu0 0.0
    %2065 = vmatprep.subr.mxu0 0.0
    %2066 = vmatpush1.msra.mxu0 0.0
    %2067 = vmatprep.subr.mxu0 0.0
    %2068 = vmatpush1.msra.mxu0 0.0
    %2069 = vmatprep.subr.mxu0 0.0
    %2070 = vmatpush1.msra.mxu0 0.0
    %2071 = vmatprep.subr.mxu0 0.0
    %2072 = vmatpush1.msra.mxu0 0.0
    %2073 = vmatprep.subr.mxu0 0.0
    %2074 = vmatpush1.msra.mxu0 0.0
    %2075 = vmatprep.subr.mxu0 0.0
    %2076 = vmatpush1.msra.mxu0 0.0
    %2077 = vmatprep.subr.mxu0 0.0
    %2078 = vmatpush1.msra.mxu0 0.0
    %2079 = vmatprep.subr.mxu0 0.0
    %2080 = vmatpush1.msra.mxu0 0.0
    %2081 = vmatprep.subr.mxu0 0.0
    %2082 = vmatpush1.msra.mxu0 0.0
    %2083 = vmatprep.subr.mxu0 0.0
    %2084 = vmatpush1.msra.mxu0 0.0
    %2085 = vmatprep.subr.mxu0 0.0
    %2086 = vmatpush1.msra.mxu0 0.0
    %2087 = vmatprep.subr.mxu0 0.0
    %2088 = vmatpush1.msra.mxu0 %v2060
    %2089 = vmatprep.subr.mxu0 0.0
    %2090 = vmatpush1.msra.mxu0 %v2059
    %2091 = vmatprep.subr.mxu0 0.0
    %2092 = vmatpush1.msra.mxu0 %v2058
    %2093 = vmatprep.subr.mxu0 0.0
    %2094 = vmatpush2.msra.mxu0 0.0
    %2095 = vmatprep.subr.mxu0 0.0
    %2096 = vmatpush2.msra.mxu0 0.0
    %2097 = vmatprep.subr.mxu0 0.0
    %2098 = vmatpush2.msra.mxu0 0.0
    %2099 = vmatprep.subr.mxu0 0.0
    %2100 = vmatpush2.msra.mxu0 0.0
    %2101 = vmatprep.subr.mxu0 0.0
    %2102 = vmatpush2.msra.mxu0 0.0
    %2103 = vmatprep.subr.mxu0 0.0
    %2104 = vmatpush2.msra.mxu0 0.0
    %2105 = vmatprep.subr.mxu0 0.0
    %2106 = vmatpush2.msra.mxu0 0.0
    %2107 = vmatprep.subr.mxu0 0.0
    %2108 = vmatpush2.msra.mxu0 0.0
    %2109 = vmatprep.subr.mxu0 0.0
    %2110 = vmatpush2.msra.mxu0 0.0
    %2111 = vmatprep.subr.mxu0 0.0
    %2112 = vmatpush2.msra.mxu0 0.0
    %2113 = vmatprep.subr.mxu0 0.0
    %2114 = vmatpush2.msra.mxu0 0.0
    %2115 = vmatprep.subr.mxu0 0.0
    %2116 = vmatpush2.msra.mxu0 0.0
    %2117 = vmatprep.subr.mxu0 0.0
    %2118 = vmatpush2.msra.mxu0 0.0
    %2119 = vmatprep.subr.mxu0 0.0
    %2120 = vmatpush2.msra.mxu0 0.0
    %2121 = vmatprep.subr.mxu0 0.0
    %2122 = vmatpush2.msra.mxu0 0.0
    %2123 = vmatprep.subr.mxu0 0.0
    %2124 = vmatpush2.msra.mxu0 0.0
    %2125 = vmatprep.mubr.f32.mxu0 0.0
    %2126 = vmatmul.mubr.f32.gmra.mxu0 %v1247
    %v2127 = vpop.f32.mrf.mxu0
    %v2128 = vadd.f32 0.0, %v2127
    %v2129 = vpop.f32.mrf.mxu0
    %2130 = vmatprep.mubr.f32.mxu0 0.0
    %2131 = vmatmul.mubr.f32.gmra.mxu0 %v1250
    %v2132 = vpop.f32.mrf.mxu0
    %v2133 = vadd.f32 0.0, %v2132
    %v2134 = vpop.f32.mrf.mxu0
    %2135 = vdwg.mxu0
    %v2137 = vsel %vm98, %v2128, 0
    %v2140 = vsel %vm98, %v2133, 0
    %2142 = vmatprep.subr.mxu0 0.0
    %2143 = vmatpush1.msra.mxu0 0.0
    %2144 = vmatprep.subr.mxu0 0.0
    %2145 = vmatpush1.msra.mxu0 0.0
    %2146 = vmatprep.subr.mxu0 0.0
    %2147 = vmatpush1.msra.mxu0 0.0
    %2148 = vmatprep.subr.mxu0 0.0
    %2149 = vmatpush1.msra.mxu0 0.0
    %2150 = vmatprep.subr.mxu0 0.0
    %2151 = vmatpush1.msra.mxu0 0.0
    %2152 = vmatprep.subr.mxu0 0.0
    %2153 = vmatpush1.msra.mxu0 0.0
    %2154 = vmatprep.subr.mxu0 0.0
    %2155 = vmatpush1.msra.mxu0 0.0
    %2156 = vmatprep.subr.mxu0 0.0
    %2157 = vmatpush1.msra.mxu0 0.0
    %2158 = vmatprep.subr.mxu0 0.0
    %2159 = vmatpush1.msra.mxu0 0.0
    %2160 = vmatprep.subr.mxu0 0.0
    %2161 = vmatpush1.msra.mxu0 0.0
    %2162 = vmatprep.subr.mxu0 0.0
    %2163 = vmatpush1.msra.mxu0 0.0
    %2164 = vmatprep.subr.mxu0 0.0
    %2165 = vmatpush1.msra.mxu0 0.0
    %2166 = vmatprep.subr.mxu0 0.0
    %2167 = vmatpush1.msra.mxu0 %v61
    %2168 = vmatprep.subr.mxu0 0.0
    %2169 = vmatpush1.msra.mxu0 %v60
    %2170 = vmatprep.subr.mxu0 0.0
    %2171 = vmatpush1.msra.mxu0 %v59
    %2172 = vmatprep.subr.mxu0 0.0
    %2173 = vmatpush1.msra.mxu0 %v58
    %2174 = vmatprep.subr.mxu0 0.0
    %2175 = vmatpush2.msra.mxu0 0.0
    %2176 = vmatprep.subr.mxu0 0.0
    %2177 = vmatpush2.msra.mxu0 0.0
    %2178 = vmatprep.subr.mxu0 0.0
    %2179 = vmatpush2.msra.mxu0 0.0
    %2180 = vmatprep.subr.mxu0 0.0
    %2181 = vmatpush2.msra.mxu0 0.0
    %2182 = vmatprep.subr.mxu0 0.0
    %2183 = vmatpush2.msra.mxu0 0.0
    %2184 = vmatprep.subr.mxu0 0.0
    %2185 = vmatpush2.msra.mxu0 0.0
    %2186 = vmatprep.subr.mxu0 0.0
    %2187 = vmatpush2.msra.mxu0 0.0
    %2188 = vmatprep.subr.mxu0 0.0
    %2189 = vmatpush2.msra.mxu0 0.0
    %2190 = vmatprep.subr.mxu0 0.0
    %2191 = vmatpush2.msra.mxu0 0.0
    %2192 = vmatprep.subr.mxu0 0.0
    %2193 = vmatpush2.msra.mxu0 0.0
    %2194 = vmatprep.subr.mxu0 0.0
    %2195 = vmatpush2.msra.mxu0 0.0
    %2196 = vmatprep.subr.mxu0 0.0
    %2197 = vmatpush2.msra.mxu0 0.0
    %2198 = vmatprep.subr.mxu0 0.0
    %2199 = vmatpush2.msra.mxu0 0.0
    %2200 = vmatprep.subr.mxu0 0.0
    %2201 = vmatpush2.msra.mxu0 0.0
    %2202 = vmatprep.subr.mxu0 0.0
    %2203 = vmatpush2.msra.mxu0 0.0
    %2204 = vmatprep.subr.mxu0 0.0
    %2205 = vmatpush2.msra.mxu0 0.0
    %2206 = vmatprep.mubr.f32.mxu0 0.0
    %2207 = vmatmul.mubr.f32.gmra.mxu0 %v2137
    %v2208 = vpop.f32.mrf.mxu0
    %v2209 = vadd.f32 %v86, %v2208
    %v2210 = vpop.f32.mrf.mxu0
    %2211 = vmatprep.mubr.f32.mxu0 0.0
    %2212 = vmatmul.mubr.f32.gmra.mxu0 %v2140
    %v2213 = vpop.f32.mrf.mxu0
    %v2214 = vadd.f32 %v86, %v2213
    %v2215 = vpop.f32.mrf.mxu0
    %2216 = vdwg.mxu0
    %v2217 = vmax.f32 %v2209, 0.0
    %v2218 = vmax.f32 %v2214, 0.0
    %v2220 = vsel %vm387, %v2217, 0
    %v2223 = vsel %vm387, %v2218, 0
    %2225 = vmatprep.subr.mxu0 0.0
    %2226 = vmatpush1.msra.mxu0 0.0
    %2227 = vmatprep.subr.mxu0 0.0
    %2228 = vmatpush1.msra.mxu0 0.0
    %2229 = vmatprep.subr.mxu0 0.0
    %2230 = vmatpush1.msra.mxu0 0.0
    %2231 = vmatprep.subr.mxu0 0.0
    %2232 = vmatpush1.msra.mxu0 0.0
    %2233 = vmatprep.subr.mxu0 0.0
    %2234 = vmatpush1.msra.mxu0 0.0
    %2235 = vmatprep.subr.mxu0 0.0
    %2236 = vmatpush1.msra.mxu0 0.0
    %2237 = vmatprep.subr.mxu0 0.0
    %2238 = vmatpush1.msra.mxu0 0.0
    %2239 = vmatprep.subr.mxu0 0.0
    %2240 = vmatpush1.msra.mxu0 0.0
    %2241 = vmatprep.subr.mxu0 0.0
    %2242 = vmatpush1.msra.mxu0 0.0
    %2243 = vmatprep.subr.mxu0 0.0
    %2244 = vmatpush1.msra.mxu0 0.0
    %2245 = vmatprep.subr.mxu0 0.0
    %2246 = vmatpush1.msra.mxu0 0.0
    %2247 = vmatprep.subr.mxu0 0.0
    %2248 = vmatpush1.msra.mxu0 0.0
    %2249 = vmatprep.subr.mxu0 0.0
    %2250 = vmatpush1.msra.mxu0 0.0
    %2251 = vmatprep.subr.mxu0 0.0
    %2252 = vmatpush1.msra.mxu0 0.0
    %2253 = vmatprep.subr.mxu0 0.0
    %2254 = vmatpush1.msra.mxu0 %v43
    %2255 = vmatprep.subr.mxu0 0.0
    %2256 = vmatpush1.msra.mxu0 %v42
    %2257 = vmatprep.subr.mxu0 0.0
    %2258 = vmatpush2.msra.mxu0 0.0
    %2259 = vmatprep.subr.mxu0 0.0
    %2260 = vmatpush2.msra.mxu0 0.0
    %2261 = vmatprep.subr.mxu0 0.0
    %2262 = vmatpush2.msra.mxu0 0.0
    %2263 = vmatprep.subr.mxu0 0.0
    %2264 = vmatpush2.msra.mxu0 0.0
    %2265 = vmatprep.subr.mxu0 0.0
    %2266 = vmatpush2.msra.mxu0 0.0
    %2267 = vmatprep.subr.mxu0 0.0
    %2268 = vmatpush2.msra.mxu0 0.0
    %2269 = vmatprep.subr.mxu0 0.0
    %2270 = vmatpush2.msra.mxu0 0.0
    %2271 = vmatprep.subr.mxu0 0.0
    %2272 = vmatpush2.msra.mxu0 0.0
    %2273 = vmatprep.subr.mxu0 0.0
    %2274 = vmatpush2.msra.mxu0 0.0
    %2275 = vmatprep.subr.mxu0 0.0
    %2276 = vmatpush2.msra.mxu0 0.0
    %2277 = vmatprep.subr.mxu0 0.0
    %2278 = vmatpush2.msra.mxu0 0.0
    %2279 = vmatprep.subr.mxu0 0.0
    %2280 = vmatpush2.msra.mxu0 0.0
    %2281 = vmatprep.subr.mxu0 0.0
    %2282 = vmatpush2.msra.mxu0 0.0
    %2283 = vmatprep.subr.mxu0 0.0
    %2284 = vmatpush2.msra.mxu0 0.0
    %2285 = vmatprep.subr.mxu0 0.0
    %2286 = vmatpush2.msra.mxu0 0.0
    %2287 = vmatprep.subr.mxu0 0.0
    %2288 = vmatpush2.msra.mxu0 0.0
    %2289 = vmatprep.mubr.f32.mxu0 0.0
    %2290 = vmatmul.mubr.f32.gmra.mxu0 %v2220
    %v2291 = vpop.f32.mrf.mxu0
    %v2292 = vadd.f32 0.0, %v2291
    %v2293 = vpop.f32.mrf.mxu0
    %2294 = vmatprep.mubr.f32.mxu0 0.0
    %2295 = vmatmul.mubr.f32.gmra.mxu0 %v2223
    %v2296 = vpop.f32.mrf.mxu0
    %v2297 = vadd.f32 0.0, %v2296
    %v2298 = vpop.f32.mrf.mxu0
    %2299 = vdwg.mxu0
    %2300 = vmatprep.subr.mxu0 0.0
    %2301 = vmatpush1.msra.mxu0 0.0
    %2302 = vmatprep.subr.mxu0 0.0
    %2303 = vmatpush1.msra.mxu0 0.0
    %2304 = vmatprep.subr.mxu0 0.0
    %2305 = vmatpush1.msra.mxu0 0.0
    %2306 = vmatprep.subr.mxu0 0.0
    %2307 = vmatpush1.msra.mxu0 0.0
    %2308 = vmatprep.subr.mxu0 0.0
    %2309 = vmatpush1.msra.mxu0 0.0
    %2310 = vmatprep.subr.mxu0 0.0
    %2311 = vmatpush1.msra.mxu0 0.0
    %2312 = vmatprep.subr.mxu0 0.0
    %2313 = vmatpush1.msra.mxu0 0.0
    %2314 = vmatprep.subr.mxu0 0.0
    %2315 = vmatpush1.msra.mxu0 0.0
    %2316 = vmatprep.subr.mxu0 0.0
    %2317 = vmatpush1.msra.mxu0 0.0
    %2318 = vmatprep.subr.mxu0 0.0
    %2319 = vmatpush1.msra.mxu0 0.0
    %2320 = vmatprep.subr.mxu0 0.0
    %2321 = vmatpush1.msra.mxu0 0.0
    %2322 = vmatprep.subr.mxu0 0.0
    %2323 = vmatpush1.msra.mxu0 0.0
    %2324 = vmatprep.subr.mxu0 0.0
    %2325 = vmatpush1.msra.mxu0 0.0
    %2326 = vmatprep.subr.mxu0 0.0
    %2327 = vmatpush1.msra.mxu0 0.0
    %2328 = vmatprep.subr.mxu0 0.0
    %2329 = vmatpush1.msra.mxu0 %v2297
    %2330 = vmatprep.subr.mxu0 0.0
    %2331 = vmatpush1.msra.mxu0 %v2292
    %2332 = vmatprep.subr.mxu0 0.0
    %2333 = vmatpush2.msra.mxu0 0.0
    %2334 = vmatprep.subr.mxu0 0.0
    %2335 = vmatpush2.msra.mxu0 0.0
    %2336 = vmatprep.subr.mxu0 0.0
    %2337 = vmatpush2.msra.mxu0 0.0
    %2338 = vmatprep.subr.mxu0 0.0
    %2339 = vmatpush2.msra.mxu0 0.0
    %2340 = vmatprep.subr.mxu0 0.0
    %2341 = vmatpush2.msra.mxu0 0.0
    %2342 = vmatprep.subr.mxu0 0.0
    %2343 = vmatpush2.msra.mxu0 0.0
    %2344 = vmatprep.subr.mxu0 0.0
    %2345 = vmatpush2.msra.mxu0 0.0
    %2346 = vmatprep.subr.mxu0 0.0
    %2347 = vmatpush2.msra.mxu0 0.0
    %2348 = vmatprep.subr.mxu0 0.0
    %2349 = vmatpush2.msra.mxu0 0.0
    %2350 = vmatprep.subr.mxu0 0.0
    %2351 = vmatpush2.msra.mxu0 0.0
    %2352 = vmatprep.subr.mxu0 0.0
    %2353 = vmatpush2.msra.mxu0 0.0
    %2354 = vmatprep.subr.mxu0 0.0
    %2355 = vmatpush2.msra.mxu0 0.0
    %2356 = vmatprep.subr.mxu0 0.0
    %2357 = vmatpush2.msra.mxu0 0.0
    %2358 = vmatprep.subr.mxu0 0.0
    %2359 = vmatpush2.msra.mxu0 0.0
    %2360 = vmatprep.subr.mxu0 0.0
    %2361 = vmatpush2.msra.mxu0 0.0
    %2362 = vmatprep.subr.mxu0 0.0
    %2363 = vmatpush2.msra.mxu0 0.0
    %2364 = vmatprep.mubr.f32.mxu0 0.0
    %2365 = vmatmul.mubr.f32.gmra.mxu0 %v653
    %v2366 = vpop.f32.mrf.mxu0
    %v2367 = vadd.f32 0.0, %v2366
    %v2368 = vpop.f32.mrf.mxu0
    %2369 = vmatprep.mubr.f32.mxu0 0.0
    %2370 = vmatmul.mubr.f32.gmra.mxu0 %v656
    %v2371 = vpop.f32.mrf.mxu0
    %v2372 = vadd.f32 0.0, %v2371
    %v2373 = vpop.f32.mrf.mxu0
    %2374 = vmatprep.mubr.f32.mxu0 0.0
    %2375 = vmatmul.mubr.f32.gmra.mxu0 %v659
    %v2376 = vpop.f32.mrf.mxu0
    %v2377 = vadd.f32 0.0, %v2376
    %v2378 = vpop.f32.mrf.mxu0
    %2379 = vdwg.mxu0
    %2380 = vmatprep.subr.mxu0 0.0
    %2381 = vmatpush1.msra.mxu0 0.0
    %2382 = vmatprep.subr.mxu0 0.0
    %2383 = vmatpush1.msra.mxu0 0.0
    %2384 = vmatprep.subr.mxu0 0.0
    %2385 = vmatpush1.msra.mxu0 0.0
    %2386 = vmatprep.subr.mxu0 0.0
    %2387 = vmatpush1.msra.mxu0 0.0
    %2388 = vmatprep.subr.mxu0 0.0
    %2389 = vmatpush1.msra.mxu0 0.0
    %2390 = vmatprep.subr.mxu0 0.0
    %2391 = vmatpush1.msra.mxu0 0.0
    %2392 = vmatprep.subr.mxu0 0.0
    %2393 = vmatpush1.msra.mxu0 0.0
    %2394 = vmatprep.subr.mxu0 0.0
    %2395 = vmatpush1.msra.mxu0 0.0
    %2396 = vmatprep.subr.mxu0 0.0
    %2397 = vmatpush1.msra.mxu0 0.0
    %2398 = vmatprep.subr.mxu0 0.0
    %2399 = vmatpush1.msra.mxu0 0.0
    %2400 = vmatprep.subr.mxu0 0.0
    %2401 = vmatpush1.msra.mxu0 0.0
    %2402 = vmatprep.subr.mxu0 0.0
    %2403 = vmatpush1.msra.mxu0 0.0
    %2404 = vmatprep.subr.mxu0 0.0
    %2405 = vmatpush1.msra.mxu0 0.0
    %2406 = vmatprep.subr.mxu0 0.0
    %2407 = vmatpush1.msra.mxu0 0.0
    %2408 = vmatprep.subr.mxu0 0.0
    %2409 = vmatpush1.msra.mxu0 %v2297
    %2410 = vmatprep.subr.mxu0 0.0
    %2411 = vmatpush1.msra.mxu0 %v2292
    %2412 = vmatprep.subr.mxu0 0.0
    %2413 = vmatpush2.msra.mxu0 0.0
    %2414 = vmatprep.subr.mxu0 0.0
    %2415 = vmatpush2.msra.mxu0 0.0
    %2416 = vmatprep.subr.mxu0 0.0
    %2417 = vmatpush2.msra.mxu0 0.0
    %2418 = vmatprep.subr.mxu0 0.0
    %2419 = vmatpush2.msra.mxu0 0.0
    %2420 = vmatprep.subr.mxu0 0.0
    %2421 = vmatpush2.msra.mxu0 0.0
    %2422 = vmatprep.subr.mxu0 0.0
    %2423 = vmatpush2.msra.mxu0 0.0
    %2424 = vmatprep.subr.mxu0 0.0
    %2425 = vmatpush2.msra.mxu0 0.0
    %2426 = vmatprep.subr.mxu0 0.0
    %2427 = vmatpush2.msra.mxu0 0.0
    %2428 = vmatprep.subr.mxu0 0.0
    %2429 = vmatpush2.msra.mxu0 0.0
    %2430 = vmatprep.subr.mxu0 0.0
    %2431 = vmatpush2.msra.mxu0 0.0
    %2432 = vmatprep.subr.mxu0 0.0
    %2433 = vmatpush2.msra.mxu0 0.0
    %2434 = vmatprep.subr.mxu0 0.0
    %2435 = vmatpush2.msra.mxu0 0.0
    %2436 = vmatprep.subr.mxu0 0.0
    %2437 = vmatpush2.msra.mxu0 0.0
    %2438 = vmatprep.subr.mxu0 0.0
    %2439 = vmatpush2.msra.mxu0 0.0
    %2440 = vmatprep.subr.mxu0 0.0
    %2441 = vmatpush2.msra.mxu0 0.0
    %2442 = vmatprep.subr.mxu0 0.0
    %2443 = vmatpush2.msra.mxu0 0.0
    %2444 = vmatprep.mubr.f32.mxu0 0.0
    %2445 = vmatmul.mubr.f32.gmra.mxu0 %v742
    %v2446 = vpop.f32.mrf.mxu0
    %v2447 = vadd.f32 0.0, %v2446
    %v2448 = vpop.f32.mrf.mxu0
    %2449 = vmatprep.mubr.f32.mxu0 0.0
    %2450 = vmatmul.mubr.f32.gmra.mxu0 %v745
    %v2451 = vpop.f32.mrf.mxu0
    %v2452 = vadd.f32 0.0, %v2451
    %v2453 = vpop.f32.mrf.mxu0
    %2454 = vmatprep.mubr.f32.mxu0 0.0
    %2455 = vmatmul.mubr.f32.gmra.mxu0 %v748
    %v2456 = vpop.f32.mrf.mxu0
    %v2457 = vadd.f32 0.0, %v2456
    %v2458 = vpop.f32.mrf.mxu0
    %2459 = vdwg.mxu0
    %2463 = vrot.lane.b32.xlu0 %v2447, 96
    %v2464 = vpop.permute.xlu0 %2463
    %2465 = vrot.lane.b32.xlu0 %v2452, 96
    %v2466 = vpop.permute.xlu0 %2465
    %2467 = vrot.lane.b32.xlu0 %v2457, 96
    %v2468 = vpop.permute.xlu0 %2467
    %v2472 = vadd.f32 %v2367, %v2464
    %v2473 = vadd.f32 %v2372, %v2466
    %v2474 = vadd.f32 %v2377, %v2468
    %v2475 = vadd.f32 %v2472, %v558
    %v2476 = vadd.f32 %v2473, %v563
    %v2477 = vadd.f32 %v2474, %v568
    %2478 = vmatprep.subr.mxu0 0.0
    %2479 = vmatpush1.msra.mxu0 0.0
    %2480 = vmatprep.subr.mxu0 0.0
    %2481 = vmatpush1.msra.mxu0 0.0
    %2482 = vmatprep.subr.mxu0 0.0
    %2483 = vmatpush1.msra.mxu0 0.0
    %2484 = vmatprep.subr.mxu0 0.0
    %2485 = vmatpush1.msra.mxu0 0.0
    %2486 = vmatprep.subr.mxu0 0.0
    %2487 = vmatpush1.msra.mxu0 0.0
    %2488 = vmatprep.subr.mxu0 0.0
    %2489 = vmatpush1.msra.mxu0 0.0
    %2490 = vmatprep.subr.mxu0 0.0
    %2491 = vmatpush1.msra.mxu0 0.0
    %2492 = vmatprep.subr.mxu0 0.0
    %2493 = vmatpush1.msra.mxu0 0.0
    %2494 = vmatprep.subr.mxu0 0.0
    %2495 = vmatpush1.msra.mxu0 0.0
    %2496 = vmatprep.subr.mxu0 0.0
    %2497 = vmatpush1.msra.mxu0 0.0
    %2498 = vmatprep.subr.mxu0 0.0
    %2499 = vmatpush1.msra.mxu0 0.0
    %2500 = vmatprep.subr.mxu0 0.0
    %2501 = vmatpush1.msra.mxu0 0.0
    %2502 = vmatprep.subr.mxu0 0.0
    %2503 = vmatpush1.msra.mxu0 0.0
    %2504 = vmatprep.subr.mxu0 0.0
    %2505 = vmatpush1.msra.mxu0 0.0
    %2506 = vmatprep.subr.mxu0 0.0
    %2507 = vmatpush1.msra.mxu0 0.0
    %2508 = vmatprep.subr.mxu0 0.0
    %2509 = vmatpush1.msra.mxu0 %v44
    %2510 = vmatprep.subr.mxu0 0.0
    %2511 = vmatpush2.msra.mxu0 0.0
    %2512 = vmatprep.subr.mxu0 0.0
    %2513 = vmatpush2.msra.mxu0 0.0
    %2514 = vmatprep.subr.mxu0 0.0
    %2515 = vmatpush2.msra.mxu0 0.0
    %2516 = vmatprep.subr.mxu0 0.0
    %2517 = vmatpush2.msra.mxu0 0.0
    %2518 = vmatprep.subr.mxu0 0.0
    %2519 = vmatpush2.msra.mxu0 0.0
    %2520 = vmatprep.subr.mxu0 0.0
    %2521 = vmatpush2.msra.mxu0 0.0
    %2522 = vmatprep.subr.mxu0 0.0
    %2523 = vmatpush2.msra.mxu0 0.0
    %2524 = vmatprep.subr.mxu0 0.0
    %2525 = vmatpush2.msra.mxu0 0.0
    %2526 = vmatprep.subr.mxu0 0.0
    %2527 = vmatpush2.msra.mxu0 0.0
    %2528 = vmatprep.subr.mxu0 0.0
    %2529 = vmatpush2.msra.mxu0 0.0
    %2530 = vmatprep.subr.mxu0 0.0
    %2531 = vmatpush2.msra.mxu0 0.0
    %2532 = vmatprep.subr.mxu0 0.0
    %2533 = vmatpush2.msra.mxu0 0.0
    %2534 = vmatprep.subr.mxu0 0.0
    %2535 = vmatpush2.msra.mxu0 0.0
    %2536 = vmatprep.subr.mxu0 0.0
    %2537 = vmatpush2.msra.mxu0 0.0
    %2538 = vmatprep.subr.mxu0 0.0
    %2539 = vmatpush2.msra.mxu0 0.0
    %2540 = vmatprep.subr.mxu0 0.0
    %2541 = vmatpush2.msra.mxu0 0.0
    %2542 = vmatprep.mubr.f32.mxu0 0.0
    %2543 = vmatmul.mubr.f32.gmra.mxu0 %v1851
    %v2544 = vpop.f32.mrf.mxu0
    %v2545 = vadd.f32 0.0, %v2544
    %v2546 = vpop.f32.mrf.mxu0
    %2547 = vmatprep.mubr.f32.mxu0 0.0
    %2548 = vmatmul.mubr.f32.gmra.mxu0 %v1854
    %v2549 = vpop.f32.mrf.mxu0
    %v2550 = vadd.f32 0.0, %v2549
    %v2551 = vpop.f32.mrf.mxu0
    %2552 = vmatprep.mubr.f32.mxu0 0.0
    %2553 = vmatmul.mubr.f32.gmra.mxu0 %v1857
    %v2554 = vpop.f32.mrf.mxu0
    %v2555 = vadd.f32 0.0, %v2554
    %v2556 = vpop.f32.mrf.mxu0
    %2557 = vdwg.mxu0
    %v2558 = vadd.f32 %v2475, %v2545
    %v2559 = vadd.f32 %v2476, %v2550
    %v2560 = vadd.f32 %v2477, %v2555
    %v2561 = vadd.f32 %v2558, %v66
    %v2562 = vadd.f32 %v2559, %v66
    %v2563 = vadd.f32 %v2560, %v66
    %v2564 = vmax.f32 %v2561, 0.0
    %v2565 = vmax.f32 %v2562, 0.0
    %v2566 = vmax.f32 %v2563, 0.0
    %v2568 = vsel %vm98, %v2564, 0
    %v2571 = vsel %vm98, %v2565, 0
    %v2574 = vsel %vm98, %v2566, 0
    %2576 = vmatprep.subr.mxu0 0.0
    %2577 = vmatpush1.msra.mxu0 0.0
    %2578 = vmatprep.subr.mxu0 0.0
    %2579 = vmatpush1.msra.mxu0 0.0
    %2580 = vmatprep.subr.mxu0 0.0
    %2581 = vmatpush1.msra.mxu0 0.0
    %2582 = vmatprep.subr.mxu0 0.0
    %2583 = vmatpush1.msra.mxu0 0.0
    %2584 = vmatprep.subr.mxu0 0.0
    %2585 = vmatpush1.msra.mxu0 0.0
    %2586 = vmatprep.subr.mxu0 0.0
    %2587 = vmatpush1.msra.mxu0 0.0
    %2588 = vmatprep.subr.mxu0 0.0
    %2589 = vmatpush1.msra.mxu0 0.0
    %2590 = vmatprep.subr.mxu0 0.0
    %2591 = vmatpush1.msra.mxu0 0.0
    %2592 = vmatprep.subr.mxu0 0.0
    %2593 = vmatpush1.msra.mxu0 0.0
    %2594 = vmatprep.subr.mxu0 0.0
    %2595 = vmatpush1.msra.mxu0 0.0
    %2596 = vmatprep.subr.mxu0 0.0
    %2597 = vmatpush1.msra.mxu0 0.0
    %2598 = vmatprep.subr.mxu0 0.0
    %2599 = vmatpush1.msra.mxu0 0.0
    %2600 = vmatprep.subr.mxu0 0.0
    %2601 = vmatpush1.msra.mxu0 %v48
    %2602 = vmatprep.subr.mxu0 0.0
    %2603 = vmatpush1.msra.mxu0 %v47
    %2604 = vmatprep.subr.mxu0 0.0
    %2605 = vmatpush1.msra.mxu0 %v46
    %2606 = vmatprep.subr.mxu0 0.0
    %2607 = vmatpush1.msra.mxu0 %v45
    %2608 = vmatprep.subr.mxu0 0.0
    %2609 = vmatpush2.msra.mxu0 0.0
    %2610 = vmatprep.subr.mxu0 0.0
    %2611 = vmatpush2.msra.mxu0 0.0
    %2612 = vmatprep.subr.mxu0 0.0
    %2613 = vmatpush2.msra.mxu0 0.0
    %2614 = vmatprep.subr.mxu0 0.0
    %2615 = vmatpush2.msra.mxu0 0.0
    %2616 = vmatprep.subr.mxu0 0.0
    %2617 = vmatpush2.msra.mxu0 0.0
    %2618 = vmatprep.subr.mxu0 0.0
    %2619 = vmatpush2.msra.mxu0 0.0
    %2620 = vmatprep.subr.mxu0 0.0
    %2621 = vmatpush2.msra.mxu0 0.0
    %2622 = vmatprep.subr.mxu0 0.0
    %2623 = vmatpush2.msra.mxu0 0.0
    %2624 = vmatprep.subr.mxu0 0.0
    %2625 = vmatpush2.msra.mxu0 0.0
    %2626 = vmatprep.subr.mxu0 0.0
    %2627 = vmatpush2.msra.mxu0 0.0
    %2628 = vmatprep.subr.mxu0 0.0
    %2629 = vmatpush2.msra.mxu0 0.0
    %2630 = vmatprep.subr.mxu0 0.0
    %2631 = vmatpush2.msra.mxu0 0.0
    %2632 = vmatprep.subr.mxu0 0.0
    %2633 = vmatpush2.msra.mxu0 0.0
    %2634 = vmatprep.subr.mxu0 0.0
    %2635 = vmatpush2.msra.mxu0 0.0
    %2636 = vmatprep.subr.mxu0 0.0
    %2637 = vmatpush2.msra.mxu0 0.0
    %2638 = vmatprep.subr.mxu0 0.0
    %2639 = vmatpush2.msra.mxu0 0.0
    %2640 = vmatprep.mubr.f32.mxu0 0.0
    %2641 = vmatmul.mubr.f32.gmra.mxu0 %v2568
    %v2642 = vpop.f32.mrf.mxu0
    %v2643 = vadd.f32 %v71, %v2642
    %v2644 = vpop.f32.mrf.mxu0
    %2645 = vmatprep.mubr.f32.mxu0 0.0
    %2646 = vmatmul.mubr.f32.gmra.mxu0 %v2571
    %v2647 = vpop.f32.mrf.mxu0
    %v2648 = vadd.f32 %v71, %v2647
    %v2649 = vpop.f32.mrf.mxu0
    %2650 = vmatprep.mubr.f32.mxu0 0.0
    %2651 = vmatmul.mubr.f32.gmra.mxu0 %v2574
    %v2652 = vpop.f32.mrf.mxu0
    %v2653 = vadd.f32 %v71, %v2652
    %v2654 = vpop.f32.mrf.mxu0
    %2655 = vdwg.mxu0
    %v2656 = vmax.f32 %v2643, 0.0
    %v2657 = vmax.f32 %v2648, 0.0
    %v2658 = vmax.f32 %v2653, 0.0
    %v2660 = vsel %vm481, %v2656, 0
    %v2663 = vsel %vm481, %v2657, 0
    %v2666 = vsel %vm481, %v2658, 0
    %2668 = vmatprep.subr.mxu0 0.0
    %2669 = vmatpush1.msra.mxu0 0.0
    %2670 = vmatprep.subr.mxu0 0.0
    %2671 = vmatpush1.msra.mxu0 0.0
    %2672 = vmatprep.subr.mxu0 0.0
    %2673 = vmatpush1.msra.mxu0 0.0
    %2674 = vmatprep.subr.mxu0 0.0
    %2675 = vmatpush1.msra.mxu0 0.0
    %2676 = vmatprep.subr.mxu0 0.0
    %2677 = vmatpush1.msra.mxu0 0.0
    %2678 = vmatprep.subr.mxu0 0.0
    %2679 = vmatpush1.msra.mxu0 0.0
    %2680 = vmatprep.subr.mxu0 0.0
    %2681 = vmatpush1.msra.mxu0 0.0
    %2682 = vmatprep.subr.mxu0 0.0
    %2683 = vmatpush1.msra.mxu0 0.0
    %2684 = vmatprep.subr.mxu0 0.0
    %2685 = vmatpush1.msra.mxu0 0.0
    %2686 = vmatprep.subr.mxu0 0.0
    %2687 = vmatpush1.msra.mxu0 0.0
    %2688 = vmatprep.subr.mxu0 0.0
    %2689 = vmatpush1.msra.mxu0 0.0
    %2690 = vmatprep.subr.mxu0 0.0
    %2691 = vmatpush1.msra.mxu0 0.0
    %2692 = vmatprep.subr.mxu0 0.0
    %2693 = vmatpush1.msra.mxu0 0.0
    %2694 = vmatprep.subr.mxu0 0.0
    %2695 = vmatpush1.msra.mxu0 0.0
    %2696 = vmatprep.subr.mxu0 0.0
    %2697 = vmatpush1.msra.mxu0 0.0
    %2698 = vmatprep.subr.mxu0 0.0
    %2699 = vmatpush1.msra.mxu0 %v49
    %2700 = vmatprep.subr.mxu0 0.0
    %2701 = vmatpush2.msra.mxu0 0.0
    %2702 = vmatprep.subr.mxu0 0.0
    %2703 = vmatpush2.msra.mxu0 0.0
    %2704 = vmatprep.subr.mxu0 0.0
    %2705 = vmatpush2.msra.mxu0 0.0
    %2706 = vmatprep.subr.mxu0 0.0
    %2707 = vmatpush2.msra.mxu0 0.0
    %2708 = vmatprep.subr.mxu0 0.0
    %2709 = vmatpush2.msra.mxu0 0.0
    %2710 = vmatprep.subr.mxu0 0.0
    %2711 = vmatpush2.msra.mxu0 0.0
    %2712 = vmatprep.subr.mxu0 0.0
    %2713 = vmatpush2.msra.mxu0 0.0
    %2714 = vmatprep.subr.mxu0 0.0
    %2715 = vmatpush2.msra.mxu0 0.0
    %2716 = vmatprep.subr.mxu0 0.0
    %2717 = vmatpush2.msra.mxu0 0.0
    %2718 = vmatprep.subr.mxu0 0.0
    %2719 = vmatpush2.msra.mxu0 0.0
    %2720 = vmatprep.subr.mxu0 0.0
    %2721 = vmatpush2.msra.mxu0 0.0
    %2722 = vmatprep.subr.mxu0 0.0
    %2723 = vmatpush2.msra.mxu0 0.0
    %2724 = vmatprep.subr.mxu0 0.0
    %2725 = vmatpush2.msra.mxu0 0.0
    %2726 = vmatprep.subr.mxu0 0.0
    %2727 = vmatpush2.msra.mxu0 0.0
    %2728 = vmatprep.subr.mxu0 0.0
    %2729 = vmatpush2.msra.mxu0 0.0
    %2730 = vmatprep.subr.mxu0 0.0
    %2731 = vmatpush2.msra.mxu0 0.0
    %2732 = vmatprep.mubr.f32.mxu0 0.0
    %2733 = vmatmul.mubr.f32.gmra.mxu0 %v2660
    %v2734 = vpop.f32.mrf.mxu0
    %v2735 = vadd.f32 0.0, %v2734
    %v2736 = vpop.f32.mrf.mxu0
    %2737 = vmatprep.mubr.f32.mxu0 0.0
    %2738 = vmatmul.mubr.f32.gmra.mxu0 %v2663
    %v2739 = vpop.f32.mrf.mxu0
    %v2740 = vadd.f32 0.0, %v2739
    %v2741 = vpop.f32.mrf.mxu0
    %2742 = vmatprep.mubr.f32.mxu0 0.0
    %2743 = vmatmul.mubr.f32.gmra.mxu0 %v2666
    %v2744 = vpop.f32.mrf.mxu0
    %v2745 = vadd.f32 0.0, %v2744
    %v2746 = vpop.f32.mrf.mxu0
    %2747 = vdwg.mxu0
    %2751 = vrot.lane.b32.xlu0 %v2735, 64
    %v2752 = vpop.permute.xlu0 %2751
    %2753 = vrot.lane.b32.xlu0 %v2740, 64
    %v2754 = vpop.permute.xlu0 %2753
    %2755 = vrot.lane.b32.xlu0 %v2745, 64
    %v2756 = vpop.permute.xlu0 %2755
    %v2760 = vadd.f32 %v2447, %v2752
    %v2761 = vadd.f32 %v2452, %v2754
    %v2762 = vadd.f32 %v2457, %v2756
    %v2763 = vadd.f32 %v2760, %v1135
    %v2764 = vadd.f32 %v2761, %v1135
    %v2765 = vadd.f32 %v2762, %v1135
    %v2766 = vmax.f32 %v2763, 0.0
    %v2767 = vmax.f32 %v2764, 0.0
    %v2768 = vmax.f32 %v2765, 0.0
    %2772 = vrot.lane.b32.xlu0 %v2766, 64
    %v2773 = vpop.permute.xlu0 %2772
    %2774 = vrot.lane.b32.xlu0 %v2767, 64
    %v2775 = vpop.permute.xlu0 %2774
    %2776 = vrot.lane.b32.xlu0 %v2768, 64
    %v2777 = vpop.permute.xlu0 %2776
    %v2778 = vsel %vm1152, %v2773, 0
    %v2780 = vsel %vm1152, %v2775, 0
    %v2782 = vsel %vm1152, %v2777, 0
    %2784 = vmatprep.subr.mxu0 0.0
    %2785 = vmatpush1.msra.mxu0 0.0
    %2786 = vmatprep.subr.mxu0 0.0
    %2787 = vmatpush1.msra.mxu0 0.0
    %2788 = vmatprep.subr.mxu0 0.0
    %2789 = vmatpush1.msra.mxu0 0.0
    %2790 = vmatprep.subr.mxu0 0.0
    %2791 = vmatpush1.msra.mxu0 0.0
    %2792 = vmatprep.subr.mxu0 0.0
    %2793 = vmatpush1.msra.mxu0 0.0
    %2794 = vmatprep.subr.mxu0 0.0
    %2795 = vmatpush1.msra.mxu0 0.0
    %2796 = vmatprep.subr.mxu0 0.0
    %2797 = vmatpush1.msra.mxu0 0.0
    %2798 = vmatprep.subr.mxu0 0.0
    %2799 = vmatpush1.msra.mxu0 0.0
    %2800 = vmatprep.subr.mxu0 0.0
    %2801 = vmatpush1.msra.mxu0 %v57
    %2802 = vmatprep.subr.mxu0 0.0
    %2803 = vmatpush1.msra.mxu0 %v56
    %2804 = vmatprep.subr.mxu0 0.0
    %2805 = vmatpush1.msra.mxu0 %v55
    %2806 = vmatprep.subr.mxu0 0.0
    %2807 = vmatpush1.msra.mxu0 %v54
    %2808 = vmatprep.subr.mxu0 0.0
    %2809 = vmatpush1.msra.mxu0 %v53
    %2810 = vmatprep.subr.mxu0 0.0
    %2811 = vmatpush1.msra.mxu0 %v52
    %2812 = vmatprep.subr.mxu0 0.0
    %2813 = vmatpush1.msra.mxu0 %v51
    %2814 = vmatprep.subr.mxu0 0.0
    %2815 = vmatpush1.msra.mxu0 %v50
    %2816 = vmatprep.subr.mxu0 0.0
    %2817 = vmatpush2.msra.mxu0 0.0
    %2818 = vmatprep.subr.mxu0 0.0
    %2819 = vmatpush2.msra.mxu0 0.0
    %2820 = vmatprep.subr.mxu0 0.0
    %2821 = vmatpush2.msra.mxu0 0.0
    %2822 = vmatprep.subr.mxu0 0.0
    %2823 = vmatpush2.msra.mxu0 0.0
    %2824 = vmatprep.subr.mxu0 0.0
    %2825 = vmatpush2.msra.mxu0 0.0
    %2826 = vmatprep.subr.mxu0 0.0
    %2827 = vmatpush2.msra.mxu0 0.0
    %2828 = vmatprep.subr.mxu0 0.0
    %2829 = vmatpush2.msra.mxu0 0.0
    %2830 = vmatprep.subr.mxu0 0.0
    %2831 = vmatpush2.msra.mxu0 0.0
    %2832 = vmatprep.subr.mxu0 0.0
    %2833 = vmatpush2.msra.mxu0 0.0
    %2834 = vmatprep.subr.mxu0 0.0
    %2835 = vmatpush2.msra.mxu0 0.0
    %2836 = vmatprep.subr.mxu0 0.0
    %2837 = vmatpush2.msra.mxu0 0.0
    %2838 = vmatprep.subr.mxu0 0.0
    %2839 = vmatpush2.msra.mxu0 0.0
    %2840 = vmatprep.subr.mxu0 0.0
    %2841 = vmatpush2.msra.mxu0 0.0
    %2842 = vmatprep.subr.mxu0 0.0
    %2843 = vmatpush2.msra.mxu0 0.0
    %2844 = vmatprep.subr.mxu0 0.0
    %2845 = vmatpush2.msra.mxu0 0.0
    %2846 = vmatprep.subr.mxu0 0.0
    %2847 = vmatpush2.msra.mxu0 0.0
    %2848 = vmatprep.mubr.f32.mxu0 0.0
    %2849 = vmatmul.mubr.f32.gmra.mxu0 %v2778
    %v2850 = vpop.f32.mrf.mxu0
    %v2851 = vadd.f32 %v81, %v2850
    %v2852 = vpop.f32.mrf.mxu0
    %2853 = vmatprep.mubr.f32.mxu0 0.0
    %2854 = vmatmul.mubr.f32.gmra.mxu0 %v2780
    %v2855 = vpop.f32.mrf.mxu0
    %v2856 = vadd.f32 %v81, %v2855
    %v2857 = vpop.f32.mrf.mxu0
    %2858 = vmatprep.mubr.f32.mxu0 0.0
    %2859 = vmatmul.mubr.f32.gmra.mxu0 %v2782
    %v2860 = vpop.f32.mrf.mxu0
    %v2861 = vadd.f32 %v81, %v2860
    %v2862 = vpop.f32.mrf.mxu0
    %2863 = vdwg.mxu0
    %v2864 = vmax.f32 %v2851, 0.0
    %v2865 = vmax.f32 %v2856, 0.0
    %v2866 = vmax.f32 %v2861, 0.0
    %v2867 = vmul.f32 %v2864, %v39
    %v2868 = vmul.f32 %v2865, %v40
    %v2869 = vmul.f32 %v2866, %v41
    %2870 = vmatprep.subr.mxu0 0.0
    %2871 = vmatpush1.msra.mxu0 0.0
    %2872 = vmatprep.subr.mxu0 0.0
    %2873 = vmatpush1.msra.mxu0 0.0
    %2874 = vmatprep.subr.mxu0 0.0
    %2875 = vmatpush1.msra.mxu0 0.0
    %2876 = vmatprep.subr.mxu0 0.0
    %2877 = vmatpush1.msra.mxu0 0.0
    %2878 = vmatprep.subr.mxu0 0.0
    %2879 = vmatpush1.msra.mxu0 0.0
    %2880 = vmatprep.subr.mxu0 0.0
    %2881 = vmatpush1.msra.mxu0 0.0
    %2882 = vmatprep.subr.mxu0 0.0
    %2883 = vmatpush1.msra.mxu0 0.0
    %2884 = vmatprep.subr.mxu0 0.0
    %2885 = vmatpush1.msra.mxu0 0.0
    %2886 = vmatprep.subr.mxu0 0.0
    %2887 = vmatpush1.msra.mxu0 0.0
    %2888 = vmatprep.subr.mxu0 0.0
    %2889 = vmatpush1.msra.mxu0 0.0
    %2890 = vmatprep.subr.mxu0 0.0
    %2891 = vmatpush1.msra.mxu0 0.0
    %2892 = vmatprep.subr.mxu0 0.0
    %2893 = vmatpush1.msra.mxu0 0.0
    %2894 = vmatprep.subr.mxu0 0.0
    %2895 = vmatpush1.msra.mxu0 0.0
    %2896 = vmatprep.subr.mxu0 0.0
    %2897 = vmatpush1.msra.mxu0 %v2869
    %2898 = vmatprep.subr.mxu0 0.0
    %2899 = vmatpush1.msra.mxu0 %v2868
    %2900 = vmatprep.subr.mxu0 0.0
    %2901 = vmatpush1.msra.mxu0 %v2867
    %2902 = vmatprep.subr.mxu0 0.0
    %2903 = vmatpush2.msra.mxu0 0.0
    %2904 = vmatprep.subr.mxu0 0.0
    %2905 = vmatpush2.msra.mxu0 0.0
    %2906 = vmatprep.subr.mxu0 0.0
    %2907 = vmatpush2.msra.mxu0 0.0
    %2908 = vmatprep.subr.mxu0 0.0
    %2909 = vmatpush2.msra.mxu0 0.0
    %2910 = vmatprep.subr.mxu0 0.0
    %2911 = vmatpush2.msra.mxu0 0.0
    %2912 = vmatprep.subr.mxu0 0.0
    %2913 = vmatpush2.msra.mxu0 0.0
    %2914 = vmatprep.subr.mxu0 0.0
    %2915 = vmatpush2.msra.mxu0 0.0
    %2916 = vmatprep.subr.mxu0 0.0
    %2917 = vmatpush2.msra.mxu0 0.0
    %2918 = vmatprep.subr.mxu0 0.0
    %2919 = vmatpush2.msra.mxu0 0.0
    %2920 = vmatprep.subr.mxu0 0.0
    %2921 = vmatpush2.msra.mxu0 0.0
    %2922 = vmatprep.subr.mxu0 0.0
    %2923 = vmatpush2.msra.mxu0 0.0
    %2924 = vmatprep.subr.mxu0 0.0
    %2925 = vmatpush2.msra.mxu0 0.0
    %2926 = vmatprep.subr.mxu0 0.0
    %2927 = vmatpush2.msra.mxu0 0.0
    %2928 = vmatprep.subr.mxu0 0.0
    %2929 = vmatpush2.msra.mxu0 0.0
    %2930 = vmatprep.subr.mxu0 0.0
    %2931 = vmatpush2.msra.mxu0 0.0
    %2932 = vmatprep.subr.mxu0 0.0
    %2933 = vmatpush2.msra.mxu0 0.0
    %2934 = vmatprep.mubr.f32.mxu0 0.0
    %2935 = vmatmul.mubr.f32.gmra.mxu0 %v1247
    %v2936 = vpop.f32.mrf.mxu0
    %v2937 = vadd.f32 0.0, %v2936
    %v2938 = vpop.f32.mrf.mxu0
    %2939 = vmatprep.mubr.f32.mxu0 0.0
    %2940 = vmatmul.mubr.f32.gmra.mxu0 %v1250
    %v2941 = vpop.f32.mrf.mxu0
    %v2942 = vadd.f32 0.0, %v2941
    %v2943 = vpop.f32.mrf.mxu0
    %2944 = vdwg.mxu0
    %v2946 = vsel %vm98, %v2937, 0
    %v2949 = vsel %vm98, %v2942, 0
    %2951 = vmatprep.subr.mxu0 0.0
    %2952 = vmatpush1.msra.mxu0 0.0
    %2953 = vmatprep.subr.mxu0 0.0
    %2954 = vmatpush1.msra.mxu0 0.0
    %2955 = vmatprep.subr.mxu0 0.0
    %2956 = vmatpush1.msra.mxu0 0.0
    %2957 = vmatprep.subr.mxu0 0.0
    %2958 = vmatpush1.msra.mxu0 0.0
    %2959 = vmatprep.subr.mxu0 0.0
    %2960 = vmatpush1.msra.mxu0 0.0
    %2961 = vmatprep.subr.mxu0 0.0
    %2962 = vmatpush1.msra.mxu0 0.0
    %2963 = vmatprep.subr.mxu0 0.0
    %2964 = vmatpush1.msra.mxu0 0.0
    %2965 = vmatprep.subr.mxu0 0.0
    %2966 = vmatpush1.msra.mxu0 0.0
    %2967 = vmatprep.subr.mxu0 0.0
    %2968 = vmatpush1.msra.mxu0 0.0
    %2969 = vmatprep.subr.mxu0 0.0
    %2970 = vmatpush1.msra.mxu0 0.0
    %2971 = vmatprep.subr.mxu0 0.0
    %2972 = vmatpush1.msra.mxu0 0.0
    %2973 = vmatprep.subr.mxu0 0.0
    %2974 = vmatpush1.msra.mxu0 0.0
    %2975 = vmatprep.subr.mxu0 0.0
    %2976 = vmatpush1.msra.mxu0 %v61
    %2977 = vmatprep.subr.mxu0 0.0
    %2978 = vmatpush1.msra.mxu0 %v60
    %2979 = vmatprep.subr.mxu0 0.0
    %2980 = vmatpush1.msra.mxu0 %v59
    %2981 = vmatprep.subr.mxu0 0.0
    %2982 = vmatpush1.msra.mxu0 %v58
    %2983 = vmatprep.subr.mxu0 0.0
    %2984 = vmatpush2.msra.mxu0 0.0
    %2985 = vmatprep.subr.mxu0 0.0
    %2986 = vmatpush2.msra.mxu0 0.0
    %2987 = vmatprep.subr.mxu0 0.0
    %2988 = vmatpush2.msra.mxu0 0.0
    %2989 = vmatprep.subr.mxu0 0.0
    %2990 = vmatpush2.msra.mxu0 0.0
    %2991 = vmatprep.subr.mxu0 0.0
    %2992 = vmatpush2.msra.mxu0 0.0
    %2993 = vmatprep.subr.mxu0 0.0
    %2994 = vmatpush2.msra.mxu0 0.0
    %2995 = vmatprep.subr.mxu0 0.0
    %2996 = vmatpush2.msra.mxu0 0.0
    %2997 = vmatprep.subr.mxu0 0.0
    %2998 = vmatpush2.msra.mxu0 0.0
    %2999 = vmatprep.subr.mxu0 0.0
    %3000 = vmatpush2.msra.mxu0 0.0
    %3001 = vmatprep.subr.mxu0 0.0
    %3002 = vmatpush2.msra.mxu0 0.0
    %3003 = vmatprep.subr.mxu0 0.0
    %3004 = vmatpush2.msra.mxu0 0.0
    %3005 = vmatprep.subr.mxu0 0.0
    %3006 = vmatpush2.msra.mxu0 0.0
    %3007 = vmatprep.subr.mxu0 0.0
    %3008 = vmatpush2.msra.mxu0 0.0
    %3009 = vmatprep.subr.mxu0 0.0
    %3010 = vmatpush2.msra.mxu0 0.0
    %3011 = vmatprep.subr.mxu0 0.0
    %3012 = vmatpush2.msra.mxu0 0.0
    %3013 = vmatprep.subr.mxu0 0.0
    %3014 = vmatpush2.msra.mxu0 0.0
    %3015 = vmatprep.mubr.f32.mxu0 0.0
    %3016 = vmatmul.mubr.f32.gmra.mxu0 %v2946
    %v3017 = vpop.f32.mrf.mxu0
    %v3018 = vadd.f32 %v86, %v3017
    %v3019 = vpop.f32.mrf.mxu0
    %3020 = vmatprep.mubr.f32.mxu0 0.0
    %3021 = vmatmul.mubr.f32.gmra.mxu0 %v2949
    %v3022 = vpop.f32.mrf.mxu0
    %v3023 = vadd.f32 %v86, %v3022
    %v3024 = vpop.f32.mrf.mxu0
    %3025 = vdwg.mxu0
    %v3026 = vmax.f32 %v3018, 0.0
    %v3027 = vmax.f32 %v3023, 0.0
    %v3029 = vsel %vm387, %v3026, 0
    %v3032 = vsel %vm387, %v3027, 0
    %3034 = vmatprep.subr.mxu0 0.0
    %3035 = vmatpush1.msra.mxu0 0.0
    %3036 = vmatprep.subr.mxu0 0.0
    %3037 = vmatpush1.msra.mxu0 0.0
    %3038 = vmatprep.subr.mxu0 0.0
    %3039 = vmatpush1.msra.mxu0 0.0
    %3040 = vmatprep.subr.mxu0 0.0
    %3041 = vmatpush1.msra.mxu0 0.0
    %3042 = vmatprep.subr.mxu0 0.0
    %3043 = vmatpush1.msra.mxu0 0.0
    %3044 = vmatprep.subr.mxu0 0.0
    %3045 = vmatpush1.msra.mxu0 0.0
    %3046 = vmatprep.subr.mxu0 0.0
    %3047 = vmatpush1.msra.mxu0 0.0
    %3048 = vmatprep.subr.mxu0 0.0
    %3049 = vmatpush1.msra.mxu0 0.0
    %3050 = vmatprep.subr.mxu0 0.0
    %3051 = vmatpush1.msra.mxu0 0.0
    %3052 = vmatprep.subr.mxu0 0.0
    %3053 = vmatpush1.msra.mxu0 0.0
    %3054 = vmatprep.subr.mxu0 0.0
    %3055 = vmatpush1.msra.mxu0 0.0
    %3056 = vmatprep.subr.mxu0 0.0
    %3057 = vmatpush1.msra.mxu0 0.0
    %3058 = vmatprep.subr.mxu0 0.0
    %3059 = vmatpush1.msra.mxu0 0.0
    %3060 = vmatprep.subr.mxu0 0.0
    %3061 = vmatpush1.msra.mxu0 0.0
    %3062 = vmatprep.subr.mxu0 0.0
    %3063 = vmatpush1.msra.mxu0 %v43
    %3064 = vmatprep.subr.mxu0 0.0
    %3065 = vmatpush1.msra.mxu0 %v42
    %3066 = vmatprep.subr.mxu0 0.0
    %3067 = vmatpush2.msra.mxu0 0.0
    %3068 = vmatprep.subr.mxu0 0.0
    %3069 = vmatpush2.msra.mxu0 0.0
    %3070 = vmatprep.subr.mxu0 0.0
    %3071 = vmatpush2.msra.mxu0 0.0
    %3072 = vmatprep.subr.mxu0 0.0
    %3073 = vmatpush2.msra.mxu0 0.0
    %3074 = vmatprep.subr.mxu0 0.0
    %3075 = vmatpush2.msra.mxu0 0.0
    %3076 = vmatprep.subr.mxu0 0.0
    %3077 = vmatpush2.msra.mxu0 0.0
    %3078 = vmatprep.subr.mxu0 0.0
    %3079 = vmatpush2.msra.mxu0 0.0
    %3080 = vmatprep.subr.mxu0 0.0
    %3081 = vmatpush2.msra.mxu0 0.0
    %3082 = vmatprep.subr.mxu0 0.0
    %3083 = vmatpush2.msra.mxu0 0.0
    %3084 = vmatprep.subr.mxu0 0.0
    %3085 = vmatpush2.msra.mxu0 0.0
    %3086 = vmatprep.subr.mxu0 0.0
    %3087 = vmatpush2.msra.mxu0 0.0
    %3088 = vmatprep.subr.mxu0 0.0
    %3089 = vmatpush2.msra.mxu0 0.0
    %3090 = vmatprep.subr.mxu0 0.0
    %3091 = vmatpush2.msra.mxu0 0.0
    %3092 = vmatprep.subr.mxu0 0.0
    %3093 = vmatpush2.msra.mxu0 0.0
    %3094 = vmatprep.subr.mxu0 0.0
    %3095 = vmatpush2.msra.mxu0 0.0
    %3096 = vmatprep.subr.mxu0 0.0
    %3097 = vmatpush2.msra.mxu0 0.0
    %3098 = vmatprep.mubr.f32.mxu0 0.0
    %3099 = vmatmul.mubr.f32.gmra.mxu0 %v3029
    %v3100 = vpop.f32.mrf.mxu0
    %v3101 = vadd.f32 0.0, %v3100
    %v3102 = vpop.f32.mrf.mxu0
    %3103 = vmatprep.mubr.f32.mxu0 0.0
    %3104 = vmatmul.mubr.f32.gmra.mxu0 %v3032
    %v3105 = vpop.f32.mrf.mxu0
    %v3106 = vadd.f32 0.0, %v3105
    %v3107 = vpop.f32.mrf.mxu0
    %3108 = vdwg.mxu0
    %3109 = vmatprep.subr.mxu0 0.0
    %3110 = vmatpush1.msra.mxu0 0.0
    %3111 = vmatprep.subr.mxu0 0.0
    %3112 = vmatpush1.msra.mxu0 0.0
    %3113 = vmatprep.subr.mxu0 0.0
    %3114 = vmatpush1.msra.mxu0 0.0
    %3115 = vmatprep.subr.mxu0 0.0
    %3116 = vmatpush1.msra.mxu0 0.0
    %3117 = vmatprep.subr.mxu0 0.0
    %3118 = vmatpush1.msra.mxu0 0.0
    %3119 = vmatprep.subr.mxu0 0.0
    %3120 = vmatpush1.msra.mxu0 0.0
    %3121 = vmatprep.subr.mxu0 0.0
    %3122 = vmatpush1.msra.mxu0 0.0
    %3123 = vmatprep.subr.mxu0 0.0
    %3124 = vmatpush1.msra.mxu0 0.0
    %3125 = vmatprep.subr.mxu0 0.0
    %3126 = vmatpush1.msra.mxu0 0.0
    %3127 = vmatprep.subr.mxu0 0.0
    %3128 = vmatpush1.msra.mxu0 0.0
    %3129 = vmatprep.subr.mxu0 0.0
    %3130 = vmatpush1.msra.mxu0 0.0
    %3131 = vmatprep.subr.mxu0 0.0
    %3132 = vmatpush1.msra.mxu0 0.0
    %3133 = vmatprep.subr.mxu0 0.0
    %3134 = vmatpush1.msra.mxu0 0.0
    %3135 = vmatprep.subr.mxu0 0.0
    %3136 = vmatpush1.msra.mxu0 0.0
    %3137 = vmatprep.subr.mxu0 0.0
    %3138 = vmatpush1.msra.mxu0 %v3106
    %3139 = vmatprep.subr.mxu0 0.0
    %3140 = vmatpush1.msra.mxu0 %v3101
    %3141 = vmatprep.subr.mxu0 0.0
    %3142 = vmatpush2.msra.mxu0 0.0
    %3143 = vmatprep.subr.mxu0 0.0
    %3144 = vmatpush2.msra.mxu0 0.0
    %3145 = vmatprep.subr.mxu0 0.0
    %3146 = vmatpush2.msra.mxu0 0.0
    %3147 = vmatprep.subr.mxu0 0.0
    %3148 = vmatpush2.msra.mxu0 0.0
    %3149 = vmatprep.subr.mxu0 0.0
    %3150 = vmatpush2.msra.mxu0 0.0
    %3151 = vmatprep.subr.mxu0 0.0
    %3152 = vmatpush2.msra.mxu0 0.0
    %3153 = vmatprep.subr.mxu0 0.0
    %3154 = vmatpush2.msra.mxu0 0.0
    %3155 = vmatprep.subr.mxu0 0.0
    %3156 = vmatpush2.msra.mxu0 0.0
    %3157 = vmatprep.subr.mxu0 0.0
    %3158 = vmatpush2.msra.mxu0 0.0
    %3159 = vmatprep.subr.mxu0 0.0
    %3160 = vmatpush2.msra.mxu0 0.0
    %3161 = vmatprep.subr.mxu0 0.0
    %3162 = vmatpush2.msra.mxu0 0.0
    %3163 = vmatprep.subr.mxu0 0.0
    %3164 = vmatpush2.msra.mxu0 0.0
    %3165 = vmatprep.subr.mxu0 0.0
    %3166 = vmatpush2.msra.mxu0 0.0
    %3167 = vmatprep.subr.mxu0 0.0
    %3168 = vmatpush2.msra.mxu0 0.0
    %3169 = vmatprep.subr.mxu0 0.0
    %3170 = vmatpush2.msra.mxu0 0.0
    %3171 = vmatprep.subr.mxu0 0.0
    %3172 = vmatpush2.msra.mxu0 0.0
    %3173 = vmatprep.mubr.f32.mxu0 0.0
    %3174 = vmatmul.mubr.f32.gmra.mxu0 %v653
    %v3175 = vpop.f32.mrf.mxu0
    %v3176 = vadd.f32 0.0, %v3175
    %v3177 = vpop.f32.mrf.mxu0
    %3178 = vmatprep.mubr.f32.mxu0 0.0
    %3179 = vmatmul.mubr.f32.gmra.mxu0 %v656
    %v3180 = vpop.f32.mrf.mxu0
    %v3181 = vadd.f32 0.0, %v3180
    %v3182 = vpop.f32.mrf.mxu0
    %3183 = vmatprep.mubr.f32.mxu0 0.0
    %3184 = vmatmul.mubr.f32.gmra.mxu0 %v659
    %v3185 = vpop.f32.mrf.mxu0
    %v3186 = vadd.f32 0.0, %v3185
    %v3187 = vpop.f32.mrf.mxu0
    %3188 = vdwg.mxu0
    %3189 = vmatprep.subr.mxu0 0.0
    %3190 = vmatpush1.msra.mxu0 0.0
    %3191 = vmatprep.subr.mxu0 0.0
    %3192 = vmatpush1.msra.mxu0 0.0
    %3193 = vmatprep.subr.mxu0 0.0
    %3194 = vmatpush1.msra.mxu0 0.0
    %3195 = vmatprep.subr.mxu0 0.0
    %3196 = vmatpush1.msra.mxu0 0.0
    %3197 = vmatprep.subr.mxu0 0.0
    %3198 = vmatpush1.msra.mxu0 0.0
    %3199 = vmatprep.subr.mxu0 0.0
    %3200 = vmatpush1.msra.mxu0 0.0
    %3201 = vmatprep.subr.mxu0 0.0
    %3202 = vmatpush1.msra.mxu0 0.0
    %3203 = vmatprep.subr.mxu0 0.0
    %3204 = vmatpush1.msra.mxu0 0.0
    %3205 = vmatprep.subr.mxu0 0.0
    %3206 = vmatpush1.msra.mxu0 0.0
    %3207 = vmatprep.subr.mxu0 0.0
    %3208 = vmatpush1.msra.mxu0 0.0
    %3209 = vmatprep.subr.mxu0 0.0
    %3210 = vmatpush1.msra.mxu0 0.0
    %3211 = vmatprep.subr.mxu0 0.0
    %3212 = vmatpush1.msra.mxu0 0.0
    %3213 = vmatprep.subr.mxu0 0.0
    %3214 = vmatpush1.msra.mxu0 0.0
    %3215 = vmatprep.subr.mxu0 0.0
    %3216 = vmatpush1.msra.mxu0 0.0
    %3217 = vmatprep.subr.mxu0 0.0
    %3218 = vmatpush1.msra.mxu0 %v3106
    %3219 = vmatprep.subr.mxu0 0.0
    %3220 = vmatpush1.msra.mxu0 %v3101
    %3221 = vmatprep.subr.mxu0 0.0
    %3222 = vmatpush2.msra.mxu0 0.0
    %3223 = vmatprep.subr.mxu0 0.0
    %3224 = vmatpush2.msra.mxu0 0.0
    %3225 = vmatprep.subr.mxu0 0.0
    %3226 = vmatpush2.msra.mxu0 0.0
    %3227 = vmatprep.subr.mxu0 0.0
    %3228 = vmatpush2.msra.mxu0 0.0
    %3229 = vmatprep.subr.mxu0 0.0
    %3230 = vmatpush2.msra.mxu0 0.0
    %3231 = vmatprep.subr.mxu0 0.0
    %3232 = vmatpush2.msra.mxu0 0.0
    %3233 = vmatprep.subr.mxu0 0.0
    %3234 = vmatpush2.msra.mxu0 0.0
    %3235 = vmatprep.subr.mxu0 0.0
    %3236 = vmatpush2.msra.mxu0 0.0
    %3237 = vmatprep.subr.mxu0 0.0
    %3238 = vmatpush2.msra.mxu0 0.0
    %3239 = vmatprep.subr.mxu0 0.0
    %3240 = vmatpush2.msra.mxu0 0.0
    %3241 = vmatprep.subr.mxu0 0.0
    %3242 = vmatpush2.msra.mxu0 0.0
    %3243 = vmatprep.subr.mxu0 0.0
    %3244 = vmatpush2.msra.mxu0 0.0
    %3245 = vmatprep.subr.mxu0 0.0
    %3246 = vmatpush2.msra.mxu0 0.0
    %3247 = vmatprep.subr.mxu0 0.0
    %3248 = vmatpush2.msra.mxu0 0.0
    %3249 = vmatprep.subr.mxu0 0.0
    %3250 = vmatpush2.msra.mxu0 0.0
    %3251 = vmatprep.subr.mxu0 0.0
    %3252 = vmatpush2.msra.mxu0 0.0
    %3253 = vmatprep.mubr.f32.mxu0 0.0
    %3254 = vmatmul.mubr.f32.gmra.mxu0 %v742
    %v3255 = vpop.f32.mrf.mxu0
    %v3256 = vadd.f32 0.0, %v3255
    %v3257 = vpop.f32.mrf.mxu0
    %3258 = vmatprep.mubr.f32.mxu0 0.0
    %3259 = vmatmul.mubr.f32.gmra.mxu0 %v745
    %v3260 = vpop.f32.mrf.mxu0
    %v3261 = vadd.f32 0.0, %v3260
    %v3262 = vpop.f32.mrf.mxu0
    %3263 = vmatprep.mubr.f32.mxu0 0.0
    %3264 = vmatmul.mubr.f32.gmra.mxu0 %v748
    %v3265 = vpop.f32.mrf.mxu0
    %v3266 = vadd.f32 0.0, %v3265
    %v3267 = vpop.f32.mrf.mxu0
    %3268 = vdwg.mxu0
    %3272 = vrot.lane.b32.xlu0 %v3256, 96
    %v3273 = vpop.permute.xlu0 %3272
    %3274 = vrot.lane.b32.xlu0 %v3261, 96
    %v3275 = vpop.permute.xlu0 %3274
    %3276 = vrot.lane.b32.xlu0 %v3266, 96
    %v3277 = vpop.permute.xlu0 %3276
    %v3281 = vadd.f32 %v3176, %v3273
    %v3282 = vadd.f32 %v3181, %v3275
    %v3283 = vadd.f32 %v3186, %v3277
    %v3284 = vadd.f32 %v3281, %v558
    %v3285 = vadd.f32 %v3282, %v563
    %v3286 = vadd.f32 %v3283, %v568
    %3287 = vmatprep.subr.mxu0 0.0
    %3288 = vmatpush1.msra.mxu0 0.0
    %3289 = vmatprep.subr.mxu0 0.0
    %3290 = vmatpush1.msra.mxu0 0.0
    %3291 = vmatprep.subr.mxu0 0.0
    %3292 = vmatpush1.msra.mxu0 0.0
    %3293 = vmatprep.subr.mxu0 0.0
    %3294 = vmatpush1.msra.mxu0 0.0
    %3295 = vmatprep.subr.mxu0 0.0
    %3296 = vmatpush1.msra.mxu0 0.0
    %3297 = vmatprep.subr.mxu0 0.0
    %3298 = vmatpush1.msra.mxu0 0.0
    %3299 = vmatprep.subr.mxu0 0.0
    %3300 = vmatpush1.msra.mxu0 0.0
    %3301 = vmatprep.subr.mxu0 0.0
    %3302 = vmatpush1.msra.mxu0 0.0
    %3303 = vmatprep.subr.mxu0 0.0
    %3304 = vmatpush1.msra.mxu0 0.0
    %3305 = vmatprep.subr.mxu0 0.0
    %3306 = vmatpush1.msra.mxu0 0.0
    %3307 = vmatprep.subr.mxu0 0.0
    %3308 = vmatpush1.msra.mxu0 0.0
    %3309 = vmatprep.subr.mxu0 0.0
    %3310 = vmatpush1.msra.mxu0 0.0
    %3311 = vmatprep.subr.mxu0 0.0
    %3312 = vmatpush1.msra.mxu0 0.0
    %3313 = vmatprep.subr.mxu0 0.0
    %3314 = vmatpush1.msra.mxu0 0.0
    %3315 = vmatprep.subr.mxu0 0.0
    %3316 = vmatpush1.msra.mxu0 0.0
    %3317 = vmatprep.subr.mxu0 0.0
    %3318 = vmatpush1.msra.mxu0 %v44
    %3319 = vmatprep.subr.mxu0 0.0
    %3320 = vmatpush2.msra.mxu0 0.0
    %3321 = vmatprep.subr.mxu0 0.0
    %3322 = vmatpush2.msra.mxu0 0.0
    %3323 = vmatprep.subr.mxu0 0.0
    %3324 = vmatpush2.msra.mxu0 0.0
    %3325 = vmatprep.subr.mxu0 0.0
    %3326 = vmatpush2.msra.mxu0 0.0
    %3327 = vmatprep.subr.mxu0 0.0
    %3328 = vmatpush2.msra.mxu0 0.0
    %3329 = vmatprep.subr.mxu0 0.0
    %3330 = vmatpush2.msra.mxu0 0.0
    %3331 = vmatprep.subr.mxu0 0.0
    %3332 = vmatpush2.msra.mxu0 0.0
    %3333 = vmatprep.subr.mxu0 0.0
    %3334 = vmatpush2.msra.mxu0 0.0
    %3335 = vmatprep.subr.mxu0 0.0
    %3336 = vmatpush2.msra.mxu0 0.0
    %3337 = vmatprep.subr.mxu0 0.0
    %3338 = vmatpush2.msra.mxu0 0.0
    %3339 = vmatprep.subr.mxu0 0.0
    %3340 = vmatpush2.msra.mxu0 0.0
    %3341 = vmatprep.subr.mxu0 0.0
    %3342 = vmatpush2.msra.mxu0 0.0
    %3343 = vmatprep.subr.mxu0 0.0
    %3344 = vmatpush2.msra.mxu0 0.0
    %3345 = vmatprep.subr.mxu0 0.0
    %3346 = vmatpush2.msra.mxu0 0.0
    %3347 = vmatprep.subr.mxu0 0.0
    %3348 = vmatpush2.msra.mxu0 0.0
    %3349 = vmatprep.subr.mxu0 0.0
    %3350 = vmatpush2.msra.mxu0 0.0
    %3351 = vmatprep.mubr.f32.mxu0 0.0
    %3352 = vmatmul.mubr.f32.gmra.mxu0 %v2660
    %v3353 = vpop.f32.mrf.mxu0
    %v3354 = vadd.f32 0.0, %v3353
    %v3355 = vpop.f32.mrf.mxu0
    %3356 = vmatprep.mubr.f32.mxu0 0.0
    %3357 = vmatmul.mubr.f32.gmra.mxu0 %v2663
    %v3358 = vpop.f32.mrf.mxu0
    %v3359 = vadd.f32 0.0, %v3358
    %v3360 = vpop.f32.mrf.mxu0
    %3361 = vmatprep.mubr.f32.mxu0 0.0
    %3362 = vmatmul.mubr.f32.gmra.mxu0 %v2666
    %v3363 = vpop.f32.mrf.mxu0
    %v3364 = vadd.f32 0.0, %v3363
    %v3365 = vpop.f32.mrf.mxu0
    %3366 = vdwg.mxu0
    %v3367 = vadd.f32 %v3284, %v3354
    %v3368 = vadd.f32 %v3285, %v3359
    %v3369 = vadd.f32 %v3286, %v3364
    %v3370 = vadd.f32 %v3367, %v66
    %v3371 = vadd.f32 %v3368, %v66
    %v3372 = vadd.f32 %v3369, %v66
    %v3373 = vmax.f32 %v3370, 0.0
    %v3374 = vmax.f32 %v3371, 0.0
    %v3375 = vmax.f32 %v3372, 0.0
    %v3377 = vsel %vm98, %v3373, 0
    %v3380 = vsel %vm98, %v3374, 0
    %v3383 = vsel %vm98, %v3375, 0
    %3385 = vmatprep.subr.mxu0 0.0
    %3386 = vmatpush1.msra.mxu0 0.0
    %3387 = vmatprep.subr.mxu0 0.0
    %3388 = vmatpush1.msra.mxu0 0.0
    %3389 = vmatprep.subr.mxu0 0.0
    %3390 = vmatpush1.msra.mxu0 0.0
    %3391 = vmatprep.subr.mxu0 0.0
    %3392 = vmatpush1.msra.mxu0 0.0
    %3393 = vmatprep.subr.mxu0 0.0
    %3394 = vmatpush1.msra.mxu0 0.0
    %3395 = vmatprep.subr.mxu0 0.0
    %3396 = vmatpush1.msra.mxu0 0.0
    %3397 = vmatprep.subr.mxu0 0.0
    %3398 = vmatpush1.msra.mxu0 0.0
    %3399 = vmatprep.subr.mxu0 0.0
    %3400 = vmatpush1.msra.mxu0 0.0
    %3401 = vmatprep.subr.mxu0 0.0
    %3402 = vmatpush1.msra.mxu0 0.0
    %3403 = vmatprep.subr.mxu0 0.0
    %3404 = vmatpush1.msra.mxu0 0.0
    %3405 = vmatprep.subr.mxu0 0.0
    %3406 = vmatpush1.msra.mxu0 0.0
    %3407 = vmatprep.subr.mxu0 0.0
    %3408 = vmatpush1.msra.mxu0 0.0
    %3409 = vmatprep.subr.mxu0 0.0
    %3410 = vmatpush1.msra.mxu0 %v48
    %3411 = vmatprep.subr.mxu0 0.0
    %3412 = vmatpush1.msra.mxu0 %v47
    %3413 = vmatprep.subr.mxu0 0.0
    %3414 = vmatpush1.msra.mxu0 %v46
    %3415 = vmatprep.subr.mxu0 0.0
    %3416 = vmatpush1.msra.mxu0 %v45
    %3417 = vmatprep.subr.mxu0 0.0
    %3418 = vmatpush2.msra.mxu0 0.0
    %3419 = vmatprep.subr.mxu0 0.0
    %3420 = vmatpush2.msra.mxu0 0.0
    %3421 = vmatprep.subr.mxu0 0.0
    %3422 = vmatpush2.msra.mxu0 0.0
    %3423 = vmatprep.subr.mxu0 0.0
    %3424 = vmatpush2.msra.mxu0 0.0
    %3425 = vmatprep.subr.mxu0 0.0
    %3426 = vmatpush2.msra.mxu0 0.0
    %3427 = vmatprep.subr.mxu0 0.0
    %3428 = vmatpush2.msra.mxu0 0.0
    %3429 = vmatprep.subr.mxu0 0.0
    %3430 = vmatpush2.msra.mxu0 0.0
    %3431 = vmatprep.subr.mxu0 0.0
    %3432 = vmatpush2.msra.mxu0 0.0
    %3433 = vmatprep.subr.mxu0 0.0
    %3434 = vmatpush2.msra.mxu0 0.0
    %3435 = vmatprep.subr.mxu0 0.0
    %3436 = vmatpush2.msra.mxu0 0.0
    %3437 = vmatprep.subr.mxu0 0.0
    %3438 = vmatpush2.msra.mxu0 0.0
    %3439 = vmatprep.subr.mxu0 0.0
    %3440 = vmatpush2.msra.mxu0 0.0
    %3441 = vmatprep.subr.mxu0 0.0
    %3442 = vmatpush2.msra.mxu0 0.0
    %3443 = vmatprep.subr.mxu0 0.0
    %3444 = vmatpush2.msra.mxu0 0.0
    %3445 = vmatprep.subr.mxu0 0.0
    %3446 = vmatpush2.msra.mxu0 0.0
    %3447 = vmatprep.subr.mxu0 0.0
    %3448 = vmatpush2.msra.mxu0 0.0
    %3449 = vmatprep.mubr.f32.mxu0 0.0
    %3450 = vmatmul.mubr.f32.gmra.mxu0 %v3377
    %v3451 = vpop.f32.mrf.mxu0
    %v3452 = vadd.f32 %v71, %v3451
    %v3453 = vpop.f32.mrf.mxu0
    %3454 = vmatprep.mubr.f32.mxu0 0.0
    %3455 = vmatmul.mubr.f32.gmra.mxu0 %v3380
    %v3456 = vpop.f32.mrf.mxu0
    %v3457 = vadd.f32 %v71, %v3456
    %v3458 = vpop.f32.mrf.mxu0
    %3459 = vmatprep.mubr.f32.mxu0 0.0
    %3460 = vmatmul.mubr.f32.gmra.mxu0 %v3383
    %v3461 = vpop.f32.mrf.mxu0
    %v3462 = vadd.f32 %v71, %v3461
    %v3463 = vpop.f32.mrf.mxu0
    %3464 = vdwg.mxu0
    %v3465 = vmax.f32 %v3452, 0.0
    %v3466 = vmax.f32 %v3457, 0.0
    %v3467 = vmax.f32 %v3462, 0.0
    %v3469 = vsel %vm481, %v3465, 0
    %v3472 = vsel %vm481, %v3466, 0
    %v3475 = vsel %vm481, %v3467, 0
    %3477 = vmatprep.subr.mxu0 0.0
    %3478 = vmatpush1.msra.mxu0 0.0
    %3479 = vmatprep.subr.mxu0 0.0
    %3480 = vmatpush1.msra.mxu0 0.0
    %3481 = vmatprep.subr.mxu0 0.0
    %3482 = vmatpush1.msra.mxu0 0.0
    %3483 = vmatprep.subr.mxu0 0.0
    %3484 = vmatpush1.msra.mxu0 0.0
    %3485 = vmatprep.subr.mxu0 0.0
    %3486 = vmatpush1.msra.mxu0 0.0
    %3487 = vmatprep.subr.mxu0 0.0
    %3488 = vmatpush1.msra.mxu0 0.0
    %3489 = vmatprep.subr.mxu0 0.0
    %3490 = vmatpush1.msra.mxu0 0.0
    %3491 = vmatprep.subr.mxu0 0.0
    %3492 = vmatpush1.msra.mxu0 0.0
    %3493 = vmatprep.subr.mxu0 0.0
    %3494 = vmatpush1.msra.mxu0 0.0
    %3495 = vmatprep.subr.mxu0 0.0
    %3496 = vmatpush1.msra.mxu0 0.0
    %3497 = vmatprep.subr.mxu0 0.0
    %3498 = vmatpush1.msra.mxu0 0.0
    %3499 = vmatprep.subr.mxu0 0.0
    %3500 = vmatpush1.msra.mxu0 0.0
    %3501 = vmatprep.subr.mxu0 0.0
    %3502 = vmatpush1.msra.mxu0 0.0
    %3503 = vmatprep.subr.mxu0 0.0
    %3504 = vmatpush1.msra.mxu0 0.0
    %3505 = vmatprep.subr.mxu0 0.0
    %3506 = vmatpush1.msra.mxu0 0.0
    %3507 = vmatprep.subr.mxu0 0.0
    %3508 = vmatpush1.msra.mxu0 %v49
    %3509 = vmatprep.subr.mxu0 0.0
    %3510 = vmatpush2.msra.mxu0 0.0
    %3511 = vmatprep.subr.mxu0 0.0
    %3512 = vmatpush2.msra.mxu0 0.0
    %3513 = vmatprep.subr.mxu0 0.0
    %3514 = vmatpush2.msra.mxu0 0.0
    %3515 = vmatprep.subr.mxu0 0.0
    %3516 = vmatpush2.msra.mxu0 0.0
    %3517 = vmatprep.subr.mxu0 0.0
    %3518 = vmatpush2.msra.mxu0 0.0
    %3519 = vmatprep.subr.mxu0 0.0
    %3520 = vmatpush2.msra.mxu0 0.0
    %3521 = vmatprep.subr.mxu0 0.0
    %3522 = vmatpush2.msra.mxu0 0.0
    %3523 = vmatprep.subr.mxu0 0.0
    %3524 = vmatpush2.msra.mxu0 0.0
    %3525 = vmatprep.subr.mxu0 0.0
    %3526 = vmatpush2.msra.mxu0 0.0
    %3527 = vmatprep.subr.mxu0 0.0
    %3528 = vmatpush2.msra.mxu0 0.0
    %3529 = vmatprep.subr.mxu0 0.0
    %3530 = vmatpush2.msra.mxu0 0.0
    %3531 = vmatprep.subr.mxu0 0.0
    %3532 = vmatpush2.msra.mxu0 0.0
    %3533 = vmatprep.subr.mxu0 0.0
    %3534 = vmatpush2.msra.mxu0 0.0
    %3535 = vmatprep.subr.mxu0 0.0
    %3536 = vmatpush2.msra.mxu0 0.0
    %3537 = vmatprep.subr.mxu0 0.0
    %3538 = vmatpush2.msra.mxu0 0.0
    %3539 = vmatprep.subr.mxu0 0.0
    %3540 = vmatpush2.msra.mxu0 0.0
    %3541 = vmatprep.mubr.f32.mxu0 0.0
    %3542 = vmatmul.mubr.f32.gmra.mxu0 %v3469
    %v3543 = vpop.f32.mrf.mxu0
    %v3544 = vadd.f32 0.0, %v3543
    %v3545 = vpop.f32.mrf.mxu0
    %3546 = vmatprep.mubr.f32.mxu0 0.0
    %3547 = vmatmul.mubr.f32.gmra.mxu0 %v3472
    %v3548 = vpop.f32.mrf.mxu0
    %v3549 = vadd.f32 0.0, %v3548
    %v3550 = vpop.f32.mrf.mxu0
    %3551 = vmatprep.mubr.f32.mxu0 0.0
    %3552 = vmatmul.mubr.f32.gmra.mxu0 %v3475
    %v3553 = vpop.f32.mrf.mxu0
    %v3554 = vadd.f32 0.0, %v3553
    %v3555 = vpop.f32.mrf.mxu0
    %3556 = vdwg.mxu0
    %3560 = vrot.lane.b32.xlu0 %v3544, 64
    %v3561 = vpop.permute.xlu0 %3560
    %3562 = vrot.lane.b32.xlu0 %v3549, 64
    %v3563 = vpop.permute.xlu0 %3562
    %3564 = vrot.lane.b32.xlu0 %v3554, 64
    %v3565 = vpop.permute.xlu0 %3564
    %v3569 = vadd.f32 %v3256, %v3561
    %v3570 = vadd.f32 %v3261, %v3563
    %v3571 = vadd.f32 %v3266, %v3565
    %v3572 = vadd.f32 %v3569, %v1135
    %v3573 = vadd.f32 %v3570, %v1135
    %v3574 = vadd.f32 %v3571, %v1135
    %v3575 = vmax.f32 %v3572, 0.0
    %v3576 = vmax.f32 %v3573, 0.0
    %v3577 = vmax.f32 %v3574, 0.0
    %3581 = vrot.lane.b32.xlu0 %v3575, 64
    %v3582 = vpop.permute.xlu0 %3581
    %3583 = vrot.lane.b32.xlu0 %v3576, 64
    %v3584 = vpop.permute.xlu0 %3583
    %3585 = vrot.lane.b32.xlu0 %v3577, 64
    %v3586 = vpop.permute.xlu0 %3585
    %v3587 = vsel %vm1152, %v3582, 0
    %v3589 = vsel %vm1152, %v3584, 0
    %v3591 = vsel %vm1152, %v3586, 0
    %3593 = vmatprep.subr.mxu0 0.0
    %3594 = vmatpush1.msra.mxu0 0.0
    %3595 = vmatprep.subr.mxu0 0.0
    %3596 = vmatpush1.msra.mxu0 0.0
    %3597 = vmatprep.subr.mxu0 0.0
    %3598 = vmatpush1.msra.mxu0 0.0
    %3599 = vmatprep.subr.mxu0 0.0
    %3600 = vmatpush1.msra.mxu0 0.0
    %3601 = vmatprep.subr.mxu0 0.0
    %3602 = vmatpush1.msra.mxu0 0.0
    %3603 = vmatprep.subr.mxu0 0.0
    %3604 = vmatpush1.msra.mxu0 0.0
    %3605 = vmatprep.subr.mxu0 0.0
    %3606 = vmatpush1.msra.mxu0 0.0
    %3607 = vmatprep.subr.mxu0 0.0
    %3608 = vmatpush1.msra.mxu0 0.0
    %3609 = vmatprep.subr.mxu0 0.0
    %3610 = vmatpush1.msra.mxu0 %v57
    %3611 = vmatprep.subr.mxu0 0.0
    %3612 = vmatpush1.msra.mxu0 %v56
    %3613 = vmatprep.subr.mxu0 0.0
    %3614 = vmatpush1.msra.mxu0 %v55
    %3615 = vmatprep.subr.mxu0 0.0
    %3616 = vmatpush1.msra.mxu0 %v54
    %3617 = vmatprep.subr.mxu0 0.0
    %3618 = vmatpush1.msra.mxu0 %v53
    %3619 = vmatprep.subr.mxu0 0.0
    %3620 = vmatpush1.msra.mxu0 %v52
    %3621 = vmatprep.subr.mxu0 0.0
    %3622 = vmatpush1.msra.mxu0 %v51
    %3623 = vmatprep.subr.mxu0 0.0
    %3624 = vmatpush1.msra.mxu0 %v50
    %3625 = vmatprep.subr.mxu0 0.0
    %3626 = vmatpush2.msra.mxu0 0.0
    %3627 = vmatprep.subr.mxu0 0.0
    %3628 = vmatpush2.msra.mxu0 0.0
    %3629 = vmatprep.subr.mxu0 0.0
    %3630 = vmatpush2.msra.mxu0 0.0
    %3631 = vmatprep.subr.mxu0 0.0
    %3632 = vmatpush2.msra.mxu0 0.0
    %3633 = vmatprep.subr.mxu0 0.0
    %3634 = vmatpush2.msra.mxu0 0.0
    %3635 = vmatprep.subr.mxu0 0.0
    %3636 = vmatpush2.msra.mxu0 0.0
    %3637 = vmatprep.subr.mxu0 0.0
    %3638 = vmatpush2.msra.mxu0 0.0
    %3639 = vmatprep.subr.mxu0 0.0
    %3640 = vmatpush2.msra.mxu0 0.0
    %3641 = vmatprep.subr.mxu0 0.0
    %3642 = vmatpush2.msra.mxu0 0.0
    %3643 = vmatprep.subr.mxu0 0.0
    %3644 = vmatpush2.msra.mxu0 0.0
    %3645 = vmatprep.subr.mxu0 0.0
    %3646 = vmatpush2.msra.mxu0 0.0
    %3647 = vmatprep.subr.mxu0 0.0
    %3648 = vmatpush2.msra.mxu0 0.0
    %3649 = vmatprep.subr.mxu0 0.0
    %3650 = vmatpush2.msra.mxu0 0.0
    %3651 = vmatprep.subr.mxu0 0.0
    %3652 = vmatpush2.msra.mxu0 0.0
    %3653 = vmatprep.subr.mxu0 0.0
    %3654 = vmatpush2.msra.mxu0 0.0
    %3655 = vmatprep.subr.mxu0 0.0
    %3656 = vmatpush2.msra.mxu0 0.0
    %3657 = vmatprep.mubr.f32.mxu0 0.0
    %3658 = vmatmul.mubr.f32.gmra.mxu0 %v3587
    %v3659 = vpop.f32.mrf.mxu0
    %v3660 = vadd.f32 %v81, %v3659
    %v3661 = vpop.f32.mrf.mxu0
    %3662 = vmatprep.mubr.f32.mxu0 0.0
    %3663 = vmatmul.mubr.f32.gmra.mxu0 %v3589
    %v3664 = vpop.f32.mrf.mxu0
    %v3665 = vadd.f32 %v81, %v3664
    %v3666 = vpop.f32.mrf.mxu0
    %3667 = vmatprep.mubr.f32.mxu0 0.0
    %3668 = vmatmul.mubr.f32.gmra.mxu0 %v3591
    %v3669 = vpop.f32.mrf.mxu0
    %v3670 = vadd.f32 %v81, %v3669
    %v3671 = vpop.f32.mrf.mxu0
    %3672 = vdwg.mxu0
    %v3673 = vmax.f32 %v3660, 0.0
    %v3674 = vmax.f32 %v3665, 0.0
    %v3675 = vmax.f32 %v3670, 0.0
    %v3676 = vmul.f32 %v3673, %v39
    %v3677 = vmul.f32 %v3674, %v40
    %v3678 = vmul.f32 %v3675, %v41
    %3679 = vmatprep.subr.mxu0 0.0
    %3680 = vmatpush1.msra.mxu0 0.0
    %3681 = vmatprep.subr.mxu0 0.0
    %3682 = vmatpush1.msra.mxu0 0.0
    %3683 = vmatprep.subr.mxu0 0.0
    %3684 = vmatpush1.msra.mxu0 0.0
    %3685 = vmatprep.subr.mxu0 0.0
    %3686 = vmatpush1.msra.mxu0 0.0
    %3687 = vmatprep.subr.mxu0 0.0
    %3688 = vmatpush1.msra.mxu0 0.0
    %3689 = vmatprep.subr.mxu0 0.0
    %3690 = vmatpush1.msra.mxu0 0.0
    %3691 = vmatprep.subr.mxu0 0.0
    %3692 = vmatpush1.msra.mxu0 0.0
    %3693 = vmatprep.subr.mxu0 0.0
    %3694 = vmatpush1.msra.mxu0 0.0
    %3695 = vmatprep.subr.mxu0 0.0
    %3696 = vmatpush1.msra.mxu0 0.0
    %3697 = vmatprep.subr.mxu0 0.0
    %3698 = vmatpush1.msra.mxu0 0.0
    %3699 = vmatprep.subr.mxu0 0.0
    %3700 = vmatpush1.msra.mxu0 0.0
    %3701 = vmatprep.subr.mxu0 0.0
    %3702 = vmatpush1.msra.mxu0 0.0
    %3703 = vmatprep.subr.mxu0 0.0
    %3704 = vmatpush1.msra.mxu0 0.0
    %3705 = vmatprep.subr.mxu0 0.0
    %3706 = vmatpush1.msra.mxu0 %v3678
    %3707 = vmatprep.subr.mxu0 0.0
    %3708 = vmatpush1.msra.mxu0 %v3677
    %3709 = vmatprep.subr.mxu0 0.0
    %3710 = vmatpush1.msra.mxu0 %v3676
    %3711 = vmatprep.subr.mxu0 0.0
    %3712 = vmatpush2.msra.mxu0 0.0
    %3713 = vmatprep.subr.mxu0 0.0
    %3714 = vmatpush2.msra.mxu0 0.0
    %3715 = vmatprep.subr.mxu0 0.0
    %3716 = vmatpush2.msra.mxu0 0.0
    %3717 = vmatprep.subr.mxu0 0.0
    %3718 = vmatpush2.msra.mxu0 0.0
    %3719 = vmatprep.subr.mxu0 0.0
    %3720 = vmatpush2.msra.mxu0 0.0
    %3721 = vmatprep.subr.mxu0 0.0
    %3722 = vmatpush2.msra.mxu0 0.0
    %3723 = vmatprep.subr.mxu0 0.0
    %3724 = vmatpush2.msra.mxu0 0.0
    %3725 = vmatprep.subr.mxu0 0.0
    %3726 = vmatpush2.msra.mxu0 0.0
    %3727 = vmatprep.subr.mxu0 0.0
    %3728 = vmatpush2.msra.mxu0 0.0
    %3729 = vmatprep.subr.mxu0 0.0
    %3730 = vmatpush2.msra.mxu0 0.0
    %3731 = vmatprep.subr.mxu0 0.0
    %3732 = vmatpush2.msra.mxu0 0.0
    %3733 = vmatprep.subr.mxu0 0.0
    %3734 = vmatpush2.msra.mxu0 0.0
    %3735 = vmatprep.subr.mxu0 0.0
    %3736 = vmatpush2.msra.mxu0 0.0
    %3737 = vmatprep.subr.mxu0 0.0
    %3738 = vmatpush2.msra.mxu0 0.0
    %3739 = vmatprep.subr.mxu0 0.0
    %3740 = vmatpush2.msra.mxu0 0.0
    %3741 = vmatprep.subr.mxu0 0.0
    %3742 = vmatpush2.msra.mxu0 0.0
    %3743 = vmatprep.mubr.f32.mxu0 0.0
    %3744 = vmatmul.mubr.f32.gmra.mxu0 %v1247
    %v3745 = vpop.f32.mrf.mxu0
    %v3746 = vadd.f32 0.0, %v3745
    %v3747 = vpop.f32.mrf.mxu0
    %3748 = vmatprep.mubr.f32.mxu0 0.0
    %3749 = vmatmul.mubr.f32.gmra.mxu0 %v1250
    %v3750 = vpop.f32.mrf.mxu0
    %v3751 = vadd.f32 0.0, %v3750
    %v3752 = vpop.f32.mrf.mxu0
    %3753 = vdwg.mxu0
    %v3755 = vsel %vm98, %v3746, 0
    %v3758 = vsel %vm98, %v3751, 0
    %3760 = vmatprep.subr.mxu0 0.0
    %3761 = vmatpush1.msra.mxu0 0.0
    %3762 = vmatprep.subr.mxu0 0.0
    %3763 = vmatpush1.msra.mxu0 0.0
    %3764 = vmatprep.subr.mxu0 0.0
    %3765 = vmatpush1.msra.mxu0 0.0
    %3766 = vmatprep.subr.mxu0 0.0
    %3767 = vmatpush1.msra.mxu0 0.0
    %3768 = vmatprep.subr.mxu0 0.0
    %3769 = vmatpush1.msra.mxu0 0.0
    %3770 = vmatprep.subr.mxu0 0.0
    %3771 = vmatpush1.msra.mxu0 0.0
    %3772 = vmatprep.subr.mxu0 0.0
    %3773 = vmatpush1.msra.mxu0 0.0
    %3774 = vmatprep.subr.mxu0 0.0
    %3775 = vmatpush1.msra.mxu0 0.0
    %3776 = vmatprep.subr.mxu0 0.0
    %3777 = vmatpush1.msra.mxu0 0.0
    %3778 = vmatprep.subr.mxu0 0.0
    %3779 = vmatpush1.msra.mxu0 0.0
    %3780 = vmatprep.subr.mxu0 0.0
    %3781 = vmatpush1.msra.mxu0 0.0
    %3782 = vmatprep.subr.mxu0 0.0
    %3783 = vmatpush1.msra.mxu0 0.0
    %3784 = vmatprep.subr.mxu0 0.0
    %3785 = vmatpush1.msra.mxu0 %v61
    %3786 = vmatprep.subr.mxu0 0.0
    %3787 = vmatpush1.msra.mxu0 %v60
    %3788 = vmatprep.subr.mxu0 0.0
    %3789 = vmatpush1.msra.mxu0 %v59
    %3790 = vmatprep.subr.mxu0 0.0
    %3791 = vmatpush1.msra.mxu0 %v58
    %3792 = vmatprep.subr.mxu0 0.0
    %3793 = vmatpush2.msra.mxu0 0.0
    %3794 = vmatprep.subr.mxu0 0.0
    %3795 = vmatpush2.msra.mxu0 0.0
    %3796 = vmatprep.subr.mxu0 0.0
    %3797 = vmatpush2.msra.mxu0 0.0
    %3798 = vmatprep.subr.mxu0 0.0
    %3799 = vmatpush2.msra.mxu0 0.0
    %3800 = vmatprep.subr.mxu0 0.0
    %3801 = vmatpush2.msra.mxu0 0.0
    %3802 = vmatprep.subr.mxu0 0.0
    %3803 = vmatpush2.msra.mxu0 0.0
    %3804 = vmatprep.subr.mxu0 0.0
    %3805 = vmatpush2.msra.mxu0 0.0
    %3806 = vmatprep.subr.mxu0 0.0
    %3807 = vmatpush2.msra.mxu0 0.0
    %3808 = vmatprep.subr.mxu0 0.0
    %3809 = vmatpush2.msra.mxu0 0.0
    %3810 = vmatprep.subr.mxu0 0.0
    %3811 = vmatpush2.msra.mxu0 0.0
    %3812 = vmatprep.subr.mxu0 0.0
    %3813 = vmatpush2.msra.mxu0 0.0
    %3814 = vmatprep.subr.mxu0 0.0
    %3815 = vmatpush2.msra.mxu0 0.0
    %3816 = vmatprep.subr.mxu0 0.0
    %3817 = vmatpush2.msra.mxu0 0.0
    %3818 = vmatprep.subr.mxu0 0.0
    %3819 = vmatpush2.msra.mxu0 0.0
    %3820 = vmatprep.subr.mxu0 0.0
    %3821 = vmatpush2.msra.mxu0 0.0
    %3822 = vmatprep.subr.mxu0 0.0
    %3823 = vmatpush2.msra.mxu0 0.0
    %3824 = vmatprep.mubr.f32.mxu0 0.0
    %3825 = vmatmul.mubr.f32.gmra.mxu0 %v3755
    %v3826 = vpop.f32.mrf.mxu0
    %v3827 = vadd.f32 %v86, %v3826
    %v3828 = vpop.f32.mrf.mxu0
    %3829 = vmatprep.mubr.f32.mxu0 0.0
    %3830 = vmatmul.mubr.f32.gmra.mxu0 %v3758
    %v3831 = vpop.f32.mrf.mxu0
    %v3832 = vadd.f32 %v86, %v3831
    %v3833 = vpop.f32.mrf.mxu0
    %3834 = vdwg.mxu0
    %v3835 = vmax.f32 %v3827, 0.0
    %v3836 = vmax.f32 %v3832, 0.0
    %3837 = vrot.lane.b32.xlu0 %v2656, 8
    %v3838 = vpop.permute.xlu0 %3837
    %3839 = vrot.lane.b32.xlu0 %v2657, 8
    %v3840 = vpop.permute.xlu0 %3839
    %3841 = vrot.lane.b32.xlu0 %v2658, 8
    %v3842 = vpop.permute.xlu0 %3841
    %3846 = vrot.lane.b32.xlu0 %v3465, 16
    %v3847 = vpop.permute.xlu0 %3846
    %3848 = vrot.lane.b32.xlu0 %v3466, 16
    %v3849 = vpop.permute.xlu0 %3848
    %3850 = vrot.lane.b32.xlu0 %v3467, 16
    %v3851 = vpop.permute.xlu0 %3850
    %v3855 = vsel %vm481, %v1847, %v3838
    %v3856 = vsel %vm481, %v1848, %v3840
    %v3857 = vsel %vm481, %v1849, %v3842
    %v3858 = vsel %vm387, %v3855, %v3847
    %v3859 = vsel %vm387, %v3856, %v3849
    %v3860 = vsel %vm387, %v3857, %v3851
    %v3861 = vld [vmem:[#allocation2 + $0x148] sm:$0xff]
    %v3862 = vld [vmem:[#allocation2 + $0x150] sm:$0xff]
    %v3863 = vld [vmem:[#allocation2 + $0x158] sm:$0xff]
    %v3864 = vld [vmem:[#allocation2 + $0x160] sm:$0x1]
    %v3865 = vlaneseq
    %v3866 = vshrl.u32 %v3865, 7
    %v3867 = vsub.s32 0, %v3866
    %v3868 = vrot.slane %v3864, %v3867
    %v3870 = vsel %vm1245, %v3858, 0
    %v3873 = vsel %vm1245, %v3859, 0
    %v3876 = vsel %vm1245, %v3860, 0
    %3878 = vmatprep.subr.mxu0 0.0
    %3879 = vmatpush1.msra.mxu0 0.0
    %3880 = vmatprep.subr.mxu0 0.0
    %3881 = vmatpush1.msra.mxu0 0.0
    %3882 = vmatprep.subr.mxu0 0.0
    %3883 = vmatpush1.msra.mxu0 0.0
    %3884 = vmatprep.subr.mxu0 0.0
    %3885 = vmatpush1.msra.mxu0 0.0
    %3886 = vmatprep.subr.mxu0 0.0
    %3887 = vmatpush1.msra.mxu0 0.0
    %3888 = vmatprep.subr.mxu0 0.0
    %3889 = vmatpush1.msra.mxu0 0.0
    %3890 = vmatprep.subr.mxu0 0.0
    %3891 = vmatpush1.msra.mxu0 0.0
    %3892 = vmatprep.subr.mxu0 0.0
    %3893 = vmatpush1.msra.mxu0 0.0
    %3894 = vmatprep.subr.mxu0 0.0
    %3895 = vmatpush1.msra.mxu0 0.0
    %3896 = vmatprep.subr.mxu0 0.0
    %3897 = vmatpush1.msra.mxu0 0.0
    %3898 = vmatprep.subr.mxu0 0.0
    %3899 = vmatpush1.msra.mxu0 0.0
    %3900 = vmatprep.subr.mxu0 0.0
    %3901 = vmatpush1.msra.mxu0 0.0
    %3902 = vmatprep.subr.mxu0 0.0
    %3903 = vmatpush1.msra.mxu0 0.0
    %3904 = vmatprep.subr.mxu0 0.0
    %3905 = vmatpush1.msra.mxu0 %v3863
    %3906 = vmatprep.subr.mxu0 0.0
    %3907 = vmatpush1.msra.mxu0 %v3862
    %3908 = vmatprep.subr.mxu0 0.0
    %3909 = vmatpush1.msra.mxu0 %v3861
    %3910 = vmatprep.subr.mxu0 0.0
    %3911 = vmatpush2.msra.mxu0 0.0
    %3912 = vmatprep.subr.mxu0 0.0
    %3913 = vmatpush2.msra.mxu0 0.0
    %3914 = vmatprep.subr.mxu0 0.0
    %3915 = vmatpush2.msra.mxu0 0.0
    %3916 = vmatprep.subr.mxu0 0.0
    %3917 = vmatpush2.msra.mxu0 0.0
    %3918 = vmatprep.subr.mxu0 0.0
    %3919 = vmatpush2.msra.mxu0 0.0
    %3920 = vmatprep.subr.mxu0 0.0
    %3921 = vmatpush2.msra.mxu0 0.0
    %3922 = vmatprep.subr.mxu0 0.0
    %3923 = vmatpush2.msra.mxu0 0.0
    %3924 = vmatprep.subr.mxu0 0.0
    %3925 = vmatpush2.msra.mxu0 0.0
    %3926 = vmatprep.subr.mxu0 0.0
    %3927 = vmatpush2.msra.mxu0 0.0
    %3928 = vmatprep.subr.mxu0 0.0
    %3929 = vmatpush2.msra.mxu0 0.0
    %3930 = vmatprep.subr.mxu0 0.0
    %3931 = vmatpush2.msra.mxu0 0.0
    %3932 = vmatprep.subr.mxu0 0.0
    %3933 = vmatpush2.msra.mxu0 0.0
    %3934 = vmatprep.subr.mxu0 0.0
    %3935 = vmatpush2.msra.mxu0 0.0
    %3936 = vmatprep.subr.mxu0 0.0
    %3937 = vmatpush2.msra.mxu0 0.0
    %3938 = vmatprep.subr.mxu0 0.0
    %3939 = vmatpush2.msra.mxu0 0.0
    %3940 = vmatprep.subr.mxu0 0.0
    %3941 = vmatpush2.msra.mxu0 0.0
    %3942 = vmatprep.mubr.f32.mxu0 0.0
    %3943 = vmatmul.mubr.f32.gmra.mxu0 %v3870
    %v3944 = vpop.f32.mrf.mxu0
    %v3945 = vadd.f32 %v3868, %v3944
    %v3946 = vpop.f32.mrf.mxu0
    %3947 = vmatprep.mubr.f32.mxu0 0.0
    %3948 = vmatmul.mubr.f32.gmra.mxu0 %v3873
    %v3949 = vpop.f32.mrf.mxu0
    %v3950 = vadd.f32 %v3868, %v3949
    %v3951 = vpop.f32.mrf.mxu0
    %3952 = vmatprep.mubr.f32.mxu0 0.0
    %3953 = vmatmul.mubr.f32.gmra.mxu0 %v3876
    %v3954 = vpop.f32.mrf.mxu0
    %v3955 = vadd.f32 %v3868, %v3954
    %v3956 = vpop.f32.mrf.mxu0
    %3957 = vdwg.mxu0
    %v3958 = vmax.f32 %v3945, 0.0
    %v3959 = vmax.f32 %v3950, 0.0
    %v3960 = vmax.f32 %v3955, 0.0
    %v3961 = vld [vmem:[#allocation2 + $0x168] sm:$0xff]
    %v3962 = vld [vmem:[#allocation2 + $0x170] sm:$0xff]
    %v3963 = vld [vmem:[#allocation2 + $0x178] sm:$0xff]
    %v3964 = vld [vmem:[#allocation2 + $0x180] sm:$0x1]
    %v3965 = vlaneseq
    %v3966 = vshrl.u32 %v3965, 7
    %v3967 = vsub.s32 0, %v3966
    %v3968 = vrot.slane %v3964, %v3967
    %v3970 = vsel %vm1245, %v3958, 0
    %v3973 = vsel %vm1245, %v3959, 0
    %v3976 = vsel %vm1245, %v3960, 0
    %3978 = vmatprep.subr.mxu0 0.0
    %3979 = vmatpush1.msra.mxu0 0.0
    %3980 = vmatprep.subr.mxu0 0.0
    %3981 = vmatpush1.msra.mxu0 0.0
    %3982 = vmatprep.subr.mxu0 0.0
    %3983 = vmatpush1.msra.mxu0 0.0
    %3984 = vmatprep.subr.mxu0 0.0
    %3985 = vmatpush1.msra.mxu0 0.0
    %3986 = vmatprep.subr.mxu0 0.0
    %3987 = vmatpush1.msra.mxu0 0.0
    %3988 = vmatprep.subr.mxu0 0.0
    %3989 = vmatpush1.msra.mxu0 0.0
    %3990 = vmatprep.subr.mxu0 0.0
    %3991 = vmatpush1.msra.mxu0 0.0
    %3992 = vmatprep.subr.mxu0 0.0
    %3993 = vmatpush1.msra.mxu0 0.0
    %3994 = vmatprep.subr.mxu0 0.0
    %3995 = vmatpush1.msra.mxu0 0.0
    %3996 = vmatprep.subr.mxu0 0.0
    %3997 = vmatpush1.msra.mxu0 0.0
    %3998 = vmatprep.subr.mxu0 0.0
    %3999 = vmatpush1.msra.mxu0 0.0
    %4000 = vmatprep.subr.mxu0 0.0
    %4001 = vmatpush1.msra.mxu0 0.0
    %4002 = vmatprep.subr.mxu0 0.0
    %4003 = vmatpush1.msra.mxu0 0.0
    %4004 = vmatprep.subr.mxu0 0.0
    %4005 = vmatpush1.msra.mxu0 %v3963
    %4006 = vmatprep.subr.mxu0 0.0
    %4007 = vmatpush1.msra.mxu0 %v3962
    %4008 = vmatprep.subr.mxu0 0.0
    %4009 = vmatpush1.msra.mxu0 %v3961
    %4010 = vmatprep.subr.mxu0 0.0
    %4011 = vmatpush2.msra.mxu0 0.0
    %4012 = vmatprep.subr.mxu0 0.0
    %4013 = vmatpush2.msra.mxu0 0.0
    %4014 = vmatprep.subr.mxu0 0.0
    %4015 = vmatpush2.msra.mxu0 0.0
    %4016 = vmatprep.subr.mxu0 0.0
    %4017 = vmatpush2.msra.mxu0 0.0
    %4018 = vmatprep.subr.mxu0 0.0
    %4019 = vmatpush2.msra.mxu0 0.0
    %4020 = vmatprep.subr.mxu0 0.0
    %4021 = vmatpush2.msra.mxu0 0.0
    %4022 = vmatprep.subr.mxu0 0.0
    %4023 = vmatpush2.msra.mxu0 0.0
    %4024 = vmatprep.subr.mxu0 0.0
    %4025 = vmatpush2.msra.mxu0 0.0
    %4026 = vmatprep.subr.mxu0 0.0
    %4027 = vmatpush2.msra.mxu0 0.0
    %4028 = vmatprep.subr.mxu0 0.0
    %4029 = vmatpush2.msra.mxu0 0.0
    %4030 = vmatprep.subr.mxu0 0.0
    %4031 = vmatpush2.msra.mxu0 0.0
    %4032 = vmatprep.subr.mxu0 0.0
    %4033 = vmatpush2.msra.mxu0 0.0
    %4034 = vmatprep.subr.mxu0 0.0
    %4035 = vmatpush2.msra.mxu0 0.0
    %4036 = vmatprep.subr.mxu0 0.0
    %4037 = vmatpush2.msra.mxu0 0.0
    %4038 = vmatprep.subr.mxu0 0.0
    %4039 = vmatpush2.msra.mxu0 0.0
    %4040 = vmatprep.subr.mxu0 0.0
    %4041 = vmatpush2.msra.mxu0 0.0
    %4042 = vmatprep.mubr.f32.mxu0 0.0
    %4043 = vmatmul.mubr.f32.gmra.mxu0 %v3970
    %v4044 = vpop.f32.mrf.mxu0
    %v4045 = vadd.f32 %v3968, %v4044
    %v4046 = vpop.f32.mrf.mxu0
    %4047 = vmatprep.mubr.f32.mxu0 0.0
    %4048 = vmatmul.mubr.f32.gmra.mxu0 %v3973
    %v4049 = vpop.f32.mrf.mxu0
    %v4050 = vadd.f32 %v3968, %v4049
    %v4051 = vpop.f32.mrf.mxu0
    %4052 = vmatprep.mubr.f32.mxu0 0.0
    %4053 = vmatmul.mubr.f32.gmra.mxu0 %v3976
    %v4054 = vpop.f32.mrf.mxu0
    %v4055 = vadd.f32 %v3968, %v4054
    %v4056 = vpop.f32.mrf.mxu0
    %4057 = vdwg.mxu0
    %4058 = vrot.lane.b32.xlu0 %v2217, 16
    %v4059 = vpop.permute.xlu0 %4058
    %4060 = vrot.lane.b32.xlu0 %v2218, 16
    %v4061 = vpop.permute.xlu0 %4060
    %4064 = vrot.lane.b32.xlu0 %v3026, 32
    %v4065 = vpop.permute.xlu0 %4064
    %4066 = vrot.lane.b32.xlu0 %v3027, 32
    %v4067 = vpop.permute.xlu0 %4066
    %4072 = vrot.lane.b32.xlu0 %v3835, 48
    %v4073 = vpop.permute.xlu0 %4072
    %4074 = vrot.lane.b32.xlu0 %v3836, 48
    %v4075 = vpop.permute.xlu0 %4074
    %v4078 = vsel %vm387, %v272, %v4059
    %v4079 = vsel %vm387, %v273, %v4061
    %v4080 = vsel %vm98, %v4078, %v4065
    %v4081 = vsel %vm98, %v4079, %v4067
    %vm4082 = vcmask 392192
    %v4083 = vsel %vm4082, %v4080, %v4073
    %v4084 = vsel %vm4082, %v4081, %v4075
    %4085 = vst.msk [vmem:[#allocation5] sm:$0xff] %vm1152, %v4083
    %4086 = vst.msk [vmem:[#allocation5 + $0x8] sm:$0xff] %vm1152, %v4084
    %vm4087 = vcmask 23552
    %4088 = vst.msk [vmem:[%s4] sm:$0xff] %vm4087, %v4045
    %4089 = vst.msk [vmem:[%s4 + $0x8] sm:$0xff] %vm4087, %v4050
    %4090 = vst.msk [vmem:[%s4 + $0x10] sm:$0xff] %vm4087, %v4055
    // Predicated region
    $region18: #{tpu_custom_call.1} parent=1 // pred_check
      _
    $region19: #{tpu_custom_call.1} parent=1 // pred_check_branch
      %4092 = sbr.rel (0) target = $region21
    $region20: #{tpu_custom_call.1} parent=1 // pred_region
      %s4094 = ssub.s32 256, 256
      %4095 = vsyncadd [#allocation4], %s4094
      %s4096 = sshll.u32 [#allocation5], 4
      %s4097 = int_to_ptr.vmem [resolvable:$true] %s4096
      %4102 = dma.vmem_to_hbm [thread:$0]  %s4097, 256, %s3, [#allocation4], 128, 128, 8
    $region21: #{tpu_custom_call.1} parent=1 // pred_fallthru
      _
    // Predicated region
    $region22: #{tpu_custom_call.1} parent=1 // pred_check
      _
    $region23: #{tpu_custom_call.1} parent=1 // pred_check_branch
      %4104 = sbr.rel (0) target = $region25
    $region24: #{tpu_custom_call.1} parent=1 // pred_region
      _
    $region25: #{tpu_custom_call.1} parent=1 // pred_fallthru
      _
    // Predicated region
    $region26: #{tpu_custom_call.1} parent=1 // pred_check
      _
    $region27: #{tpu_custom_call.1} parent=1 // pred_check_branch
      %4106 = sbr.rel (0) target = $region29
    $region28: #{tpu_custom_call.1} parent=1 // pred_region
      %4107 = dma.done [#allocation4], 256
    $region29: #{tpu_custom_call.1} parent=1 // pred_fallthru
      _
    // Predicated region
    $region30: #{tpu_custom_call.1} parent=1 // pred_check
      _
    $region31: #{tpu_custom_call.1} parent=1 // pred_check_branch
      %4109 = sbr.rel (0) target = $region33
    $region32: #{tpu_custom_call.1} parent=1 // pred_region
      _
    $region33: #{tpu_custom_call.1} parent=1 // pred_fallthru
      _
    %4110 = vsyncpa [#allocation3], 1
    %4111 = vsyncpa [#allocation4], 1

</llo_original>
